<compile_context>
chip_gen: v7x
topology: tpu7x:2x2x1
jax: 0.10.0
libtpu: 0.0.40
codegen_flags: <defaults>
</compile_context>

<pallas_src>
import jax
import jax.numpy as jnp
import numpy as np
from jax.experimental import pallas as pl
from jax.experimental.pallas import tpu as pltpu

# Default InCNN network structure (the `network_structure is None` branch).
K1, S1, OC1 = 4, 1, 32          # Conv2d(C -> 32, kernel 4, stride 1, padding 0)
K2, S2, OC2 = 8, 2, 16          # Conv2d(32 -> 16, kernel 8, stride 2, padding 0)
FC1, FC2 = 256, 64              # Linear(flat -> 256), Linear(256 -> 64)
FC2_PAD = 128                   # final output padded to a full 128-lane tile


def _out_dim(i, k, s):
    return (i - k) // s + 1


def _make_fused_kernel(B, H, W, C):
    OH1, OW1 = _out_dim(H, K1, S1), _out_dim(W, K1, S1)
    OH2, OW2 = _out_dim(OH1, K2, S2), _out_dim(OW1, K2, S2)
    WC = W * C                    # flattened input row width
    N1 = OW1 * OC1                # conv1 output row width (lane-dense)
    N2 = OW2 * OC2                # conv2 output row width (lane-dense)
    M1 = B * H                    # conv1 overcomplete rows (row m = b*H + y)
    M2 = M1 - K2 + 1              # conv2 overcomplete rows; covers all b*H + S2*y2

    def kernel(x_ref, w1_ref, b1_ref, w2_ref, b2_ref, w3_ref, b3_ref,
               w4_ref, b4_ref, o_ref, h1_s, h2_s):
        # ---------------- conv1 + ReLU: K1 Toeplitz tap-row GEMMs -----------
        # acc1[b*H + y, xo*OC1 + o] = sum_i x_rows[b*H + y + i, :] @ W1_i
        acc1 = jnp.dot(x_ref[0:M1, :], w1_ref[0:WC, :],
                       preferred_element_type=jnp.float32)
        for i in range(1, K1):
            acc1 = acc1 + jnp.dot(x_ref[i:i + M1, :],
                                  w1_ref[i * WC:(i + 1) * WC, :],
                                  preferred_element_type=jnp.float32)
        h1_s[...] = jnp.maximum(acc1 + b1_ref[...], 0.0)      # (M1, N1)

        # ---------------- conv2 + ReLU: K2 Toeplitz tap-row GEMMs -----------
        # Stride-2 in x is folded into W2_i; stride-2 in y is handled by
        # computing every row offset and only gathering the valid ones below.
        acc2 = jnp.dot(h1_s[0:M2, :], w2_ref[0:N1, :],
                       preferred_element_type=jnp.float32)
        for i in range(1, K2):
            acc2 = acc2 + jnp.dot(h1_s[i:i + M2, :],
                                  w2_ref[i * N1:(i + 1) * N1, :],
                                  preferred_element_type=jnp.float32)
        h2 = jnp.maximum(acc2 + b2_ref[...], 0.0)              # (M2, N2)

        # ---- repack the B*OH2 valid rows into a lane-dense (B, OH2*OW2*OC2)
        # fc1 LHS (Flatten + idempotent ReLU); 6 contiguous 48-lane stores.
        for b in range(B):
            for y2 in range(OH2):
                src = b * H + S2 * y2
                h2_s[b:b + 1, y2 * N2:(y2 + 1) * N2] = h2[src:src + 1, :]

        # ---------------- fc1 + ReLU, fc2 + ReLU (padded to 128 lanes) ------
        h3 = jnp.maximum(
            jnp.dot(h2_s[...], w3_ref[...], preferred_element_type=jnp.float32)
            + b3_ref[...], 0.0)                                # (B, FC1)
        out = jnp.dot(h3, w4_ref[...], preferred_element_type=jnp.float32)
        o_ref[...] = jnp.maximum(out + b4_ref[...], 0.0)       # (B, FC2_PAD)

    return kernel, (OH1, OW1, OH2, OW2, M1, N1, N2)


def _in_cnn_forward(x_nhwc, kp):
    B, H, W, C = x_nhwc.shape
    kernel, (OH1, OW1, OH2, OW2, M1, N1, N2) = _make_fused_kernel(B, H, W, C)
    assert OH2 >= 1 and OW2 >= 1, "input too small for the default structure"
    assert kp["w3"].shape[0] == OH2 * OW2 * OC2, "fc1 size mismatch"

    # Free HBM-side reshape to lane-dense rows + (K1-1) zero rows so the
    # overcomplete conv1 rows stay finite.
    x_rows = x_nhwc.reshape(B * H, W * C).astype(jnp.float32)
    x_pad = jnp.pad(x_rows, ((0, K1 - 1), (0, 0)))

    out_pad = pl.pallas_call(
        kernel,
        out_shape=jax.ShapeDtypeStruct((B, FC2_PAD), jnp.float32),
        scratch_shapes=[
            pltpu.VMEM((M1, N1), jnp.float32),             # conv1 output rows
            pltpu.VMEM((B, OH2 * OW2 * OC2), jnp.float32), # fc1 LHS (B, 144)
        ],
        # TODO(synk): for large batch, add a grid over batch tiles with
        # dimension_semantics=("parallel",) (v7x 2-TC) and size tiles to VMEM.
    )(x_pad,
      kp["w1"], kp["b1"], kp["w2"], kp["b2"],
      kp["w3"], kp["b3"], kp["w4"], kp["b4"])
    return out_pad[:, :FC2]


in_cnn_forward = jax.jit(_in_cnn_forward)


def init_params(key, in_channels, flat_size):
    """Parameters in native PyTorch layouts (OIHW convs, (out,in) linears)."""
    ks = jax.random.split(key, 8)
    s = 0.05
    return {
        "conv1_w": s * jax.random.normal(ks[0], (OC1, in_channels, K1, K1), jnp.float32),
        "conv1_b": s * jax.random.normal(ks[1], (OC1,), jnp.float32),
        "conv2_w": s * jax.random.normal(ks[2], (OC2, OC1, K2, K2), jnp.float32),
        "conv2_b": s * jax.random.normal(ks[3], (OC2,), jnp.float32),
        "fc1_w":   s * jax.random.normal(ks[4], (FC1, flat_size), jnp.float32),
        "fc1_b":   s * jax.random.normal(ks[5], (FC1,), jnp.float32),
        "fc2_w":   s * jax.random.normal(ks[6], (FC2, FC1), jnp.float32),
        "fc2_b":   s * jax.random.normal(ks[7], (FC2,), jnp.float32),
    }


def prep_params(p, H, W):
    """One-time host-side layout folding.

    Conv weights become per-tap-row Toeplitz GEMM matrices over the x axis
    (x kernel taps + conv2's stride folded into the weight), biases become
    row-tiled vectors, fc1 rows are permuted from the NCHW Flatten order to
    the kernel's (y2, x2, c) order, and fc2 is padded to 128 output lanes.
    """
    conv1_w = np.asarray(p["conv1_w"], np.float32)   # (OC1, C, K1, K1)
    conv2_w = np.asarray(p["conv2_w"], np.float32)   # (OC2, OC1, K2, K2)
    C = conv1_w.shape[1]
    OH1, OW1 = _out_dim(H, K1, S1), _out_dim(W, K1, S1)
    OH2, OW2 = _out_dim(OH1, K2, S2), _out_dim(OW1, K2, S2)

    # conv1 Toeplitz: W1[i*W*C + xin*C + c, xo*OC1 + o] = conv1_w[o, c, i, xin - xo]
    W1 = np.zeros((K1 * W * C, OW1 * OC1), np.float32)
    for i in range(K1):
        for j in range(K1):
            blk = conv1_w[:, :, i, j].T              # (C, OC1)
            for xo in range(OW1):
                xin = xo + j
                r0 = i * W * C + xin * C
                W1[r0:r0 + C, xo * OC1:(xo + 1) * OC1] = blk

    # conv2 Toeplitz (stride S2 in x folded in):
    # W2[i*OW1*OC1 + xin*OC1 + c, x2*OC2 + o] = conv2_w[o, c, i, xin - S2*x2]
    W2 = np.zeros((K2 * OW1 * OC1, OW2 * OC2), np.float32)
    for i in range(K2):
        for j in range(K2):
            blk = conv2_w[:, :, i, j].T              # (OC1, OC2)
            for x2 in range(OW2):
                xin = S2 * x2 + j
                r0 = i * OW1 * OC1 + xin * OC1
                W2[r0:r0 + OC1, x2 * OC2:(x2 + 1) * OC2] = blk

    b1r = np.tile(np.asarray(p["conv1_b"], np.float32), OW1).reshape(1, OW1 * OC1)
    b2r = np.tile(np.asarray(p["conv2_b"], np.float32), OW2).reshape(1, OW2 * OC2)

    # fc1: reorder rows from NCHW flatten (o, y2, x2) to kernel order (y2, x2, o).
    fc1_w = np.asarray(p["fc1_w"], np.float32)                  # (FC1, OC2*OH2*OW2)
    w3 = fc1_w.T.reshape(OC2, OH2, OW2, FC1).transpose(1, 2, 0, 3)
    w3 = np.ascontiguousarray(w3.reshape(OH2 * OW2 * OC2, FC1))

    w4 = np.zeros((FC1, FC2_PAD), np.float32)
    w4[:, :FC2] = np.asarray(p["fc2_w"], np.float32).T
    b4 = np.zeros((1, FC2_PAD), np.float32)
    b4[0, :FC2] = np.asarray(p["fc2_b"], np.float32)

    return {
        "w1": jnp.asarray(W1), "b1": jnp.asarray(b1r),
        "w2": jnp.asarray(W2), "b2": jnp.asarray(b2r),
        "w3": jnp.asarray(w3),
        "b3": jnp.asarray(np.asarray(p["fc1_b"], np.float32).reshape(1, FC1)),
        "w4": jnp.asarray(w4), "b4": jnp.asarray(b4),
    }


def in_cnn_reference(x_nhwc, p):
    """Pure-JAX reference matching the PyTorch module (default structure)."""
    x = jnp.transpose(x_nhwc, (0, 3, 1, 2))                       # NHWC -> NCHW
    y = jax.lax.conv_general_dilated(
        x, p["conv1_w"], (S1, S1), "VALID",
        dimension_numbers=("NCHW", "OIHW", "NCHW"))
    y = jnp.maximum(y + p["conv1_b"][None, :, None, None], 0.0)
    y = jax.lax.conv_general_dilated(
        y, p["conv2_w"], (S2, S2), "VALID",
        dimension_numbers=("NCHW", "OIHW", "NCHW"))
    y = jnp.maximum(y + p["conv2_b"][None, :, None, None], 0.0)
    y = jnp.maximum(y.reshape(y.shape[0], -1), 0.0)               # Flatten + ReLU
    y = jnp.maximum(y @ p["fc1_w"].T + p["fc1_b"], 0.0)
    y = jnp.maximum(y @ p["fc2_w"].T + p["fc2_b"], 0.0)
    return y


if __name__ == "__main__":
    key = jax.random.PRNGKey(0)
    k_x, k_p = jax.random.split(key)

    # Forward input is an NHWC batch (the module permutes 0,3,1,2 internally).
    B, H, W, C = 2, 16, 16, 4
    x = jax.random.normal(k_x, (B, H, W, C), jnp.float32)

    OH1, OW1 = _out_dim(H, K1, S1), _out_dim(W, K1, S1)
    OH2, OW2 = _out_dim(OH1, K2, S2), _out_dim(OW1, K2, S2)
    flat_size = OH2 * OW2 * OC2                                   # 3*3*16 = 144

    params = init_params(k_p, C, flat_size)   # PyTorch-layout params
    kparams = prep_params(params, H, W)       # one-time layout folding

    out = in_cnn_forward(x, kparams)
    out = jax.block_until_ready(out)

    assert out.shape == (B, FC2), out.shape
    assert bool(jnp.all(out >= 0.0))          # final ReLU
    ref = in_cnn_reference(x, params)
    assert bool(jnp.allclose(out, ref, rtol=2e-2, atol=2e-3)), \
        float(jnp.max(jnp.abs(out - ref)))
    print("KERNEL_OK")
</pallas_src>

<mosaic_0001>
module attributes {stable_mosaic.version = 11 : i64} {
  func.func @kernel(%arg0: memref<35x64xf32, #tpu.memory_space<vmem>>, %arg1: memref<256x416xf32, #tpu.memory_space<vmem>>, %arg2: memref<1x416xf32, #tpu.memory_space<vmem>>, %arg3: memref<3328x48xf32, #tpu.memory_space<vmem>>, %arg4: memref<1x48xf32, #tpu.memory_space<vmem>>, %arg5: memref<144x256xf32, #tpu.memory_space<vmem>>, %arg6: memref<1x256xf32, #tpu.memory_space<vmem>>, %arg7: memref<256x128xf32, #tpu.memory_space<vmem>>, %arg8: memref<1x128xf32, #tpu.memory_space<vmem>>, %arg9: memref<2x128xf32, #tpu.memory_space<vmem>>, %arg10: memref<32x416xf32, #tpu.memory_space<vmem>>, %arg11: memref<2x144xf32, #tpu.memory_space<vmem>>) attributes {dimension_semantics = [], scalar_prefetch = 0 : i64, scratch_operands = 2 : i64, tpu.core_type = #tpu.core_type<tc>} {
    %c0 = arith.constant 0 : index
    %c0_0 = arith.constant 0 : index
    %0 = vector.load %arg0[%c0, %c0_0] : memref<35x64xf32, #tpu.memory_space<vmem>>, vector<32x64xf32>
    %c0_1 = arith.constant 0 : index
    %c0_2 = arith.constant 0 : index
    %1 = vector.load %arg1[%c0_1, %c0_2] : memref<256x416xf32, #tpu.memory_space<vmem>>, vector<64x416xf32>
    %cst = arith.constant dense<0.000000e+00> : vector<32x416xf32>
    %2 = tpu.matmul %0, %1, %cst {dimension_numbers = #tpu.dot_dimension_numbers<[1], [0], [0], [1], [0, 0, 1, 1], [], []>} : vector<32x64xf32>, vector<64x416xf32>, vector<32x416xf32> -> vector<32x416xf32>
    %c1 = arith.constant 1 : index
    %c0_3 = arith.constant 0 : index
    %3 = vector.load %arg0[%c1, %c0_3] : memref<35x64xf32, #tpu.memory_space<vmem>>, vector<32x64xf32>
    %c64 = arith.constant 64 : index
    %c0_4 = arith.constant 0 : index
    %4 = vector.load %arg1[%c64, %c0_4] : memref<256x416xf32, #tpu.memory_space<vmem>>, vector<64x416xf32>
    %cst_5 = arith.constant dense<0.000000e+00> : vector<32x416xf32>
    %5 = tpu.matmul %3, %4, %cst_5 {dimension_numbers = #tpu.dot_dimension_numbers<[1], [0], [0], [1], [0, 0, 1, 1], [], []>} : vector<32x64xf32>, vector<64x416xf32>, vector<32x416xf32> -> vector<32x416xf32>
    %6 = arith.addf %2, %5 : vector<32x416xf32>
    %c2 = arith.constant 2 : index
    %c0_6 = arith.constant 0 : index
    %7 = vector.load %arg0[%c2, %c0_6] : memref<35x64xf32, #tpu.memory_space<vmem>>, vector<32x64xf32>
    %c128 = arith.constant 128 : index
    %c0_7 = arith.constant 0 : index
    %8 = vector.load %arg1[%c128, %c0_7] : memref<256x416xf32, #tpu.memory_space<vmem>>, vector<64x416xf32>
    %cst_8 = arith.constant dense<0.000000e+00> : vector<32x416xf32>
    %9 = tpu.matmul %7, %8, %cst_8 {dimension_numbers = #tpu.dot_dimension_numbers<[1], [0], [0], [1], [0, 0, 1, 1], [], []>} : vector<32x64xf32>, vector<64x416xf32>, vector<32x416xf32> -> vector<32x416xf32>
    %10 = arith.addf %6, %9 : vector<32x416xf32>
    %c3 = arith.constant 3 : index
    %c0_9 = arith.constant 0 : index
    %11 = vector.load %arg0[%c3, %c0_9] : memref<35x64xf32, #tpu.memory_space<vmem>>, vector<32x64xf32>
    %c192 = arith.constant 192 : index
    %c0_10 = arith.constant 0 : index
    %12 = vector.load %arg1[%c192, %c0_10] : memref<256x416xf32, #tpu.memory_space<vmem>>, vector<64x416xf32>
    %cst_11 = arith.constant dense<0.000000e+00> : vector<32x416xf32>
    %13 = tpu.matmul %11, %12, %cst_11 {dimension_numbers = #tpu.dot_dimension_numbers<[1], [0], [0], [1], [0, 0, 1, 1], [], []>} : vector<32x64xf32>, vector<64x416xf32>, vector<32x416xf32> -> vector<32x416xf32>
    %14 = arith.addf %10, %13 : vector<32x416xf32>
    %c0_12 = arith.constant 0 : index
    %c0_13 = arith.constant 0 : index
    %15 = vector.load %arg2[%c0_12, %c0_13] : memref<1x416xf32, #tpu.memory_space<vmem>>, vector<1x416xf32>
    %16 = vector.broadcast %15 : vector<1x416xf32> to vector<32x416xf32>
    %17 = arith.addf %14, %16 : vector<32x416xf32>
    %cst_14 = arith.constant 0.000000e+00 : f32
    %18 = vector.broadcast %cst_14 : f32 to vector<32x416xf32>
    %19 = arith.maximumf %17, %18 : vector<32x416xf32>
    %c0_15 = arith.constant 0 : index
    %c0_16 = arith.constant 0 : index
    %20 = vector.load %arg10[%c0_15, %c0_16] : memref<32x416xf32, #tpu.memory_space<vmem>>, vector<32x416xf32>
    tpu.vector_store %arg10[%c0_15, %c0_16], %19 {strides = array<i32>} : memref<32x416xf32, #tpu.memory_space<vmem>>, vector<32x416xf32>,
    %c0_17 = arith.constant 0 : index
    %c0_18 = arith.constant 0 : index
    %21 = vector.load %arg10[%c0_17, %c0_18] : memref<32x416xf32, #tpu.memory_space<vmem>>, vector<25x416xf32>
    %c0_19 = arith.constant 0 : index
    %c0_20 = arith.constant 0 : index
    %22 = vector.load %arg3[%c0_19, %c0_20] : memref<3328x48xf32, #tpu.memory_space<vmem>>, vector<416x48xf32>
    %cst_21 = arith.constant dense<0.000000e+00> : vector<25x48xf32>
    %23 = tpu.matmul %21, %22, %cst_21 {dimension_numbers = #tpu.dot_dimension_numbers<[1], [0], [0], [1], [0, 0, 1, 1], [], []>} : vector<25x416xf32>, vector<416x48xf32>, vector<25x48xf32> -> vector<25x48xf32>
    %c1_22 = arith.constant 1 : index
    %c0_23 = arith.constant 0 : index
    %24 = vector.load %arg10[%c1_22, %c0_23] : memref<32x416xf32, #tpu.memory_space<vmem>>, vector<25x416xf32>
    %c416 = arith.constant 416 : index
    %c0_24 = arith.constant 0 : index
    %25 = vector.load %arg3[%c416, %c0_24] : memref<3328x48xf32, #tpu.memory_space<vmem>>, vector<416x48xf32>
    %cst_25 = arith.constant dense<0.000000e+00> : vector<25x48xf32>
    %26 = tpu.matmul %24, %25, %cst_25 {dimension_numbers = #tpu.dot_dimension_numbers<[1], [0], [0], [1], [0, 0, 1, 1], [], []>} : vector<25x416xf32>, vector<416x48xf32>, vector<25x48xf32> -> vector<25x48xf32>
    %27 = arith.addf %23, %26 : vector<25x48xf32>
    %c2_26 = arith.constant 2 : index
    %c0_27 = arith.constant 0 : index
    %28 = vector.load %arg10[%c2_26, %c0_27] : memref<32x416xf32, #tpu.memory_space<vmem>>, vector<25x416xf32>
    %c832 = arith.constant 832 : index
    %c0_28 = arith.constant 0 : index
    %29 = vector.load %arg3[%c832, %c0_28] : memref<3328x48xf32, #tpu.memory_space<vmem>>, vector<416x48xf32>
    %cst_29 = arith.constant dense<0.000000e+00> : vector<25x48xf32>
    %30 = tpu.matmul %28, %29, %cst_29 {dimension_numbers = #tpu.dot_dimension_numbers<[1], [0], [0], [1], [0, 0, 1, 1], [], []>} : vector<25x416xf32>, vector<416x48xf32>, vector<25x48xf32> -> vector<25x48xf32>
    %31 = arith.addf %27, %30 : vector<25x48xf32>
    %c3_30 = arith.constant 3 : index
    %c0_31 = arith.constant 0 : index
    %32 = vector.load %arg10[%c3_30, %c0_31] : memref<32x416xf32, #tpu.memory_space<vmem>>, vector<25x416xf32>
    %c1248 = arith.constant 1248 : index
    %c0_32 = arith.constant 0 : index
    %33 = vector.load %arg3[%c1248, %c0_32] : memref<3328x48xf32, #tpu.memory_space<vmem>>, vector<416x48xf32>
    %cst_33 = arith.constant dense<0.000000e+00> : vector<25x48xf32>
    %34 = tpu.matmul %32, %33, %cst_33 {dimension_numbers = #tpu.dot_dimension_numbers<[1], [0], [0], [1], [0, 0, 1, 1], [], []>} : vector<25x416xf32>, vector<416x48xf32>, vector<25x48xf32> -> vector<25x48xf32>
    %35 = arith.addf %31, %34 : vector<25x48xf32>
    %c4 = arith.constant 4 : index
    %c0_34 = arith.constant 0 : index
    %36 = vector.load %arg10[%c4, %c0_34] : memref<32x416xf32, #tpu.memory_space<vmem>>, vector<25x416xf32>
    %c1664 = arith.constant 1664 : index
    %c0_35 = arith.constant 0 : index
    %37 = vector.load %arg3[%c1664, %c0_35] : memref<3328x48xf32, #tpu.memory_space<vmem>>, vector<416x48xf32>
    %cst_36 = arith.constant dense<0.000000e+00> : vector<25x48xf32>
    %38 = tpu.matmul %36, %37, %cst_36 {dimension_numbers = #tpu.dot_dimension_numbers<[1], [0], [0], [1], [0, 0, 1, 1], [], []>} : vector<25x416xf32>, vector<416x48xf32>, vector<25x48xf32> -> vector<25x48xf32>
    %39 = arith.addf %35, %38 : vector<25x48xf32>
    %c5 = arith.constant 5 : index
    %c0_37 = arith.constant 0 : index
    %40 = vector.load %arg10[%c5, %c0_37] : memref<32x416xf32, #tpu.memory_space<vmem>>, vector<25x416xf32>
    %c2080 = arith.constant 2080 : index
    %c0_38 = arith.constant 0 : index
    %41 = vector.load %arg3[%c2080, %c0_38] : memref<3328x48xf32, #tpu.memory_space<vmem>>, vector<416x48xf32>
    %cst_39 = arith.constant dense<0.000000e+00> : vector<25x48xf32>
    %42 = tpu.matmul %40, %41, %cst_39 {dimension_numbers = #tpu.dot_dimension_numbers<[1], [0], [0], [1], [0, 0, 1, 1], [], []>} : vector<25x416xf32>, vector<416x48xf32>, vector<25x48xf32> -> vector<25x48xf32>
    %43 = arith.addf %39, %42 : vector<25x48xf32>
    %c6 = arith.constant 6 : index
    %c0_40 = arith.constant 0 : index
    %44 = vector.load %arg10[%c6, %c0_40] : memref<32x416xf32, #tpu.memory_space<vmem>>, vector<25x416xf32>
    %c2496 = arith.constant 2496 : index
    %c0_41 = arith.constant 0 : index
    %45 = vector.load %arg3[%c2496, %c0_41] : memref<3328x48xf32, #tpu.memory_space<vmem>>, vector<416x48xf32>
    %cst_42 = arith.constant dense<0.000000e+00> : vector<25x48xf32>
    %46 = tpu.matmul %44, %45, %cst_42 {dimension_numbers = #tpu.dot_dimension_numbers<[1], [0], [0], [1], [0, 0, 1, 1], [], []>} : vector<25x416xf32>, vector<416x48xf32>, vector<25x48xf32> -> vector<25x48xf32>
    %47 = arith.addf %43, %46 : vector<25x48xf32>
    %c7 = arith.constant 7 : index
    %c0_43 = arith.constant 0 : index
    %48 = vector.load %arg10[%c7, %c0_43] : memref<32x416xf32, #tpu.memory_space<vmem>>, vector<25x416xf32>
    %c2912 = arith.constant 2912 : index
    %c0_44 = arith.constant 0 : index
    %49 = vector.load %arg3[%c2912, %c0_44] : memref<3328x48xf32, #tpu.memory_space<vmem>>, vector<416x48xf32>
    %cst_45 = arith.constant dense<0.000000e+00> : vector<25x48xf32>
    %50 = tpu.matmul %48, %49, %cst_45 {dimension_numbers = #tpu.dot_dimension_numbers<[1], [0], [0], [1], [0, 0, 1, 1], [], []>} : vector<25x416xf32>, vector<416x48xf32>, vector<25x48xf32> -> vector<25x48xf32>
    %51 = arith.addf %47, %50 : vector<25x48xf32>
    %c0_46 = arith.constant 0 : index
    %c0_47 = arith.constant 0 : index
    %52 = vector.load %arg4[%c0_46, %c0_47] : memref<1x48xf32, #tpu.memory_space<vmem>>, vector<1x48xf32>
    %53 = vector.broadcast %52 : vector<1x48xf32> to vector<25x48xf32>
    %54 = arith.addf %51, %53 : vector<25x48xf32>
    %cst_48 = arith.constant 0.000000e+00 : f32
    %55 = vector.broadcast %cst_48 : f32 to vector<25x48xf32>
    %56 = arith.maximumf %54, %55 : vector<25x48xf32>
    %57 = vector.extract_strided_slice %56 {offsets = [0, 0], sizes = [1, 48], strides = [1, 1]} : vector<25x48xf32> to vector<1x48xf32>
    %c0_49 = arith.constant 0 : index
    %c0_50 = arith.constant 0 : index
    %58 = vector.load %arg11[%c0_49, %c0_50] : memref<2x144xf32, #tpu.memory_space<vmem>>, vector<1x48xf32>
    tpu.vector_store %arg11[%c0_49, %c0_50], %57 {strides = array<i32>} : memref<2x144xf32, #tpu.memory_space<vmem>>, vector<1x48xf32>,
    %59 = vector.extract_strided_slice %56 {offsets = [2, 0], sizes = [1, 48], strides = [1, 1]} : vector<25x48xf32> to vector<1x48xf32>
    %c0_51 = arith.constant 0 : index
    %c48 = arith.constant 48 : index
    %60 = vector.load %arg11[%c0_51, %c48] : memref<2x144xf32, #tpu.memory_space<vmem>>, vector<1x48xf32>
    tpu.vector_store %arg11[%c0_51, %c48], %59 {strides = array<i32>} : memref<2x144xf32, #tpu.memory_space<vmem>>, vector<1x48xf32>,
    %61 = vector.extract_strided_slice %56 {offsets = [4, 0], sizes = [1, 48], strides = [1, 1]} : vector<25x48xf32> to vector<1x48xf32>
    %c0_52 = arith.constant 0 : index
    %c96 = arith.constant 96 : index
    %62 = vector.load %arg11[%c0_52, %c96] : memref<2x144xf32, #tpu.memory_space<vmem>>, vector<1x48xf32>
    tpu.vector_store %arg11[%c0_52, %c96], %61 {strides = array<i32>} : memref<2x144xf32, #tpu.memory_space<vmem>>, vector<1x48xf32>,
    %63 = vector.extract_strided_slice %56 {offsets = [16, 0], sizes = [1, 48], strides = [1, 1]} : vector<25x48xf32> to vector<1x48xf32>
    %c1_53 = arith.constant 1 : index
    %c0_54 = arith.constant 0 : index
    %64 = vector.load %arg11[%c1_53, %c0_54] : memref<2x144xf32, #tpu.memory_space<vmem>>, vector<1x48xf32>
    tpu.vector_store %arg11[%c1_53, %c0_54], %63 {strides = array<i32>} : memref<2x144xf32, #tpu.memory_space<vmem>>, vector<1x48xf32>,
    %65 = vector.extract_strided_slice %56 {offsets = [18, 0], sizes = [1, 48], strides = [1, 1]} : vector<25x48xf32> to vector<1x48xf32>
    %c1_55 = arith.constant 1 : index
    %c48_56 = arith.constant 48 : index
    %66 = vector.load %arg11[%c1_55, %c48_56] : memref<2x144xf32, #tpu.memory_space<vmem>>, vector<1x48xf32>
    tpu.vector_store %arg11[%c1_55, %c48_56], %65 {strides = array<i32>} : memref<2x144xf32, #tpu.memory_space<vmem>>, vector<1x48xf32>,
    %67 = vector.extract_strided_slice %56 {offsets = [20, 0], sizes = [1, 48], strides = [1, 1]} : vector<25x48xf32> to vector<1x48xf32>
    %c1_57 = arith.constant 1 : index
    %c96_58 = arith.constant 96 : index
    %68 = vector.load %arg11[%c1_57, %c96_58] : memref<2x144xf32, #tpu.memory_space<vmem>>, vector<1x48xf32>
    tpu.vector_store %arg11[%c1_57, %c96_58], %67 {strides = array<i32>} : memref<2x144xf32, #tpu.memory_space<vmem>>, vector<1x48xf32>,
    %c0_59 = arith.constant 0 : index
    %c0_60 = arith.constant 0 : index
    %69 = vector.load %arg11[%c0_59, %c0_60] : memref<2x144xf32, #tpu.memory_space<vmem>>, vector<2x144xf32>
    %c0_61 = arith.constant 0 : index
    %c0_62 = arith.constant 0 : index
    %70 = vector.load %arg5[%c0_61, %c0_62] : memref<144x256xf32, #tpu.memory_space<vmem>>, vector<144x256xf32>
    %cst_63 = arith.constant dense<0.000000e+00> : vector<2x256xf32>
    %71 = tpu.matmul %69, %70, %cst_63 {dimension_numbers = #tpu.dot_dimension_numbers<[1], [0], [0], [1], [0, 0, 1, 1], [], []>} : vector<2x144xf32>, vector<144x256xf32>, vector<2x256xf32> -> vector<2x256xf32>
    %c0_64 = arith.constant 0 : index
    %c0_65 = arith.constant 0 : index
    %72 = vector.load %arg6[%c0_64, %c0_65] : memref<1x256xf32, #tpu.memory_space<vmem>>, vector<1x256xf32>
    %73 = vector.broadcast %72 : vector<1x256xf32> to vector<2x256xf32>
    %74 = arith.addf %71, %73 : vector<2x256xf32>
    %cst_66 = arith.constant 0.000000e+00 : f32
    %75 = vector.broadcast %cst_66 : f32 to vector<2x256xf32>
    %76 = arith.maximumf %74, %75 : vector<2x256xf32>
    %c0_67 = arith.constant 0 : index
    %c0_68 = arith.constant 0 : index
    %77 = vector.load %arg7[%c0_67, %c0_68] : memref<256x128xf32, #tpu.memory_space<vmem>>, vector<256x128xf32>
    %cst_69 = arith.constant dense<0.000000e+00> : vector<2x128xf32>
    %78 = tpu.matmul %76, %77, %cst_69 {dimension_numbers = #tpu.dot_dimension_numbers<[1], [0], [0], [1], [0, 0, 1, 1], [], []>} : vector<2x256xf32>, vector<256x128xf32>, vector<2x128xf32> -> vector<2x128xf32>
    %c0_70 = arith.constant 0 : index
    %c0_71 = arith.constant 0 : index
    %79 = vector.load %arg8[%c0_70, %c0_71] : memref<1x128xf32, #tpu.memory_space<vmem>>, vector<1x128xf32>
    %80 = vector.broadcast %79 : vector<1x128xf32> to vector<2x128xf32>
    %81 = arith.addf %78, %80 : vector<2x128xf32>
    %cst_72 = arith.constant 0.000000e+00 : f32
    %82 = vector.broadcast %cst_72 : f32 to vector<2x128xf32>
    %83 = arith.maximumf %81, %82 : vector<2x128xf32>
    %c0_73 = arith.constant 0 : index
    %c0_74 = arith.constant 0 : index
    %84 = vector.load %arg9[%c0_73, %c0_74] : memref<2x128xf32, #tpu.memory_space<vmem>>, vector<2x128xf32>
    tpu.vector_store %arg9[%c0_73, %c0_74], %83 {strides = array<i32>} : memref<2x128xf32, #tpu.memory_space<vmem>>, vector<2x128xf32>,
    return
  }
}

</mosaic_0001>

<llo_original>
// kernel: _in_cnn_forward.1
$region0: #{_in_cnn_forward.1}
  #allocation0 [shape = 'u32[]', space=smem, size = 0x4, offset = 0x4, fixed_abs, tag = 'smem constant byte address 0x4 - core index']
  #allocation1 [shape = 'u32[144,128]{1,0:T(1,128)}', space=vmem, size = 0x12000, scoped, tag = 'internal scratch']
  #allocation2 [shape = 'f32[32,416]{1,0:T(8,128)}', space=vmem, size = 0x10000, scoped, tag = 'scratch operand']
  #allocation3 [shape = 'f32[2,144]{1,0:T(2,128)}', space=vmem, size = 0x800, scoped, tag = 'scratch operand']
  %s0 = inlined_call_operand.vmem [shape: f32[35,64], index: 0, kind: input, shape index: {}]
  %s1 = inlined_call_operand.vmem [shape: f32[256,416], index: 1, kind: input, shape index: {}]
  %s2 = inlined_call_operand.vmem [shape: f32[1,416], index: 2, kind: input, shape index: {}]
  %s3 = inlined_call_operand.vmem [shape: f32[3328,48], index: 3, kind: input, shape index: {}]
  %s4 = inlined_call_operand.vmem [shape: f32[1,48], index: 4, kind: input, shape index: {}]
  %s5 = inlined_call_operand.vmem [shape: f32[144,256], index: 5, kind: input, shape index: {}]
  %s6 = inlined_call_operand.vmem [shape: f32[1,256], index: 6, kind: input, shape index: {}]
  %s7 = inlined_call_operand.vmem [shape: f32[256,128], index: 7, kind: input, shape index: {}]
  %s8 = inlined_call_operand.vmem [shape: f32[1,128], index: 8, kind: input, shape index: {}]
  %s9 = inlined_call_operand.hbm [shape: f32[2,128], index: 9, kind: output, shape index: {}]
  %s10 = sld [smem:[#allocation0]]
  $region46: #{_in_cnn_forward.1} parent=0
    _
  %s12 = ssub.s32 1, %s10
  %s13 = scalar_select 0, %s12, %s10
  $region1: #{_in_cnn_forward.1} parent=0
    #allocation4 [shape = 'u8[1024]{0}', space=vmem, size = 0x400, scoped, tag = 'output window, operand 0, single buffered']
    #allocation5 [shape = 's32[1]{0}', space=sflag, size = 0x4, scoped, tag = 'scoped memory for _in_cnn_forward.1']
    %14 = vsyncpa [#allocation5], 0
    // Predicated region
    $region2: #{_in_cnn_forward.1} parent=1 // pred_check
      _
    $region3: #{_in_cnn_forward.1} parent=1 // pred_check_branch
      %16 = sbr.rel (0) target = $region5
    $region4: #{_in_cnn_forward.1} parent=1 // pred_region
      _
    $region5: #{_in_cnn_forward.1} parent=1 // pred_fallthru
      _
    // Predicated region
    $region6: #{_in_cnn_forward.1} parent=1 // pred_check
      _
    $region7: #{_in_cnn_forward.1} parent=1 // pred_check_branch
      %18 = sbr.rel (0) target = $region9
    $region8: #{_in_cnn_forward.1} parent=1 // pred_region
      _
    $region9: #{_in_cnn_forward.1} parent=1 // pred_fallthru
      _
    // Predicated region
    $region10: #{_in_cnn_forward.1} parent=1 // pred_check
      _
    $region11: #{_in_cnn_forward.1} parent=1 // pred_check_branch
      %20 = sbr.rel (0) target = $region13
    $region12: #{_in_cnn_forward.1} parent=1 // pred_region
      _
    $region13: #{_in_cnn_forward.1} parent=1 // pred_fallthru
      _
    // Predicated region
    $region14: #{_in_cnn_forward.1} parent=1 // pred_check
      _
    $region15: #{_in_cnn_forward.1} parent=1 // pred_check_branch
      %22 = sbr.rel (0) target = $region17
    $region16: #{_in_cnn_forward.1} parent=1 // pred_region
      _
    $region17: #{_in_cnn_forward.1} parent=1 // pred_fallthru
      _
    // Predicated region
    $region18: #{_in_cnn_forward.1} parent=1 // pred_check
      _
    $region19: #{_in_cnn_forward.1} parent=1 // pred_check_branch
      %24 = sbr.rel (0) target = $region21
    $region20: #{_in_cnn_forward.1} parent=1 // pred_region
      _
    $region21: #{_in_cnn_forward.1} parent=1 // pred_fallthru
      _
    // Predicated region
    $region22: #{_in_cnn_forward.1} parent=1 // pred_check
      _
    $region23: #{_in_cnn_forward.1} parent=1 // pred_check_branch
      %26 = sbr.rel (0) target = $region25
    $region24: #{_in_cnn_forward.1} parent=1 // pred_region
      _
    $region25: #{_in_cnn_forward.1} parent=1 // pred_fallthru
      _
    // Predicated region
    $region26: #{_in_cnn_forward.1} parent=1 // pred_check
      _
    $region27: #{_in_cnn_forward.1} parent=1 // pred_check_branch
      %28 = sbr.rel (0) target = $region29
    $region28: #{_in_cnn_forward.1} parent=1 // pred_region
      _
    $region29: #{_in_cnn_forward.1} parent=1 // pred_fallthru
      _
    // Predicated region
    $region30: #{_in_cnn_forward.1} parent=1 // pred_check
      _
    $region31: #{_in_cnn_forward.1} parent=1 // pred_check_branch
      %30 = sbr.rel (0) target = $region33
    $region32: #{_in_cnn_forward.1} parent=1 // pred_region
      _
    $region33: #{_in_cnn_forward.1} parent=1 // pred_fallthru
      _
    // Predicated region
    $region34: #{_in_cnn_forward.1} parent=1 // pred_check
      _
    $region35: #{_in_cnn_forward.1} parent=1 // pred_check_branch
      %32 = sbr.rel (0) target = $region37
    $region36: #{_in_cnn_forward.1} parent=1 // pred_region
      _
    $region37: #{_in_cnn_forward.1} parent=1 // pred_fallthru
      _
    %v33 = vld [vmem:[%s0] sm:$0xff]
    %v34 = vld [vmem:[%s0 + $0x8] sm:$0xff]
    %v35 = vld [vmem:[%s0 + $0x10] sm:$0xff]
    %v36 = vld [vmem:[%s0 + $0x18] sm:$0xff]
    %v37 = vld [vmem:[%s1] sm:$0xff]
    %v38 = vld [vmem:[%s1 + $0x8] sm:$0xff]
    %v39 = vld [vmem:[%s1 + $0x10] sm:$0xff]
    %v40 = vld [vmem:[%s1 + $0x18] sm:$0xff]
    %v41 = vld [vmem:[%s1 + $0x20] sm:$0xff]
    %v42 = vld [vmem:[%s1 + $0x28] sm:$0xff]
    %v43 = vld [vmem:[%s1 + $0x30] sm:$0xff]
    %v44 = vld [vmem:[%s1 + $0x38] sm:$0xff]
    %v45 = vld [vmem:[%s1 + $0x40] sm:$0xff]
    %v46 = vld [vmem:[%s1 + $0x48] sm:$0xff]
    %v47 = vld [vmem:[%s1 + $0x50] sm:$0xff]
    %v48 = vld [vmem:[%s1 + $0x58] sm:$0xff]
    %v49 = vld [vmem:[%s1 + $0x60] sm:$0xff]
    %v50 = vld [vmem:[%s1 + $0x68] sm:$0xff]
    %v51 = vld [vmem:[%s1 + $0x70] sm:$0xff]
    %v52 = vld [vmem:[%s1 + $0x78] sm:$0xff]
    %v53 = vld [vmem:[%s1 + $0x80] sm:$0xff]
    %v54 = vld [vmem:[%s1 + $0x88] sm:$0xff]
    %v55 = vld [vmem:[%s1 + $0x90] sm:$0xff]
    %v56 = vld [vmem:[%s1 + $0x98] sm:$0xff]
    %v57 = vld [vmem:[%s1 + $0xa0] sm:$0xff]
    %v58 = vld [vmem:[%s1 + $0xa8] sm:$0xff]
    %v59 = vld [vmem:[%s1 + $0xb0] sm:$0xff]
    %v60 = vld [vmem:[%s1 + $0xb8] sm:$0xff]
    %v61 = vld [vmem:[%s1 + $0xc0] sm:$0xff]
    %v62 = vld [vmem:[%s1 + $0xc8] sm:$0xff]
    %v63 = vld [vmem:[%s1 + $0xd0] sm:$0xff]
    %v64 = vld [vmem:[%s1 + $0xd8] sm:$0xff]
    %v65 = vld [vmem:[%s1 + $0xe0] sm:$0xff]
    %v66 = vld [vmem:[%s1 + $0xe8] sm:$0xff]
    %v67 = vld [vmem:[%s1 + $0xf0] sm:$0xff]
    %v68 = vld [vmem:[%s1 + $0xf8] sm:$0xff]
    %v69 = vld [vmem:[%s0 + $0x1] sm:$0xff]
    %v70 = vld [vmem:[%s0 + $0x9] sm:$0xff]
    %v71 = vld [vmem:[%s0 + $0x11] sm:$0xff]
    %v72 = vld [vmem:[%s0 + $0x19] sm:$0xff]
    %v73 = vld [vmem:[%s1 + $0x100] sm:$0xff]
    %v74 = vld [vmem:[%s1 + $0x108] sm:$0xff]
    %v75 = vld [vmem:[%s1 + $0x110] sm:$0xff]
    %v76 = vld [vmem:[%s1 + $0x118] sm:$0xff]
    %v77 = vld [vmem:[%s1 + $0x120] sm:$0xff]
    %v78 = vld [vmem:[%s1 + $0x128] sm:$0xff]
    %v79 = vld [vmem:[%s1 + $0x130] sm:$0xff]
    %v80 = vld [vmem:[%s1 + $0x138] sm:$0xff]
    %v81 = vld [vmem:[%s1 + $0x140] sm:$0xff]
    %v82 = vld [vmem:[%s1 + $0x148] sm:$0xff]
    %v83 = vld [vmem:[%s1 + $0x150] sm:$0xff]
    %v84 = vld [vmem:[%s1 + $0x158] sm:$0xff]
    %v85 = vld [vmem:[%s1 + $0x160] sm:$0xff]
    %v86 = vld [vmem:[%s1 + $0x168] sm:$0xff]
    %v87 = vld [vmem:[%s1 + $0x170] sm:$0xff]
    %v88 = vld [vmem:[%s1 + $0x178] sm:$0xff]
    %v89 = vld [vmem:[%s1 + $0x180] sm:$0xff]
    %v90 = vld [vmem:[%s1 + $0x188] sm:$0xff]
    %v91 = vld [vmem:[%s1 + $0x190] sm:$0xff]
    %v92 = vld [vmem:[%s1 + $0x198] sm:$0xff]
    %v93 = vld [vmem:[%s1 + $0x1a0] sm:$0xff]
    %v94 = vld [vmem:[%s1 + $0x1a8] sm:$0xff]
    %v95 = vld [vmem:[%s1 + $0x1b0] sm:$0xff]
    %v96 = vld [vmem:[%s1 + $0x1b8] sm:$0xff]
    %v97 = vld [vmem:[%s1 + $0x1c0] sm:$0xff]
    %v98 = vld [vmem:[%s1 + $0x1c8] sm:$0xff]
    %v99 = vld [vmem:[%s1 + $0x1d0] sm:$0xff]
    %v100 = vld [vmem:[%s1 + $0x1d8] sm:$0xff]
    %v101 = vld [vmem:[%s1 + $0x1e0] sm:$0xff]
    %v102 = vld [vmem:[%s1 + $0x1e8] sm:$0xff]
    %v103 = vld [vmem:[%s1 + $0x1f0] sm:$0xff]
    %v104 = vld [vmem:[%s1 + $0x1f8] sm:$0xff]
    %vm105 = vcmask 523264
    %v107 = vsel %vm105, %v69, 0
    %v110 = vsel %vm105, %v70, 0
    %v113 = vsel %vm105, %v71, 0
    %v116 = vsel %vm105, %v72, 0
    %118 = vmatprep.subr.mxu0 %v74
    %119 = vmatpush1.msra.mxu0 %v73
    %120 = vmatprep.subr.mxu0 %v78
    %121 = vmatpush1.msra.mxu0 %v77
    %122 = vmatprep.subr.mxu0 %v82
    %123 = vmatpush1.msra.mxu0 %v81
    %124 = vmatprep.subr.mxu0 %v86
    %125 = vmatpush1.msra.mxu0 %v85
    %126 = vmatprep.subr.mxu0 %v90
    %127 = vmatpush1.msra.mxu0 %v89
    %128 = vmatprep.subr.mxu0 %v94
    %129 = vmatpush1.msra.mxu0 %v93
    %130 = vmatprep.subr.mxu0 %v98
    %131 = vmatpush1.msra.mxu0 %v97
    %132 = vmatprep.subr.mxu0 %v102
    %133 = vmatpush1.msra.mxu0 %v101
    %134 = vmatprep.subr.mxu0 0.0
    %135 = vmatpush1.msra.mxu0 0.0
    %136 = vmatprep.subr.mxu0 0.0
    %137 = vmatpush1.msra.mxu0 0.0
    %138 = vmatprep.subr.mxu0 0.0
    %139 = vmatpush1.msra.mxu0 0.0
    %140 = vmatprep.subr.mxu0 0.0
    %141 = vmatpush1.msra.mxu0 0.0
    %142 = vmatprep.subr.mxu0 0.0
    %143 = vmatpush1.msra.mxu0 0.0
    %144 = vmatprep.subr.mxu0 0.0
    %145 = vmatpush1.msra.mxu0 0.0
    %146 = vmatprep.subr.mxu0 0.0
    %147 = vmatpush1.msra.mxu0 0.0
    %148 = vmatprep.subr.mxu0 0.0
    %149 = vmatpush1.msra.mxu0 0.0
    %150 = vmatprep.subr.mxu0 0.0
    %151 = vmatpush1.msra.mxu0 0.0
    %152 = vmatprep.subr.mxu0 0.0
    %153 = vmatpush1.msra.mxu0 0.0
    %154 = vmatprep.subr.mxu0 0.0
    %155 = vmatpush1.msra.mxu0 0.0
    %156 = vmatprep.subr.mxu0 0.0
    %157 = vmatpush1.msra.mxu0 0.0
    %158 = vmatprep.subr.mxu0 0.0
    %159 = vmatpush1.msra.mxu0 0.0
    %160 = vmatprep.subr.mxu0 0.0
    %161 = vmatpush1.msra.mxu0 0.0
    %162 = vmatprep.subr.mxu0 0.0
    %163 = vmatpush1.msra.mxu0 0.0
    %164 = vmatprep.subr.mxu0 0.0
    %165 = vmatpush1.msra.mxu0 0.0
    %166 = vmatprep.subr.mxu0 0.0
    %167 = vmatpush1.msra.mxu0 0.0
    %168 = vmatprep.subr.mxu0 0.0
    %169 = vmatpush1.msra.mxu0 0.0
    %170 = vmatprep.subr.mxu0 0.0
    %171 = vmatpush1.msra.mxu0 0.0
    %172 = vmatprep.subr.mxu0 0.0
    %173 = vmatpush1.msra.mxu0 0.0
    %174 = vmatprep.subr.mxu0 0.0
    %175 = vmatpush1.msra.mxu0 0.0
    %176 = vmatprep.subr.mxu0 0.0
    %177 = vmatpush1.msra.mxu0 0.0
    %178 = vmatprep.subr.mxu0 0.0
    %179 = vmatpush1.msra.mxu0 0.0
    %180 = vmatprep.subr.mxu0 0.0
    %181 = vmatpush1.msra.mxu0 0.0
    %182 = vmatprep.mubr.f32.mxu0 0.0
    %183 = vmatmul.mubr.f32.gmra.mrb[0].mxu0 %v107
    %v184 = vpop.f32.mrb[0].mxu0
    %v185 = vadd.f32 0.0, %v184
    %v186 = vpop.f32.mrb[0].mxu0
    %v187 = vadd.f32 0.0, %v186
    %188 = vmatprep.mubr.f32.mxu0 0.0
    %189 = vmatmul.mubr.f32.gmra.mrb[0].mxu0 %v110
    %v190 = vpop.f32.mrb[0].mxu0
    %v191 = vadd.f32 0.0, %v190
    %v192 = vpop.f32.mrb[0].mxu0
    %v193 = vadd.f32 0.0, %v192
    %194 = vmatprep.mubr.f32.mxu0 0.0
    %195 = vmatmul.mubr.f32.gmra.mrb[0].mxu0 %v113
    %v196 = vpop.f32.mrb[0].mxu0
    %v197 = vadd.f32 0.0, %v196
    %v198 = vpop.f32.mrb[0].mxu0
    %v199 = vadd.f32 0.0, %v198
    %200 = vmatprep.mubr.f32.mxu0 0.0
    %201 = vmatmul.mubr.f32.gmra.mrb[0].mxu0 %v116
    %v202 = vpop.f32.mrb[0].mxu0
    %v203 = vadd.f32 0.0, %v202
    %v204 = vpop.f32.mrb[0].mxu0
    %v205 = vadd.f32 0.0, %v204
    %206 = vdwg.mxu0
    %207 = vmatprep.subr.mxu0 %v76
    %208 = vmatpush1.msra.mxu0 %v75
    %209 = vmatprep.subr.mxu0 %v80
    %210 = vmatpush1.msra.mxu0 %v79
    %211 = vmatprep.subr.mxu0 %v84
    %212 = vmatpush1.msra.mxu0 %v83
    %213 = vmatprep.subr.mxu0 %v88
    %214 = vmatpush1.msra.mxu0 %v87
    %215 = vmatprep.subr.mxu0 %v92
    %216 = vmatpush1.msra.mxu0 %v91
    %217 = vmatprep.subr.mxu0 %v96
    %218 = vmatpush1.msra.mxu0 %v95
    %219 = vmatprep.subr.mxu0 %v100
    %220 = vmatpush1.msra.mxu0 %v99
    %221 = vmatprep.subr.mxu0 %v104
    %222 = vmatpush1.msra.mxu0 %v103
    %223 = vmatprep.subr.mxu0 0.0
    %224 = vmatpush1.msra.mxu0 0.0
    %225 = vmatprep.subr.mxu0 0.0
    %226 = vmatpush1.msra.mxu0 0.0
    %227 = vmatprep.subr.mxu0 0.0
    %228 = vmatpush1.msra.mxu0 0.0
    %229 = vmatprep.subr.mxu0 0.0
    %230 = vmatpush1.msra.mxu0 0.0
    %231 = vmatprep.subr.mxu0 0.0
    %232 = vmatpush1.msra.mxu0 0.0
    %233 = vmatprep.subr.mxu0 0.0
    %234 = vmatpush1.msra.mxu0 0.0
    %235 = vmatprep.subr.mxu0 0.0
    %236 = vmatpush1.msra.mxu0 0.0
    %237 = vmatprep.subr.mxu0 0.0
    %238 = vmatpush1.msra.mxu0 0.0
    %239 = vmatprep.subr.mxu0 0.0
    %240 = vmatpush1.msra.mxu0 0.0
    %241 = vmatprep.subr.mxu0 0.0
    %242 = vmatpush1.msra.mxu0 0.0
    %243 = vmatprep.subr.mxu0 0.0
    %244 = vmatpush1.msra.mxu0 0.0
    %245 = vmatprep.subr.mxu0 0.0
    %246 = vmatpush1.msra.mxu0 0.0
    %247 = vmatprep.subr.mxu0 0.0
    %248 = vmatpush1.msra.mxu0 0.0
    %249 = vmatprep.subr.mxu0 0.0
    %250 = vmatpush1.msra.mxu0 0.0
    %251 = vmatprep.subr.mxu0 0.0
    %252 = vmatpush1.msra.mxu0 0.0
    %253 = vmatprep.subr.mxu0 0.0
    %254 = vmatpush1.msra.mxu0 0.0
    %255 = vmatprep.subr.mxu0 0.0
    %256 = vmatpush1.msra.mxu0 0.0
    %257 = vmatprep.subr.mxu0 0.0
    %258 = vmatpush1.msra.mxu0 0.0
    %259 = vmatprep.subr.mxu0 0.0
    %260 = vmatpush1.msra.mxu0 0.0
    %261 = vmatprep.subr.mxu0 0.0
    %262 = vmatpush1.msra.mxu0 0.0
    %263 = vmatprep.subr.mxu0 0.0
    %264 = vmatpush1.msra.mxu0 0.0
    %265 = vmatprep.subr.mxu0 0.0
    %266 = vmatpush1.msra.mxu0 0.0
    %267 = vmatprep.subr.mxu0 0.0
    %268 = vmatpush1.msra.mxu0 0.0
    %269 = vmatprep.subr.mxu0 0.0
    %270 = vmatpush1.msra.mxu0 0.0
    %271 = vmatprep.mubr.f32.mxu0 0.0
    %272 = vmatmul.mubr.f32.gmra.mrb[0].mxu0 %v107
    %v273 = vpop.f32.mrb[0].mxu0
    %v274 = vadd.f32 0.0, %v273
    %v275 = vpop.f32.mrb[0].mxu0
    %v276 = vadd.f32 0.0, %v275
    %277 = vmatprep.mubr.f32.mxu0 0.0
    %278 = vmatmul.mubr.f32.gmra.mrb[0].mxu0 %v110
    %v279 = vpop.f32.mrb[0].mxu0
    %v280 = vadd.f32 0.0, %v279
    %v281 = vpop.f32.mrb[0].mxu0
    %v282 = vadd.f32 0.0, %v281
    %283 = vmatprep.mubr.f32.mxu0 0.0
    %284 = vmatmul.mubr.f32.gmra.mrb[0].mxu0 %v113
    %v285 = vpop.f32.mrb[0].mxu0
    %v286 = vadd.f32 0.0, %v285
    %v287 = vpop.f32.mrb[0].mxu0
    %v288 = vadd.f32 0.0, %v287
    %289 = vmatprep.mubr.f32.mxu0 0.0
    %290 = vmatmul.mubr.f32.gmra.mrb[0].mxu0 %v116
    %v291 = vpop.f32.mrb[0].mxu0
    %v292 = vadd.f32 0.0, %v291
    %v293 = vpop.f32.mrb[0].mxu0
    %v294 = vadd.f32 0.0, %v293
    %295 = vdwg.mxu0
    %v297 = vsel %vm105, %v33, 0
    %v300 = vsel %vm105, %v34, 0
    %v303 = vsel %vm105, %v35, 0
    %v306 = vsel %vm105, %v36, 0
    %308 = vmatprep.subr.mxu0 %v38
    %309 = vmatpush1.msra.mxu0 %v37
    %310 = vmatprep.subr.mxu0 %v42
    %311 = vmatpush1.msra.mxu0 %v41
    %312 = vmatprep.subr.mxu0 %v46
    %313 = vmatpush1.msra.mxu0 %v45
    %314 = vmatprep.subr.mxu0 %v50
    %315 = vmatpush1.msra.mxu0 %v49
    %316 = vmatprep.subr.mxu0 %v54
    %317 = vmatpush1.msra.mxu0 %v53
    %318 = vmatprep.subr.mxu0 %v58
    %319 = vmatpush1.msra.mxu0 %v57
    %320 = vmatprep.subr.mxu0 %v62
    %321 = vmatpush1.msra.mxu0 %v61
    %322 = vmatprep.subr.mxu0 %v66
    %323 = vmatpush1.msra.mxu0 %v65
    %324 = vmatprep.subr.mxu0 0.0
    %325 = vmatpush1.msra.mxu0 0.0
    %326 = vmatprep.subr.mxu0 0.0
    %327 = vmatpush1.msra.mxu0 0.0
    %328 = vmatprep.subr.mxu0 0.0
    %329 = vmatpush1.msra.mxu0 0.0
    %330 = vmatprep.subr.mxu0 0.0
    %331 = vmatpush1.msra.mxu0 0.0
    %332 = vmatprep.subr.mxu0 0.0
    %333 = vmatpush1.msra.mxu0 0.0
    %334 = vmatprep.subr.mxu0 0.0
    %335 = vmatpush1.msra.mxu0 0.0
    %336 = vmatprep.subr.mxu0 0.0
    %337 = vmatpush1.msra.mxu0 0.0
    %338 = vmatprep.subr.mxu0 0.0
    %339 = vmatpush1.msra.mxu0 0.0
    %340 = vmatprep.subr.mxu0 0.0
    %341 = vmatpush1.msra.mxu0 0.0
    %342 = vmatprep.subr.mxu0 0.0
    %343 = vmatpush1.msra.mxu0 0.0
    %344 = vmatprep.subr.mxu0 0.0
    %345 = vmatpush1.msra.mxu0 0.0
    %346 = vmatprep.subr.mxu0 0.0
    %347 = vmatpush1.msra.mxu0 0.0
    %348 = vmatprep.subr.mxu0 0.0
    %349 = vmatpush1.msra.mxu0 0.0
    %350 = vmatprep.subr.mxu0 0.0
    %351 = vmatpush1.msra.mxu0 0.0
    %352 = vmatprep.subr.mxu0 0.0
    %353 = vmatpush1.msra.mxu0 0.0
    %354 = vmatprep.subr.mxu0 0.0
    %355 = vmatpush1.msra.mxu0 0.0
    %356 = vmatprep.subr.mxu0 0.0
    %357 = vmatpush1.msra.mxu0 0.0
    %358 = vmatprep.subr.mxu0 0.0
    %359 = vmatpush1.msra.mxu0 0.0
    %360 = vmatprep.subr.mxu0 0.0
    %361 = vmatpush1.msra.mxu0 0.0
    %362 = vmatprep.subr.mxu0 0.0
    %363 = vmatpush1.msra.mxu0 0.0
    %364 = vmatprep.subr.mxu0 0.0
    %365 = vmatpush1.msra.mxu0 0.0
    %366 = vmatprep.subr.mxu0 0.0
    %367 = vmatpush1.msra.mxu0 0.0
    %368 = vmatprep.subr.mxu0 0.0
    %369 = vmatpush1.msra.mxu0 0.0
    %370 = vmatprep.subr.mxu0 0.0
    %371 = vmatpush1.msra.mxu0 0.0
    %372 = vmatprep.mubr.f32.mxu0 0.0
    %373 = vmatmul.mubr.f32.gmra.mrb[0].mxu0 %v297
    %v374 = vpop.f32.mrb[0].mxu0
    %v375 = vadd.f32 %v185, %v374
    %v376 = vpop.f32.mrb[0].mxu0
    %v377 = vadd.f32 %v187, %v376
    %378 = vmatprep.mubr.f32.mxu0 0.0
    %379 = vmatmul.mubr.f32.gmra.mrb[0].mxu0 %v300
    %v380 = vpop.f32.mrb[0].mxu0
    %v381 = vadd.f32 %v191, %v380
    %v382 = vpop.f32.mrb[0].mxu0
    %v383 = vadd.f32 %v193, %v382
    %384 = vmatprep.mubr.f32.mxu0 0.0
    %385 = vmatmul.mubr.f32.gmra.mrb[0].mxu0 %v303
    %v386 = vpop.f32.mrb[0].mxu0
    %v387 = vadd.f32 %v197, %v386
    %v388 = vpop.f32.mrb[0].mxu0
    %v389 = vadd.f32 %v199, %v388
    %390 = vmatprep.mubr.f32.mxu0 0.0
    %391 = vmatmul.mubr.f32.gmra.mrb[0].mxu0 %v306
    %v392 = vpop.f32.mrb[0].mxu0
    %v393 = vadd.f32 %v203, %v392
    %v394 = vpop.f32.mrb[0].mxu0
    %v395 = vadd.f32 %v205, %v394
    %396 = vdwg.mxu0
    %397 = vmatprep.subr.mxu0 %v40
    %398 = vmatpush1.msra.mxu0 %v39
    %399 = vmatprep.subr.mxu0 %v44
    %400 = vmatpush1.msra.mxu0 %v43
    %401 = vmatprep.subr.mxu0 %v48
    %402 = vmatpush1.msra.mxu0 %v47
    %403 = vmatprep.subr.mxu0 %v52
    %404 = vmatpush1.msra.mxu0 %v51
    %405 = vmatprep.subr.mxu0 %v56
    %406 = vmatpush1.msra.mxu0 %v55
    %407 = vmatprep.subr.mxu0 %v60
    %408 = vmatpush1.msra.mxu0 %v59
    %409 = vmatprep.subr.mxu0 %v64
    %410 = vmatpush1.msra.mxu0 %v63
    %411 = vmatprep.subr.mxu0 %v68
    %412 = vmatpush1.msra.mxu0 %v67
    %413 = vmatprep.subr.mxu0 0.0
    %414 = vmatpush1.msra.mxu0 0.0
    %415 = vmatprep.subr.mxu0 0.0
    %416 = vmatpush1.msra.mxu0 0.0
    %417 = vmatprep.subr.mxu0 0.0
    %418 = vmatpush1.msra.mxu0 0.0
    %419 = vmatprep.subr.mxu0 0.0
    %420 = vmatpush1.msra.mxu0 0.0
    %421 = vmatprep.subr.mxu0 0.0
    %422 = vmatpush1.msra.mxu0 0.0
    %423 = vmatprep.subr.mxu0 0.0
    %424 = vmatpush1.msra.mxu0 0.0
    %425 = vmatprep.subr.mxu0 0.0
    %426 = vmatpush1.msra.mxu0 0.0
    %427 = vmatprep.subr.mxu0 0.0
    %428 = vmatpush1.msra.mxu0 0.0
    %429 = vmatprep.subr.mxu0 0.0
    %430 = vmatpush1.msra.mxu0 0.0
    %431 = vmatprep.subr.mxu0 0.0
    %432 = vmatpush1.msra.mxu0 0.0
    %433 = vmatprep.subr.mxu0 0.0
    %434 = vmatpush1.msra.mxu0 0.0
    %435 = vmatprep.subr.mxu0 0.0
    %436 = vmatpush1.msra.mxu0 0.0
    %437 = vmatprep.subr.mxu0 0.0
    %438 = vmatpush1.msra.mxu0 0.0
    %439 = vmatprep.subr.mxu0 0.0
    %440 = vmatpush1.msra.mxu0 0.0
    %441 = vmatprep.subr.mxu0 0.0
    %442 = vmatpush1.msra.mxu0 0.0
    %443 = vmatprep.subr.mxu0 0.0
    %444 = vmatpush1.msra.mxu0 0.0
    %445 = vmatprep.subr.mxu0 0.0
    %446 = vmatpush1.msra.mxu0 0.0
    %447 = vmatprep.subr.mxu0 0.0
    %448 = vmatpush1.msra.mxu0 0.0
    %449 = vmatprep.subr.mxu0 0.0
    %450 = vmatpush1.msra.mxu0 0.0
    %451 = vmatprep.subr.mxu0 0.0
    %452 = vmatpush1.msra.mxu0 0.0
    %453 = vmatprep.subr.mxu0 0.0
    %454 = vmatpush1.msra.mxu0 0.0
    %455 = vmatprep.subr.mxu0 0.0
    %456 = vmatpush1.msra.mxu0 0.0
    %457 = vmatprep.subr.mxu0 0.0
    %458 = vmatpush1.msra.mxu0 0.0
    %459 = vmatprep.subr.mxu0 0.0
    %460 = vmatpush1.msra.mxu0 0.0
    %461 = vmatprep.mubr.f32.mxu0 0.0
    %462 = vmatmul.mubr.f32.gmra.mrb[0].mxu0 %v297
    %v463 = vpop.f32.mrb[0].mxu0
    %v464 = vadd.f32 %v274, %v463
    %v465 = vpop.f32.mrb[0].mxu0
    %v466 = vadd.f32 %v276, %v465
    %467 = vmatprep.mubr.f32.mxu0 0.0
    %468 = vmatmul.mubr.f32.gmra.mrb[0].mxu0 %v300
    %v469 = vpop.f32.mrb[0].mxu0
    %v470 = vadd.f32 %v280, %v469
    %v471 = vpop.f32.mrb[0].mxu0
    %v472 = vadd.f32 %v282, %v471
    %473 = vmatprep.mubr.f32.mxu0 0.0
    %474 = vmatmul.mubr.f32.gmra.mrb[0].mxu0 %v303
    %v475 = vpop.f32.mrb[0].mxu0
    %v476 = vadd.f32 %v286, %v475
    %v477 = vpop.f32.mrb[0].mxu0
    %v478 = vadd.f32 %v288, %v477
    %479 = vmatprep.mubr.f32.mxu0 0.0
    %480 = vmatmul.mubr.f32.gmra.mrb[0].mxu0 %v306
    %v481 = vpop.f32.mrb[0].mxu0
    %v482 = vadd.f32 %v292, %v481
    %v483 = vpop.f32.mrb[0].mxu0
    %v484 = vadd.f32 %v294, %v483
    %485 = vdwg.mxu0
    %v486 = vld [vmem:[%s0 + $0x2] sm:$0xff]
    %v487 = vld [vmem:[%s0 + $0xa] sm:$0xff]
    %v488 = vld [vmem:[%s0 + $0x12] sm:$0xff]
    %v489 = vld [vmem:[%s0 + $0x1a] sm:$0xff]
    %v490 = vld [vmem:[%s1 + $0x200] sm:$0xff]
    %v491 = vld [vmem:[%s1 + $0x208] sm:$0xff]
    %v492 = vld [vmem:[%s1 + $0x210] sm:$0xff]
    %v493 = vld [vmem:[%s1 + $0x218] sm:$0xff]
    %v494 = vld [vmem:[%s1 + $0x220] sm:$0xff]
    %v495 = vld [vmem:[%s1 + $0x228] sm:$0xff]
    %v496 = vld [vmem:[%s1 + $0x230] sm:$0xff]
    %v497 = vld [vmem:[%s1 + $0x238] sm:$0xff]
    %v498 = vld [vmem:[%s1 + $0x240] sm:$0xff]
    %v499 = vld [vmem:[%s1 + $0x248] sm:$0xff]
    %v500 = vld [vmem:[%s1 + $0x250] sm:$0xff]
    %v501 = vld [vmem:[%s1 + $0x258] sm:$0xff]
    %v502 = vld [vmem:[%s1 + $0x260] sm:$0xff]
    %v503 = vld [vmem:[%s1 + $0x268] sm:$0xff]
    %v504 = vld [vmem:[%s1 + $0x270] sm:$0xff]
    %v505 = vld [vmem:[%s1 + $0x278] sm:$0xff]
    %v506 = vld [vmem:[%s1 + $0x280] sm:$0xff]
    %v507 = vld [vmem:[%s1 + $0x288] sm:$0xff]
    %v508 = vld [vmem:[%s1 + $0x290] sm:$0xff]
    %v509 = vld [vmem:[%s1 + $0x298] sm:$0xff]
    %v510 = vld [vmem:[%s1 + $0x2a0] sm:$0xff]
    %v511 = vld [vmem:[%s1 + $0x2a8] sm:$0xff]
    %v512 = vld [vmem:[%s1 + $0x2b0] sm:$0xff]
    %v513 = vld [vmem:[%s1 + $0x2b8] sm:$0xff]
    %v514 = vld [vmem:[%s1 + $0x2c0] sm:$0xff]
    %v515 = vld [vmem:[%s1 + $0x2c8] sm:$0xff]
    %v516 = vld [vmem:[%s1 + $0x2d0] sm:$0xff]
    %v517 = vld [vmem:[%s1 + $0x2d8] sm:$0xff]
    %v518 = vld [vmem:[%s1 + $0x2e0] sm:$0xff]
    %v519 = vld [vmem:[%s1 + $0x2e8] sm:$0xff]
    %v520 = vld [vmem:[%s1 + $0x2f0] sm:$0xff]
    %v521 = vld [vmem:[%s1 + $0x2f8] sm:$0xff]
    %v523 = vsel %vm105, %v486, 0
    %v526 = vsel %vm105, %v487, 0
    %v529 = vsel %vm105, %v488, 0
    %v532 = vsel %vm105, %v489, 0
    %534 = vmatprep.subr.mxu0 %v491
    %535 = vmatpush1.msra.mxu0 %v490
    %536 = vmatprep.subr.mxu0 %v495
    %537 = vmatpush1.msra.mxu0 %v494
    %538 = vmatprep.subr.mxu0 %v499
    %539 = vmatpush1.msra.mxu0 %v498
    %540 = vmatprep.subr.mxu0 %v503
    %541 = vmatpush1.msra.mxu0 %v502
    %542 = vmatprep.subr.mxu0 %v507
    %543 = vmatpush1.msra.mxu0 %v506
    %544 = vmatprep.subr.mxu0 %v511
    %545 = vmatpush1.msra.mxu0 %v510
    %546 = vmatprep.subr.mxu0 %v515
    %547 = vmatpush1.msra.mxu0 %v514
    %548 = vmatprep.subr.mxu0 %v519
    %549 = vmatpush1.msra.mxu0 %v518
    %550 = vmatprep.subr.mxu0 0.0
    %551 = vmatpush1.msra.mxu0 0.0
    %552 = vmatprep.subr.mxu0 0.0
    %553 = vmatpush1.msra.mxu0 0.0
    %554 = vmatprep.subr.mxu0 0.0
    %555 = vmatpush1.msra.mxu0 0.0
    %556 = vmatprep.subr.mxu0 0.0
    %557 = vmatpush1.msra.mxu0 0.0
    %558 = vmatprep.subr.mxu0 0.0
    %559 = vmatpush1.msra.mxu0 0.0
    %560 = vmatprep.subr.mxu0 0.0
    %561 = vmatpush1.msra.mxu0 0.0
    %562 = vmatprep.subr.mxu0 0.0
    %563 = vmatpush1.msra.mxu0 0.0
    %564 = vmatprep.subr.mxu0 0.0
    %565 = vmatpush1.msra.mxu0 0.0
    %566 = vmatprep.subr.mxu0 0.0
    %567 = vmatpush1.msra.mxu0 0.0
    %568 = vmatprep.subr.mxu0 0.0
    %569 = vmatpush1.msra.mxu0 0.0
    %570 = vmatprep.subr.mxu0 0.0
    %571 = vmatpush1.msra.mxu0 0.0
    %572 = vmatprep.subr.mxu0 0.0
    %573 = vmatpush1.msra.mxu0 0.0
    %574 = vmatprep.subr.mxu0 0.0
    %575 = vmatpush1.msra.mxu0 0.0
    %576 = vmatprep.subr.mxu0 0.0
    %577 = vmatpush1.msra.mxu0 0.0
    %578 = vmatprep.subr.mxu0 0.0
    %579 = vmatpush1.msra.mxu0 0.0
    %580 = vmatprep.subr.mxu0 0.0
    %581 = vmatpush1.msra.mxu0 0.0
    %582 = vmatprep.subr.mxu0 0.0
    %583 = vmatpush1.msra.mxu0 0.0
    %584 = vmatprep.subr.mxu0 0.0
    %585 = vmatpush1.msra.mxu0 0.0
    %586 = vmatprep.subr.mxu0 0.0
    %587 = vmatpush1.msra.mxu0 0.0
    %588 = vmatprep.subr.mxu0 0.0
    %589 = vmatpush1.msra.mxu0 0.0
    %590 = vmatprep.subr.mxu0 0.0
    %591 = vmatpush1.msra.mxu0 0.0
    %592 = vmatprep.subr.mxu0 0.0
    %593 = vmatpush1.msra.mxu0 0.0
    %594 = vmatprep.subr.mxu0 0.0
    %595 = vmatpush1.msra.mxu0 0.0
    %596 = vmatprep.subr.mxu0 0.0
    %597 = vmatpush1.msra.mxu0 0.0
    %598 = vmatprep.mubr.f32.mxu0 0.0
    %599 = vmatmul.mubr.f32.gmra.mrb[0].mxu0 %v523
    %v600 = vpop.f32.mrb[0].mxu0
    %v601 = vadd.f32 0.0, %v600
    %v602 = vpop.f32.mrb[0].mxu0
    %v603 = vadd.f32 0.0, %v602
    %604 = vmatprep.mubr.f32.mxu0 0.0
    %605 = vmatmul.mubr.f32.gmra.mrb[0].mxu0 %v526
    %v606 = vpop.f32.mrb[0].mxu0
    %v607 = vadd.f32 0.0, %v606
    %v608 = vpop.f32.mrb[0].mxu0
    %v609 = vadd.f32 0.0, %v608
    %610 = vmatprep.mubr.f32.mxu0 0.0
    %611 = vmatmul.mubr.f32.gmra.mrb[0].mxu0 %v529
    %v612 = vpop.f32.mrb[0].mxu0
    %v613 = vadd.f32 0.0, %v612
    %v614 = vpop.f32.mrb[0].mxu0
    %v615 = vadd.f32 0.0, %v614
    %616 = vmatprep.mubr.f32.mxu0 0.0
    %617 = vmatmul.mubr.f32.gmra.mrb[0].mxu0 %v532
    %v618 = vpop.f32.mrb[0].mxu0
    %v619 = vadd.f32 0.0, %v618
    %v620 = vpop.f32.mrb[0].mxu0
    %v621 = vadd.f32 0.0, %v620
    %622 = vdwg.mxu0
    %623 = vmatprep.subr.mxu0 %v493
    %624 = vmatpush1.msra.mxu0 %v492
    %625 = vmatprep.subr.mxu0 %v497
    %626 = vmatpush1.msra.mxu0 %v496
    %627 = vmatprep.subr.mxu0 %v501
    %628 = vmatpush1.msra.mxu0 %v500
    %629 = vmatprep.subr.mxu0 %v505
    %630 = vmatpush1.msra.mxu0 %v504
    %631 = vmatprep.subr.mxu0 %v509
    %632 = vmatpush1.msra.mxu0 %v508
    %633 = vmatprep.subr.mxu0 %v513
    %634 = vmatpush1.msra.mxu0 %v512
    %635 = vmatprep.subr.mxu0 %v517
    %636 = vmatpush1.msra.mxu0 %v516
    %637 = vmatprep.subr.mxu0 %v521
    %638 = vmatpush1.msra.mxu0 %v520
    %639 = vmatprep.subr.mxu0 0.0
    %640 = vmatpush1.msra.mxu0 0.0
    %641 = vmatprep.subr.mxu0 0.0
    %642 = vmatpush1.msra.mxu0 0.0
    %643 = vmatprep.subr.mxu0 0.0
    %644 = vmatpush1.msra.mxu0 0.0
    %645 = vmatprep.subr.mxu0 0.0
    %646 = vmatpush1.msra.mxu0 0.0
    %647 = vmatprep.subr.mxu0 0.0
    %648 = vmatpush1.msra.mxu0 0.0
    %649 = vmatprep.subr.mxu0 0.0
    %650 = vmatpush1.msra.mxu0 0.0
    %651 = vmatprep.subr.mxu0 0.0
    %652 = vmatpush1.msra.mxu0 0.0
    %653 = vmatprep.subr.mxu0 0.0
    %654 = vmatpush1.msra.mxu0 0.0
    %655 = vmatprep.subr.mxu0 0.0
    %656 = vmatpush1.msra.mxu0 0.0
    %657 = vmatprep.subr.mxu0 0.0
    %658 = vmatpush1.msra.mxu0 0.0
    %659 = vmatprep.subr.mxu0 0.0
    %660 = vmatpush1.msra.mxu0 0.0
    %661 = vmatprep.subr.mxu0 0.0
    %662 = vmatpush1.msra.mxu0 0.0
    %663 = vmatprep.subr.mxu0 0.0
    %664 = vmatpush1.msra.mxu0 0.0
    %665 = vmatprep.subr.mxu0 0.0
    %666 = vmatpush1.msra.mxu0 0.0
    %667 = vmatprep.subr.mxu0 0.0
    %668 = vmatpush1.msra.mxu0 0.0
    %669 = vmatprep.subr.mxu0 0.0
    %670 = vmatpush1.msra.mxu0 0.0
    %671 = vmatprep.subr.mxu0 0.0
    %672 = vmatpush1.msra.mxu0 0.0
    %673 = vmatprep.subr.mxu0 0.0
    %674 = vmatpush1.msra.mxu0 0.0
    %675 = vmatprep.subr.mxu0 0.0
    %676 = vmatpush1.msra.mxu0 0.0
    %677 = vmatprep.subr.mxu0 0.0
    %678 = vmatpush1.msra.mxu0 0.0
    %679 = vmatprep.subr.mxu0 0.0
    %680 = vmatpush1.msra.mxu0 0.0
    %681 = vmatprep.subr.mxu0 0.0
    %682 = vmatpush1.msra.mxu0 0.0
    %683 = vmatprep.subr.mxu0 0.0
    %684 = vmatpush1.msra.mxu0 0.0
    %685 = vmatprep.subr.mxu0 0.0
    %686 = vmatpush1.msra.mxu0 0.0
    %687 = vmatprep.mubr.f32.mxu0 0.0
    %688 = vmatmul.mubr.f32.gmra.mrb[0].mxu0 %v523
    %v689 = vpop.f32.mrb[0].mxu0
    %v690 = vadd.f32 0.0, %v689
    %v691 = vpop.f32.mrb[0].mxu0
    %v692 = vadd.f32 0.0, %v691
    %693 = vmatprep.mubr.f32.mxu0 0.0
    %694 = vmatmul.mubr.f32.gmra.mrb[0].mxu0 %v526
    %v695 = vpop.f32.mrb[0].mxu0
    %v696 = vadd.f32 0.0, %v695
    %v697 = vpop.f32.mrb[0].mxu0
    %v698 = vadd.f32 0.0, %v697
    %699 = vmatprep.mubr.f32.mxu0 0.0
    %700 = vmatmul.mubr.f32.gmra.mrb[0].mxu0 %v529
    %v701 = vpop.f32.mrb[0].mxu0
    %v702 = vadd.f32 0.0, %v701
    %v703 = vpop.f32.mrb[0].mxu0
    %v704 = vadd.f32 0.0, %v703
    %705 = vmatprep.mubr.f32.mxu0 0.0
    %706 = vmatmul.mubr.f32.gmra.mrb[0].mxu0 %v532
    %v707 = vpop.f32.mrb[0].mxu0
    %v708 = vadd.f32 0.0, %v707
    %v709 = vpop.f32.mrb[0].mxu0
    %v710 = vadd.f32 0.0, %v709
    %711 = vdwg.mxu0
    %v712 = vadd.f32 %v375, %v601
    %v713 = vadd.f32 %v377, %v603
    %v714 = vadd.f32 %v464, %v690
    %v715 = vadd.f32 %v466, %v692
    %v716 = vadd.f32 %v381, %v607
    %v717 = vadd.f32 %v383, %v609
    %v718 = vadd.f32 %v470, %v696
    %v719 = vadd.f32 %v472, %v698
    %v720 = vadd.f32 %v387, %v613
    %v721 = vadd.f32 %v389, %v615
    %v722 = vadd.f32 %v476, %v702
    %v723 = vadd.f32 %v478, %v704
    %v724 = vadd.f32 %v393, %v619
    %v725 = vadd.f32 %v395, %v621
    %v726 = vadd.f32 %v482, %v708
    %v727 = vadd.f32 %v484, %v710
    %v728 = vld [vmem:[%s0 + $0x3] sm:$0xff]
    %v729 = vld [vmem:[%s0 + $0xb] sm:$0xff]
    %v730 = vld [vmem:[%s0 + $0x13] sm:$0xff]
    %v731 = vld [vmem:[%s0 + $0x1b] sm:$0xff]
    %v732 = vld [vmem:[%s1 + $0x300] sm:$0xff]
    %v733 = vld [vmem:[%s1 + $0x308] sm:$0xff]
    %v734 = vld [vmem:[%s1 + $0x310] sm:$0xff]
    %v735 = vld [vmem:[%s1 + $0x318] sm:$0xff]
    %v736 = vld [vmem:[%s1 + $0x320] sm:$0xff]
    %v737 = vld [vmem:[%s1 + $0x328] sm:$0xff]
    %v738 = vld [vmem:[%s1 + $0x330] sm:$0xff]
    %v739 = vld [vmem:[%s1 + $0x338] sm:$0xff]
    %v740 = vld [vmem:[%s1 + $0x340] sm:$0xff]
    %v741 = vld [vmem:[%s1 + $0x348] sm:$0xff]
    %v742 = vld [vmem:[%s1 + $0x350] sm:$0xff]
    %v743 = vld [vmem:[%s1 + $0x358] sm:$0xff]
    %v744 = vld [vmem:[%s1 + $0x360] sm:$0xff]
    %v745 = vld [vmem:[%s1 + $0x368] sm:$0xff]
    %v746 = vld [vmem:[%s1 + $0x370] sm:$0xff]
    %v747 = vld [vmem:[%s1 + $0x378] sm:$0xff]
    %v748 = vld [vmem:[%s1 + $0x380] sm:$0xff]
    %v749 = vld [vmem:[%s1 + $0x388] sm:$0xff]
    %v750 = vld [vmem:[%s1 + $0x390] sm:$0xff]
    %v751 = vld [vmem:[%s1 + $0x398] sm:$0xff]
    %v752 = vld [vmem:[%s1 + $0x3a0] sm:$0xff]
    %v753 = vld [vmem:[%s1 + $0x3a8] sm:$0xff]
    %v754 = vld [vmem:[%s1 + $0x3b0] sm:$0xff]
    %v755 = vld [vmem:[%s1 + $0x3b8] sm:$0xff]
    %v756 = vld [vmem:[%s1 + $0x3c0] sm:$0xff]
    %v757 = vld [vmem:[%s1 + $0x3c8] sm:$0xff]
    %v758 = vld [vmem:[%s1 + $0x3d0] sm:$0xff]
    %v759 = vld [vmem:[%s1 + $0x3d8] sm:$0xff]
    %v760 = vld [vmem:[%s1 + $0x3e0] sm:$0xff]
    %v761 = vld [vmem:[%s1 + $0x3e8] sm:$0xff]
    %v762 = vld [vmem:[%s1 + $0x3f0] sm:$0xff]
    %v763 = vld [vmem:[%s1 + $0x3f8] sm:$0xff]
    %v765 = vsel %vm105, %v728, 0
    %v768 = vsel %vm105, %v729, 0
    %v771 = vsel %vm105, %v730, 0
    %v774 = vsel %vm105, %v731, 0
    %776 = vmatprep.subr.mxu0 %v733
    %777 = vmatpush1.msra.mxu0 %v732
    %778 = vmatprep.subr.mxu0 %v737
    %779 = vmatpush1.msra.mxu0 %v736
    %780 = vmatprep.subr.mxu0 %v741
    %781 = vmatpush1.msra.mxu0 %v740
    %782 = vmatprep.subr.mxu0 %v745
    %783 = vmatpush1.msra.mxu0 %v744
    %784 = vmatprep.subr.mxu0 %v749
    %785 = vmatpush1.msra.mxu0 %v748
    %786 = vmatprep.subr.mxu0 %v753
    %787 = vmatpush1.msra.mxu0 %v752
    %788 = vmatprep.subr.mxu0 %v757
    %789 = vmatpush1.msra.mxu0 %v756
    %790 = vmatprep.subr.mxu0 %v761
    %791 = vmatpush1.msra.mxu0 %v760
    %792 = vmatprep.subr.mxu0 0.0
    %793 = vmatpush1.msra.mxu0 0.0
    %794 = vmatprep.subr.mxu0 0.0
    %795 = vmatpush1.msra.mxu0 0.0
    %796 = vmatprep.subr.mxu0 0.0
    %797 = vmatpush1.msra.mxu0 0.0
    %798 = vmatprep.subr.mxu0 0.0
    %799 = vmatpush1.msra.mxu0 0.0
    %800 = vmatprep.subr.mxu0 0.0
    %801 = vmatpush1.msra.mxu0 0.0
    %802 = vmatprep.subr.mxu0 0.0
    %803 = vmatpush1.msra.mxu0 0.0
    %804 = vmatprep.subr.mxu0 0.0
    %805 = vmatpush1.msra.mxu0 0.0
    %806 = vmatprep.subr.mxu0 0.0
    %807 = vmatpush1.msra.mxu0 0.0
    %808 = vmatprep.subr.mxu0 0.0
    %809 = vmatpush1.msra.mxu0 0.0
    %810 = vmatprep.subr.mxu0 0.0
    %811 = vmatpush1.msra.mxu0 0.0
    %812 = vmatprep.subr.mxu0 0.0
    %813 = vmatpush1.msra.mxu0 0.0
    %814 = vmatprep.subr.mxu0 0.0
    %815 = vmatpush1.msra.mxu0 0.0
    %816 = vmatprep.subr.mxu0 0.0
    %817 = vmatpush1.msra.mxu0 0.0
    %818 = vmatprep.subr.mxu0 0.0
    %819 = vmatpush1.msra.mxu0 0.0
    %820 = vmatprep.subr.mxu0 0.0
    %821 = vmatpush1.msra.mxu0 0.0
    %822 = vmatprep.subr.mxu0 0.0
    %823 = vmatpush1.msra.mxu0 0.0
    %824 = vmatprep.subr.mxu0 0.0
    %825 = vmatpush1.msra.mxu0 0.0
    %826 = vmatprep.subr.mxu0 0.0
    %827 = vmatpush1.msra.mxu0 0.0
    %828 = vmatprep.subr.mxu0 0.0
    %829 = vmatpush1.msra.mxu0 0.0
    %830 = vmatprep.subr.mxu0 0.0
    %831 = vmatpush1.msra.mxu0 0.0
    %832 = vmatprep.subr.mxu0 0.0
    %833 = vmatpush1.msra.mxu0 0.0
    %834 = vmatprep.subr.mxu0 0.0
    %835 = vmatpush1.msra.mxu0 0.0
    %836 = vmatprep.subr.mxu0 0.0
    %837 = vmatpush1.msra.mxu0 0.0
    %838 = vmatprep.subr.mxu0 0.0
    %839 = vmatpush1.msra.mxu0 0.0
    %840 = vmatprep.mubr.f32.mxu0 0.0
    %841 = vmatmul.mubr.f32.gmra.mrb[0].mxu0 %v765
    %v842 = vpop.f32.mrb[0].mxu0
    %v843 = vadd.f32 0.0, %v842
    %v844 = vpop.f32.mrb[0].mxu0
    %v845 = vadd.f32 0.0, %v844
    %846 = vmatprep.mubr.f32.mxu0 0.0
    %847 = vmatmul.mubr.f32.gmra.mrb[0].mxu0 %v768
    %v848 = vpop.f32.mrb[0].mxu0
    %v849 = vadd.f32 0.0, %v848
    %v850 = vpop.f32.mrb[0].mxu0
    %v851 = vadd.f32 0.0, %v850
    %852 = vmatprep.mubr.f32.mxu0 0.0
    %853 = vmatmul.mubr.f32.gmra.mrb[0].mxu0 %v771
    %v854 = vpop.f32.mrb[0].mxu0
    %v855 = vadd.f32 0.0, %v854
    %v856 = vpop.f32.mrb[0].mxu0
    %v857 = vadd.f32 0.0, %v856
    %858 = vmatprep.mubr.f32.mxu0 0.0
    %859 = vmatmul.mubr.f32.gmra.mrb[0].mxu0 %v774
    %v860 = vpop.f32.mrb[0].mxu0
    %v861 = vadd.f32 0.0, %v860
    %v862 = vpop.f32.mrb[0].mxu0
    %v863 = vadd.f32 0.0, %v862
    %864 = vdwg.mxu0
    %865 = vmatprep.subr.mxu0 %v735
    %866 = vmatpush1.msra.mxu0 %v734
    %867 = vmatprep.subr.mxu0 %v739
    %868 = vmatpush1.msra.mxu0 %v738
    %869 = vmatprep.subr.mxu0 %v743
    %870 = vmatpush1.msra.mxu0 %v742
    %871 = vmatprep.subr.mxu0 %v747
    %872 = vmatpush1.msra.mxu0 %v746
    %873 = vmatprep.subr.mxu0 %v751
    %874 = vmatpush1.msra.mxu0 %v750
    %875 = vmatprep.subr.mxu0 %v755
    %876 = vmatpush1.msra.mxu0 %v754
    %877 = vmatprep.subr.mxu0 %v759
    %878 = vmatpush1.msra.mxu0 %v758
    %879 = vmatprep.subr.mxu0 %v763
    %880 = vmatpush1.msra.mxu0 %v762
    %881 = vmatprep.subr.mxu0 0.0
    %882 = vmatpush1.msra.mxu0 0.0
    %883 = vmatprep.subr.mxu0 0.0
    %884 = vmatpush1.msra.mxu0 0.0
    %885 = vmatprep.subr.mxu0 0.0
    %886 = vmatpush1.msra.mxu0 0.0
    %887 = vmatprep.subr.mxu0 0.0
    %888 = vmatpush1.msra.mxu0 0.0
    %889 = vmatprep.subr.mxu0 0.0
    %890 = vmatpush1.msra.mxu0 0.0
    %891 = vmatprep.subr.mxu0 0.0
    %892 = vmatpush1.msra.mxu0 0.0
    %893 = vmatprep.subr.mxu0 0.0
    %894 = vmatpush1.msra.mxu0 0.0
    %895 = vmatprep.subr.mxu0 0.0
    %896 = vmatpush1.msra.mxu0 0.0
    %897 = vmatprep.subr.mxu0 0.0
    %898 = vmatpush1.msra.mxu0 0.0
    %899 = vmatprep.subr.mxu0 0.0
    %900 = vmatpush1.msra.mxu0 0.0
    %901 = vmatprep.subr.mxu0 0.0
    %902 = vmatpush1.msra.mxu0 0.0
    %903 = vmatprep.subr.mxu0 0.0
    %904 = vmatpush1.msra.mxu0 0.0
    %905 = vmatprep.subr.mxu0 0.0
    %906 = vmatpush1.msra.mxu0 0.0
    %907 = vmatprep.subr.mxu0 0.0
    %908 = vmatpush1.msra.mxu0 0.0
    %909 = vmatprep.subr.mxu0 0.0
    %910 = vmatpush1.msra.mxu0 0.0
    %911 = vmatprep.subr.mxu0 0.0
    %912 = vmatpush1.msra.mxu0 0.0
    %913 = vmatprep.subr.mxu0 0.0
    %914 = vmatpush1.msra.mxu0 0.0
    %915 = vmatprep.subr.mxu0 0.0
    %916 = vmatpush1.msra.mxu0 0.0
    %917 = vmatprep.subr.mxu0 0.0
    %918 = vmatpush1.msra.mxu0 0.0
    %919 = vmatprep.subr.mxu0 0.0
    %920 = vmatpush1.msra.mxu0 0.0
    %921 = vmatprep.subr.mxu0 0.0
    %922 = vmatpush1.msra.mxu0 0.0
    %923 = vmatprep.subr.mxu0 0.0
    %924 = vmatpush1.msra.mxu0 0.0
    %925 = vmatprep.subr.mxu0 0.0
    %926 = vmatpush1.msra.mxu0 0.0
    %927 = vmatprep.subr.mxu0 0.0
    %928 = vmatpush1.msra.mxu0 0.0
    %929 = vmatprep.mubr.f32.mxu0 0.0
    %930 = vmatmul.mubr.f32.gmra.mrb[0].mxu0 %v765
    %v931 = vpop.f32.mrb[0].mxu0
    %v932 = vadd.f32 0.0, %v931
    %v933 = vpop.f32.mrb[0].mxu0
    %v934 = vadd.f32 0.0, %v933
    %935 = vmatprep.mubr.f32.mxu0 0.0
    %936 = vmatmul.mubr.f32.gmra.mrb[0].mxu0 %v768
    %v937 = vpop.f32.mrb[0].mxu0
    %v938 = vadd.f32 0.0, %v937
    %v939 = vpop.f32.mrb[0].mxu0
    %v940 = vadd.f32 0.0, %v939
    %941 = vmatprep.mubr.f32.mxu0 0.0
    %942 = vmatmul.mubr.f32.gmra.mrb[0].mxu0 %v771
    %v943 = vpop.f32.mrb[0].mxu0
    %v944 = vadd.f32 0.0, %v943
    %v945 = vpop.f32.mrb[0].mxu0
    %v946 = vadd.f32 0.0, %v945
    %947 = vmatprep.mubr.f32.mxu0 0.0
    %948 = vmatmul.mubr.f32.gmra.mrb[0].mxu0 %v774
    %v949 = vpop.f32.mrb[0].mxu0
    %v950 = vadd.f32 0.0, %v949
    %v951 = vpop.f32.mrb[0].mxu0
    %v952 = vadd.f32 0.0, %v951
    %953 = vdwg.mxu0
    %v954 = vadd.f32 %v712, %v843
    %v955 = vadd.f32 %v713, %v845
    %v956 = vadd.f32 %v714, %v932
    %v957 = vadd.f32 %v715, %v934
    %v958 = vadd.f32 %v716, %v849
    %v959 = vadd.f32 %v717, %v851
    %v960 = vadd.f32 %v718, %v938
    %v961 = vadd.f32 %v719, %v940
    %v962 = vadd.f32 %v720, %v855
    %v963 = vadd.f32 %v721, %v857
    %v964 = vadd.f32 %v722, %v944
    %v965 = vadd.f32 %v723, %v946
    %v966 = vadd.f32 %v724, %v861
    %v967 = vadd.f32 %v725, %v863
    %v968 = vadd.f32 %v726, %v950
    %v969 = vadd.f32 %v727, %v952
    %v970 = vld [vmem:[%s2] sm:$0xf]
    %v972 = vlaneseq
    %v973 = vshrl.u32 %v972, 7
    %v974 = vsub.s32 0, %v973
    %v975 = vrot.slane %v970, %v974
    %v976 = vlaneseq
    %v977 = vshrl.u32 %v976, 7
    %v978 = vsub.s32 1, %v977
    %v979 = vrot.slane %v970, %v978
    %v980 = vlaneseq
    %v981 = vshrl.u32 %v980, 7
    %v982 = vsub.s32 2, %v981
    %v983 = vrot.slane %v970, %v982
    %v984 = vlaneseq
    %v985 = vshrl.u32 %v984, 7
    %v986 = vsub.s32 3, %v985
    %v987 = vrot.slane %v970, %v986
    %v992 = vadd.f32 %v954, %v975
    %v993 = vadd.f32 %v955, %v979
    %v994 = vadd.f32 %v956, %v983
    %v995 = vadd.f32 %v957, %v987
    %v996 = vadd.f32 %v958, %v975
    %v997 = vadd.f32 %v959, %v979
    %v998 = vadd.f32 %v960, %v983
    %v999 = vadd.f32 %v961, %v987
    %v1000 = vadd.f32 %v962, %v975
    %v1001 = vadd.f32 %v963, %v979
    %v1002 = vadd.f32 %v964, %v983
    %v1003 = vadd.f32 %v965, %v987
    %v1004 = vadd.f32 %v966, %v975
    %v1005 = vadd.f32 %v967, %v979
    %v1006 = vadd.f32 %v968, %v983
    %v1007 = vadd.f32 %v969, %v987
    %v1008 = vmax.f32 %v992, 0.0
    %v1009 = vmax.f32 %v993, 0.0
    %v1010 = vmax.f32 %v994, 0.0
    %v1011 = vmax.f32 %v995, 0.0
    %v1012 = vmax.f32 %v996, 0.0
    %v1013 = vmax.f32 %v997, 0.0
    %v1014 = vmax.f32 %v998, 0.0
    %v1015 = vmax.f32 %v999, 0.0
    %v1016 = vmax.f32 %v1000, 0.0
    %v1017 = vmax.f32 %v1001, 0.0
    %v1018 = vmax.f32 %v1002, 0.0
    %v1019 = vmax.f32 %v1003, 0.0
    %v1020 = vmax.f32 %v1004, 0.0
    %v1021 = vmax.f32 %v1005, 0.0
    %v1022 = vmax.f32 %v1006, 0.0
    %v1023 = vmax.f32 %v1007, 0.0
    %1024 = vst [vmem:[#allocation2] sm:$0xff] %v1008
    %1025 = vst [vmem:[#allocation2 + $0x8] sm:$0xff] %v1009
    %1026 = vst [vmem:[#allocation2 + $0x10] sm:$0xff] %v1010
    %vm1027 = vcmask 261120
    %1028 = vst.msk [vmem:[#allocation2 + $0x18] sm:$0xff] %vm1027, %v1011
    %1029 = vst [vmem:[#allocation2 + $0x20] sm:$0xff] %v1012
    %1030 = vst [vmem:[#allocation2 + $0x28] sm:$0xff] %v1013
    %1031 = vst [vmem:[#allocation2 + $0x30] sm:$0xff] %v1014
    %1032 = vst.msk [vmem:[#allocation2 + $0x38] sm:$0xff] %vm1027, %v1015
    %1033 = vst [vmem:[#allocation2 + $0x40] sm:$0xff] %v1016
    %1034 = vst [vmem:[#allocation2 + $0x48] sm:$0xff] %v1017
    %1035 = vst [vmem:[#allocation2 + $0x50] sm:$0xff] %v1018
    %1036 = vst.msk [vmem:[#allocation2 + $0x58] sm:$0xff] %vm1027, %v1019
    %1037 = vst [vmem:[#allocation2 + $0x60] sm:$0xff] %v1020
    %1038 = vst [vmem:[#allocation2 + $0x68] sm:$0xff] %v1021
    %1039 = vst [vmem:[#allocation2 + $0x70] sm:$0xff] %v1022
    %1040 = vst.msk [vmem:[#allocation2 + $0x78] sm:$0xff] %vm1027, %v1023
    %v1041 = vld [vmem:[#allocation2] sm:$0xff]
    %v1042 = vld [vmem:[#allocation2 + $0x8] sm:$0xff]
    %v1043 = vld [vmem:[#allocation2 + $0x10] sm:$0xff]
    %v1044 = vld [vmem:[#allocation2 + $0x18] sm:$0xff]
    %v1045 = vld [vmem:[#allocation2 + $0x20] sm:$0xff]
    %v1046 = vld [vmem:[#allocation2 + $0x28] sm:$0xff]
    %v1047 = vld [vmem:[#allocation2 + $0x30] sm:$0xff]
    %v1048 = vld [vmem:[#allocation2 + $0x38] sm:$0xff]
    %v1049 = vld [vmem:[#allocation2 + $0x40] sm:$0xff]
    %v1050 = vld [vmem:[#allocation2 + $0x48] sm:$0xff]
    %v1051 = vld [vmem:[#allocation2 + $0x50] sm:$0xff]
    %v1052 = vld [vmem:[#allocation2 + $0x58] sm:$0xff]
    %v1053 = vld [vmem:[#allocation2 + $0x60] sm:$0x1]
    %v1054 = vld [vmem:[#allocation2 + $0x68] sm:$0x1]
    %v1055 = vld [vmem:[#allocation2 + $0x70] sm:$0x1]
    %v1056 = vld [vmem:[#allocation2 + $0x78] sm:$0x1]
    %v1057 = vld [vmem:[%s3] sm:$0xff]
    %v1058 = vld [vmem:[%s3 + $0x8] sm:$0xff]
    %v1059 = vld [vmem:[%s3 + $0x10] sm:$0xff]
    %v1060 = vld [vmem:[%s3 + $0x18] sm:$0xff]
    %v1061 = vld [vmem:[%s3 + $0x20] sm:$0xff]
    %v1062 = vld [vmem:[%s3 + $0x28] sm:$0xff]
    %v1063 = vld [vmem:[%s3 + $0x30] sm:$0xff]
    %v1064 = vld [vmem:[%s3 + $0x38] sm:$0xff]
    %v1065 = vld [vmem:[%s3 + $0x40] sm:$0xff]
    %v1066 = vld [vmem:[%s3 + $0x48] sm:$0xff]
    %v1067 = vld [vmem:[%s3 + $0x50] sm:$0xff]
    %v1068 = vld [vmem:[%s3 + $0x58] sm:$0xff]
    %v1069 = vld [vmem:[%s3 + $0x60] sm:$0xff]
    %v1070 = vld [vmem:[%s3 + $0x68] sm:$0xff]
    %v1071 = vld [vmem:[%s3 + $0x70] sm:$0xff]
    %v1072 = vld [vmem:[%s3 + $0x78] sm:$0xff]
    %v1073 = vld [vmem:[%s3 + $0x80] sm:$0xff]
    %v1074 = vld [vmem:[%s3 + $0x88] sm:$0xff]
    %v1075 = vld [vmem:[%s3 + $0x90] sm:$0xff]
    %v1076 = vld [vmem:[%s3 + $0x98] sm:$0xff]
    %v1077 = vld [vmem:[%s3 + $0xa0] sm:$0xff]
    %v1078 = vld [vmem:[%s3 + $0xa8] sm:$0xff]
    %v1079 = vld [vmem:[%s3 + $0xb0] sm:$0xff]
    %v1080 = vld [vmem:[%s3 + $0xb8] sm:$0xff]
    %v1081 = vld [vmem:[%s3 + $0xc0] sm:$0xff]
    %v1082 = vld [vmem:[%s3 + $0xc8] sm:$0xff]
    %v1083 = vld [vmem:[%s3 + $0xd0] sm:$0xff]
    %v1084 = vld [vmem:[%s3 + $0xd8] sm:$0xff]
    %v1085 = vld [vmem:[%s3 + $0xe0] sm:$0xff]
    %v1086 = vld [vmem:[%s3 + $0xe8] sm:$0xff]
    %v1087 = vld [vmem:[%s3 + $0xf0] sm:$0xff]
    %v1088 = vld [vmem:[%s3 + $0xf8] sm:$0xff]
    %v1089 = vld [vmem:[%s3 + $0x100] sm:$0xff]
    %v1090 = vld [vmem:[%s3 + $0x108] sm:$0xff]
    %v1091 = vld [vmem:[%s3 + $0x110] sm:$0xff]
    %v1092 = vld [vmem:[%s3 + $0x118] sm:$0xff]
    %v1093 = vld [vmem:[%s3 + $0x120] sm:$0xff]
    %v1094 = vld [vmem:[%s3 + $0x128] sm:$0xff]
    %v1095 = vld [vmem:[%s3 + $0x130] sm:$0xff]
    %v1096 = vld [vmem:[%s3 + $0x138] sm:$0xff]
    %v1097 = vld [vmem:[%s3 + $0x140] sm:$0xff]
    %v1098 = vld [vmem:[%s3 + $0x148] sm:$0xff]
    %v1099 = vld [vmem:[%s3 + $0x150] sm:$0xff]
    %v1100 = vld [vmem:[%s3 + $0x158] sm:$0xff]
    %v1101 = vld [vmem:[%s3 + $0x160] sm:$0xff]
    %v1102 = vld [vmem:[%s3 + $0x168] sm:$0xff]
    %v1103 = vld [vmem:[%s3 + $0x170] sm:$0xff]
    %v1104 = vld [vmem:[%s3 + $0x178] sm:$0xff]
    %v1105 = vld [vmem:[%s3 + $0x180] sm:$0xff]
    %v1106 = vld [vmem:[%s3 + $0x188] sm:$0xff]
    %v1107 = vld [vmem:[%s3 + $0x190] sm:$0xff]
    %v1108 = vld [vmem:[%s3 + $0x198] sm:$0xff]
    %v1109 = vld [vmem:[#allocation2] sm:$0xfe]
    %v1110 = vld [vmem:[#allocation2 + $0x8] sm:$0xfe]
    %v1111 = vld [vmem:[#allocation2 + $0x10] sm:$0xfe]
    %v1112 = vld [vmem:[#allocation2 + $0x18] sm:$0xfe]
    %v1113 = vld [vmem:[#allocation2 + $0x60] sm:$0x3]
    %v1114 = vld [vmem:[#allocation2 + $0x68] sm:$0x3]
    %v1115 = vld [vmem:[#allocation2 + $0x70] sm:$0x3]
    %v1116 = vld [vmem:[#allocation2 + $0x78] sm:$0x3]
    %v1117 = vld [vmem:[%s3 + $0x1a0] sm:$0xff]
    %v1118 = vld [vmem:[%s3 + $0x1a8] sm:$0xff]
    %v1119 = vld [vmem:[%s3 + $0x1b0] sm:$0xff]
    %v1120 = vld [vmem:[%s3 + $0x1b8] sm:$0xff]
    %v1121 = vld [vmem:[%s3 + $0x1c0] sm:$0xff]
    %v1122 = vld [vmem:[%s3 + $0x1c8] sm:$0xff]
    %v1123 = vld [vmem:[%s3 + $0x1d0] sm:$0xff]
    %v1124 = vld [vmem:[%s3 + $0x1d8] sm:$0xff]
    %v1125 = vld [vmem:[%s3 + $0x1e0] sm:$0xff]
    %v1126 = vld [vmem:[%s3 + $0x1e8] sm:$0xff]
    %v1127 = vld [vmem:[%s3 + $0x1f0] sm:$0xff]
    %v1128 = vld [vmem:[%s3 + $0x1f8] sm:$0xff]
    %v1129 = vld [vmem:[%s3 + $0x200] sm:$0xff]
    %v1130 = vld [vmem:[%s3 + $0x208] sm:$0xff]
    %v1131 = vld [vmem:[%s3 + $0x210] sm:$0xff]
    %v1132 = vld [vmem:[%s3 + $0x218] sm:$0xff]
    %v1133 = vld [vmem:[%s3 + $0x220] sm:$0xff]
    %v1134 = vld [vmem:[%s3 + $0x228] sm:$0xff]
    %v1135 = vld [vmem:[%s3 + $0x230] sm:$0xff]
    %v1136 = vld [vmem:[%s3 + $0x238] sm:$0xff]
    %v1137 = vld [vmem:[%s3 + $0x240] sm:$0xff]
    %v1138 = vld [vmem:[%s3 + $0x248] sm:$0xff]
    %v1139 = vld [vmem:[%s3 + $0x250] sm:$0xff]
    %v1140 = vld [vmem:[%s3 + $0x258] sm:$0xff]
    %v1141 = vld [vmem:[%s3 + $0x260] sm:$0xff]
    %v1142 = vld [vmem:[%s3 + $0x268] sm:$0xff]
    %v1143 = vld [vmem:[%s3 + $0x270] sm:$0xff]
    %v1144 = vld [vmem:[%s3 + $0x278] sm:$0xff]
    %v1145 = vld [vmem:[%s3 + $0x280] sm:$0xff]
    %v1146 = vld [vmem:[%s3 + $0x288] sm:$0xff]
    %v1147 = vld [vmem:[%s3 + $0x290] sm:$0xff]
    %v1148 = vld [vmem:[%s3 + $0x298] sm:$0xff]
    %v1149 = vld [vmem:[%s3 + $0x2a0] sm:$0xff]
    %v1150 = vld [vmem:[%s3 + $0x2a8] sm:$0xff]
    %v1151 = vld [vmem:[%s3 + $0x2b0] sm:$0xff]
    %v1152 = vld [vmem:[%s3 + $0x2b8] sm:$0xff]
    %v1153 = vld [vmem:[%s3 + $0x2c0] sm:$0xff]
    %v1154 = vld [vmem:[%s3 + $0x2c8] sm:$0xff]
    %v1155 = vld [vmem:[%s3 + $0x2d0] sm:$0xff]
    %v1156 = vld [vmem:[%s3 + $0x2d8] sm:$0xff]
    %v1157 = vld [vmem:[%s3 + $0x2e0] sm:$0xff]
    %v1158 = vld [vmem:[%s3 + $0x2e8] sm:$0xff]
    %v1159 = vld [vmem:[%s3 + $0x2f0] sm:$0xff]
    %v1160 = vld [vmem:[%s3 + $0x2f8] sm:$0xff]
    %v1161 = vld [vmem:[%s3 + $0x300] sm:$0xff]
    %v1162 = vld [vmem:[%s3 + $0x308] sm:$0xff]
    %v1163 = vld [vmem:[%s3 + $0x310] sm:$0xff]
    %v1164 = vld [vmem:[%s3 + $0x318] sm:$0xff]
    %v1165 = vld [vmem:[%s3 + $0x320] sm:$0xff]
    %v1166 = vld [vmem:[%s3 + $0x328] sm:$0xff]
    %v1167 = vld [vmem:[%s3 + $0x330] sm:$0xff]
    %v1168 = vld [vmem:[%s3 + $0x338] sm:$0xff]
    %vm1185 = vcmask 1046528
    %v1186 = vrot.slane %v1109, 1
    %v1187 = vrot.slane %v1045, 1
    %v1188 = vsel %vm1185, %v1186, %v1187
    %v1189 = vrot.slane %v1110, 1
    %v1190 = vrot.slane %v1046, 1
    %v1191 = vsel %vm1185, %v1189, %v1190
    %v1192 = vrot.slane %v1111, 1
    %v1193 = vrot.slane %v1047, 1
    %v1194 = vsel %vm1185, %v1192, %v1193
    %v1195 = vrot.slane %v1112, 1
    %v1196 = vrot.slane %v1048, 1
    %v1197 = vsel %vm1185, %v1195, %v1196
    %v1198 = vrot.slane %v1049, 1
    %v1199 = vsel %vm1185, %v1187, %v1198
    %v1200 = vrot.slane %v1050, 1
    %v1201 = vsel %vm1185, %v1190, %v1200
    %v1202 = vrot.slane %v1051, 1
    %v1203 = vsel %vm1185, %v1193, %v1202
    %v1204 = vrot.slane %v1052, 1
    %v1205 = vsel %vm1185, %v1196, %v1204
    %v1206 = vrot.slane %v1113, 1
    %v1207 = vsel %vm1185, %v1198, %v1206
    %v1208 = vrot.slane %v1114, 1
    %v1209 = vsel %vm1185, %v1200, %v1208
    %v1210 = vrot.slane %v1115, 1
    %v1211 = vsel %vm1185, %v1202, %v1210
    %v1212 = vrot.slane %v1116, 1
    %v1213 = vsel %vm1185, %v1204, %v1212
    %v1226 = vsel %vm1027, %v1197, 0
    %v1228 = vsel %vm1027, %v1205, 0
    %v1230 = vsel %vm1027, %v1213, 0
    %v1232 = vsel %vm1027, %v1212, 0
    %1234 = vmatprep.subr.mxu0 0.0
    %1235 = vmatpush1.msra.mxu0 %v1117
    %1236 = vmatprep.subr.mxu0 0.0
    %1237 = vmatpush1.msra.mxu0 %v1118
    %1238 = vmatprep.subr.mxu0 0.0
    %1239 = vmatpush1.msra.mxu0 %v1119
    %1240 = vmatprep.subr.mxu0 0.0
    %1241 = vmatpush1.msra.mxu0 %v1120
    %1242 = vmatprep.subr.mxu0 0.0
    %1243 = vmatpush1.msra.mxu0 %v1121
    %1244 = vmatprep.subr.mxu0 0.0
    %1245 = vmatpush1.msra.mxu0 %v1122
    %1246 = vmatprep.subr.mxu0 0.0
    %1247 = vmatpush1.msra.mxu0 %v1123
    %1248 = vmatprep.subr.mxu0 0.0
    %1249 = vmatpush1.msra.mxu0 %v1124
    %1250 = vmatprep.subr.mxu0 0.0
    %1251 = vmatpush1.msra.mxu0 %v1125
    %1252 = vmatprep.subr.mxu0 0.0
    %1253 = vmatpush1.msra.mxu0 %v1126
    %1254 = vmatprep.subr.mxu0 0.0
    %1255 = vmatpush1.msra.mxu0 %v1127
    %1256 = vmatprep.subr.mxu0 0.0
    %1257 = vmatpush1.msra.mxu0 %v1128
    %1258 = vmatprep.subr.mxu0 0.0
    %1259 = vmatpush1.msra.mxu0 %v1129
    %1260 = vmatprep.subr.mxu0 0.0
    %1261 = vmatpush1.msra.mxu0 %v1130
    %1262 = vmatprep.subr.mxu0 0.0
    %1263 = vmatpush1.msra.mxu0 %v1131
    %1264 = vmatprep.subr.mxu0 0.0
    %1265 = vmatpush1.msra.mxu0 %v1132
    %1266 = vmatprep.subr.mxu0 0.0
    %1267 = vmatpush1.msra.mxu0 %v1133
    %1268 = vmatprep.subr.mxu0 0.0
    %1269 = vmatpush1.msra.mxu0 %v1134
    %1270 = vmatprep.subr.mxu0 0.0
    %1271 = vmatpush1.msra.mxu0 %v1135
    %1272 = vmatprep.subr.mxu0 0.0
    %1273 = vmatpush1.msra.mxu0 %v1136
    %1274 = vmatprep.subr.mxu0 0.0
    %1275 = vmatpush1.msra.mxu0 %v1137
    %1276 = vmatprep.subr.mxu0 0.0
    %1277 = vmatpush1.msra.mxu0 %v1138
    %1278 = vmatprep.subr.mxu0 0.0
    %1279 = vmatpush1.msra.mxu0 %v1139
    %1280 = vmatprep.subr.mxu0 0.0
    %1281 = vmatpush1.msra.mxu0 %v1140
    %1282 = vmatprep.subr.mxu0 0.0
    %1283 = vmatpush1.msra.mxu0 %v1141
    %1284 = vmatprep.subr.mxu0 0.0
    %1285 = vmatpush1.msra.mxu0 %v1142
    %1286 = vmatprep.subr.mxu0 0.0
    %1287 = vmatpush1.msra.mxu0 %v1143
    %1288 = vmatprep.subr.mxu0 0.0
    %1289 = vmatpush1.msra.mxu0 %v1144
    %1290 = vmatprep.subr.mxu0 0.0
    %1291 = vmatpush1.msra.mxu0 %v1145
    %1292 = vmatprep.subr.mxu0 0.0
    %1293 = vmatpush1.msra.mxu0 %v1146
    %1294 = vmatprep.subr.mxu0 0.0
    %1295 = vmatpush1.msra.mxu0 %v1147
    %1296 = vmatprep.subr.mxu0 0.0
    %1297 = vmatpush1.msra.mxu0 %v1148
    %1298 = vmatprep.mubr.f32.mxu0 %v1191
    %1299 = vmatmul.mubr.f32.gmra.mrb[0].mxu0 %v1188
    %v1300 = vpop.f32.mrb[0].mxu0
    %v1301 = vadd.f32 0.0, %v1300
    %v1302 = vpop.f32.mrb[0].mxu0
    %1303 = vmatprep.mubr.f32.mxu0 %v1201
    %1304 = vmatmul.mubr.f32.gmra.mrb[0].mxu0 %v1199
    %v1305 = vpop.f32.mrb[0].mxu0
    %v1306 = vpop.f32.mrb[0].mxu0
    %1307 = vmatprep.mubr.f32.mxu0 %v1209
    %1308 = vmatmul.mubr.f32.gmra.mrb[0].mxu0 %v1207
    %v1309 = vpop.f32.mrb[0].mxu0
    %v1310 = vadd.f32 0.0, %v1309
    %v1311 = vpop.f32.mrb[0].mxu0
    %1312 = vmatprep.mubr.f32.mxu0 %v1208
    %1313 = vmatmul.mubr.f32.gmra.mrb[0].mxu0 %v1206
    %v1314 = vpop.f32.mrb[0].mxu0
    %v1315 = vpop.f32.mrb[0].mxu0
    %1316 = vdwg.mxu0
    %1317 = vmatprep.subr.mxu0 0.0
    %1318 = vmatpush1.msra.mxu0 %v1149
    %1319 = vmatprep.subr.mxu0 0.0
    %1320 = vmatpush1.msra.mxu0 %v1150
    %1321 = vmatprep.subr.mxu0 0.0
    %1322 = vmatpush1.msra.mxu0 %v1151
    %1323 = vmatprep.subr.mxu0 0.0
    %1324 = vmatpush1.msra.mxu0 %v1152
    %1325 = vmatprep.subr.mxu0 0.0
    %1326 = vmatpush1.msra.mxu0 %v1153
    %1327 = vmatprep.subr.mxu0 0.0
    %1328 = vmatpush1.msra.mxu0 %v1154
    %1329 = vmatprep.subr.mxu0 0.0
    %1330 = vmatpush1.msra.mxu0 %v1155
    %1331 = vmatprep.subr.mxu0 0.0
    %1332 = vmatpush1.msra.mxu0 %v1156
    %1333 = vmatprep.subr.mxu0 0.0
    %1334 = vmatpush1.msra.mxu0 %v1157
    %1335 = vmatprep.subr.mxu0 0.0
    %1336 = vmatpush1.msra.mxu0 %v1158
    %1337 = vmatprep.subr.mxu0 0.0
    %1338 = vmatpush1.msra.mxu0 %v1159
    %1339 = vmatprep.subr.mxu0 0.0
    %1340 = vmatpush1.msra.mxu0 %v1160
    %1341 = vmatprep.subr.mxu0 0.0
    %1342 = vmatpush1.msra.mxu0 %v1161
    %1343 = vmatprep.subr.mxu0 0.0
    %1344 = vmatpush1.msra.mxu0 %v1162
    %1345 = vmatprep.subr.mxu0 0.0
    %1346 = vmatpush1.msra.mxu0 %v1163
    %1347 = vmatprep.subr.mxu0 0.0
    %1348 = vmatpush1.msra.mxu0 %v1164
    %1349 = vmatprep.subr.mxu0 0.0
    %1350 = vmatpush1.msra.mxu0 %v1165
    %1351 = vmatprep.subr.mxu0 0.0
    %1352 = vmatpush1.msra.mxu0 %v1166
    %1353 = vmatprep.subr.mxu0 0.0
    %1354 = vmatpush1.msra.mxu0 %v1167
    %1355 = vmatprep.subr.mxu0 0.0
    %1356 = vmatpush1.msra.mxu0 %v1168
    %1357 = vmatprep.subr.mxu0 0.0
    %1358 = vmatpush1.msra.mxu0 0.0
    %1359 = vmatprep.subr.mxu0 0.0
    %1360 = vmatpush1.msra.mxu0 0.0
    %1361 = vmatprep.subr.mxu0 0.0
    %1362 = vmatpush1.msra.mxu0 0.0
    %1363 = vmatprep.subr.mxu0 0.0
    %1364 = vmatpush1.msra.mxu0 0.0
    %1365 = vmatprep.subr.mxu0 0.0
    %1366 = vmatpush1.msra.mxu0 0.0
    %1367 = vmatprep.subr.mxu0 0.0
    %1368 = vmatpush1.msra.mxu0 0.0
    %1369 = vmatprep.subr.mxu0 0.0
    %1370 = vmatpush1.msra.mxu0 0.0
    %1371 = vmatprep.subr.mxu0 0.0
    %1372 = vmatpush1.msra.mxu0 0.0
    %1373 = vmatprep.subr.mxu0 0.0
    %1374 = vmatpush1.msra.mxu0 0.0
    %1375 = vmatprep.subr.mxu0 0.0
    %1376 = vmatpush1.msra.mxu0 0.0
    %1377 = vmatprep.subr.mxu0 0.0
    %1378 = vmatpush1.msra.mxu0 0.0
    %1379 = vmatprep.subr.mxu0 0.0
    %1380 = vmatpush1.msra.mxu0 0.0
    %1381 = vmatprep.mubr.f32.mxu0 %v1226
    %1382 = vmatmul.mubr.f32.gmra.mrb[0].mxu0 %v1194
    %v1383 = vpop.f32.mrb[0].mxu0
    %v1384 = vadd.f32 %v1301, %v1383
    %v1385 = vpop.f32.mrb[0].mxu0
    %1386 = vmatprep.mubr.f32.mxu0 %v1228
    %1387 = vmatmul.mubr.f32.gmra.mrb[0].mxu0 %v1203
    %v1388 = vpop.f32.mrb[0].mxu0
    %v1389 = vpop.f32.mrb[0].mxu0
    %1390 = vmatprep.mubr.f32.mxu0 %v1230
    %1391 = vmatmul.mubr.f32.gmra.mrb[0].mxu0 %v1211
    %v1392 = vpop.f32.mrb[0].mxu0
    %v1393 = vadd.f32 %v1310, %v1392
    %v1394 = vpop.f32.mrb[0].mxu0
    %1395 = vmatprep.mubr.f32.mxu0 %v1232
    %1396 = vmatmul.mubr.f32.gmra.mrb[0].mxu0 %v1210
    %v1397 = vpop.f32.mrb[0].mxu0
    %v1398 = vpop.f32.mrb[0].mxu0
    %1399 = vdwg.mxu0
    %v1401 = vsel %vm1027, %v1044, 0
    %v1403 = vsel %vm1027, %v1048, 0
    %v1405 = vsel %vm1027, %v1052, 0
    %v1408 = vsel %vm1027, %v1056, 0
    %1410 = vmatprep.subr.mxu0 0.0
    %1411 = vmatpush1.msra.mxu0 %v1057
    %1412 = vmatprep.subr.mxu0 0.0
    %1413 = vmatpush1.msra.mxu0 %v1058
    %1414 = vmatprep.subr.mxu0 0.0
    %1415 = vmatpush1.msra.mxu0 %v1059
    %1416 = vmatprep.subr.mxu0 0.0
    %1417 = vmatpush1.msra.mxu0 %v1060
    %1418 = vmatprep.subr.mxu0 0.0
    %1419 = vmatpush1.msra.mxu0 %v1061
    %1420 = vmatprep.subr.mxu0 0.0
    %1421 = vmatpush1.msra.mxu0 %v1062
    %1422 = vmatprep.subr.mxu0 0.0
    %1423 = vmatpush1.msra.mxu0 %v1063
    %1424 = vmatprep.subr.mxu0 0.0
    %1425 = vmatpush1.msra.mxu0 %v1064
    %1426 = vmatprep.subr.mxu0 0.0
    %1427 = vmatpush1.msra.mxu0 %v1065
    %1428 = vmatprep.subr.mxu0 0.0
    %1429 = vmatpush1.msra.mxu0 %v1066
    %1430 = vmatprep.subr.mxu0 0.0
    %1431 = vmatpush1.msra.mxu0 %v1067
    %1432 = vmatprep.subr.mxu0 0.0
    %1433 = vmatpush1.msra.mxu0 %v1068
    %1434 = vmatprep.subr.mxu0 0.0
    %1435 = vmatpush1.msra.mxu0 %v1069
    %1436 = vmatprep.subr.mxu0 0.0
    %1437 = vmatpush1.msra.mxu0 %v1070
    %1438 = vmatprep.subr.mxu0 0.0
    %1439 = vmatpush1.msra.mxu0 %v1071
    %1440 = vmatprep.subr.mxu0 0.0
    %1441 = vmatpush1.msra.mxu0 %v1072
    %1442 = vmatprep.subr.mxu0 0.0
    %1443 = vmatpush1.msra.mxu0 %v1073
    %1444 = vmatprep.subr.mxu0 0.0
    %1445 = vmatpush1.msra.mxu0 %v1074
    %1446 = vmatprep.subr.mxu0 0.0
    %1447 = vmatpush1.msra.mxu0 %v1075
    %1448 = vmatprep.subr.mxu0 0.0
    %1449 = vmatpush1.msra.mxu0 %v1076
    %1450 = vmatprep.subr.mxu0 0.0
    %1451 = vmatpush1.msra.mxu0 %v1077
    %1452 = vmatprep.subr.mxu0 0.0
    %1453 = vmatpush1.msra.mxu0 %v1078
    %1454 = vmatprep.subr.mxu0 0.0
    %1455 = vmatpush1.msra.mxu0 %v1079
    %1456 = vmatprep.subr.mxu0 0.0
    %1457 = vmatpush1.msra.mxu0 %v1080
    %1458 = vmatprep.subr.mxu0 0.0
    %1459 = vmatpush1.msra.mxu0 %v1081
    %1460 = vmatprep.subr.mxu0 0.0
    %1461 = vmatpush1.msra.mxu0 %v1082
    %1462 = vmatprep.subr.mxu0 0.0
    %1463 = vmatpush1.msra.mxu0 %v1083
    %1464 = vmatprep.subr.mxu0 0.0
    %1465 = vmatpush1.msra.mxu0 %v1084
    %1466 = vmatprep.subr.mxu0 0.0
    %1467 = vmatpush1.msra.mxu0 %v1085
    %1468 = vmatprep.subr.mxu0 0.0
    %1469 = vmatpush1.msra.mxu0 %v1086
    %1470 = vmatprep.subr.mxu0 0.0
    %1471 = vmatpush1.msra.mxu0 %v1087
    %1472 = vmatprep.subr.mxu0 0.0
    %1473 = vmatpush1.msra.mxu0 %v1088
    %1474 = vmatprep.mubr.f32.mxu0 %v1042
    %1475 = vmatmul.mubr.f32.gmra.mrb[0].mxu0 %v1041
    %v1476 = vpop.f32.mrb[0].mxu0
    %v1477 = vadd.f32 %v1384, %v1476
    %v1478 = vpop.f32.mrb[0].mxu0
    %1479 = vmatprep.mubr.f32.mxu0 %v1046
    %1480 = vmatmul.mubr.f32.gmra.mrb[0].mxu0 %v1045
    %v1481 = vpop.f32.mrb[0].mxu0
    %v1482 = vpop.f32.mrb[0].mxu0
    %1483 = vmatprep.mubr.f32.mxu0 %v1050
    %1484 = vmatmul.mubr.f32.gmra.mrb[0].mxu0 %v1049
    %v1485 = vpop.f32.mrb[0].mxu0
    %v1486 = vadd.f32 %v1393, %v1485
    %v1487 = vpop.f32.mrb[0].mxu0
    %1488 = vmatprep.mubr.f32.mxu0 %v1054
    %1489 = vmatmul.mubr.f32.gmra.mrb[0].mxu0 %v1053
    %v1490 = vpop.f32.mrb[0].mxu0
    %v1491 = vpop.f32.mrb[0].mxu0
    %1492 = vdwg.mxu0
    %1493 = vmatprep.subr.mxu0 0.0
    %1494 = vmatpush1.msra.mxu0 %v1089
    %1495 = vmatprep.subr.mxu0 0.0
    %1496 = vmatpush1.msra.mxu0 %v1090
    %1497 = vmatprep.subr.mxu0 0.0
    %1498 = vmatpush1.msra.mxu0 %v1091
    %1499 = vmatprep.subr.mxu0 0.0
    %1500 = vmatpush1.msra.mxu0 %v1092
    %1501 = vmatprep.subr.mxu0 0.0
    %1502 = vmatpush1.msra.mxu0 %v1093
    %1503 = vmatprep.subr.mxu0 0.0
    %1504 = vmatpush1.msra.mxu0 %v1094
    %1505 = vmatprep.subr.mxu0 0.0
    %1506 = vmatpush1.msra.mxu0 %v1095
    %1507 = vmatprep.subr.mxu0 0.0
    %1508 = vmatpush1.msra.mxu0 %v1096
    %1509 = vmatprep.subr.mxu0 0.0
    %1510 = vmatpush1.msra.mxu0 %v1097
    %1511 = vmatprep.subr.mxu0 0.0
    %1512 = vmatpush1.msra.mxu0 %v1098
    %1513 = vmatprep.subr.mxu0 0.0
    %1514 = vmatpush1.msra.mxu0 %v1099
    %1515 = vmatprep.subr.mxu0 0.0
    %1516 = vmatpush1.msra.mxu0 %v1100
    %1517 = vmatprep.subr.mxu0 0.0
    %1518 = vmatpush1.msra.mxu0 %v1101
    %1519 = vmatprep.subr.mxu0 0.0
    %1520 = vmatpush1.msra.mxu0 %v1102
    %1521 = vmatprep.subr.mxu0 0.0
    %1522 = vmatpush1.msra.mxu0 %v1103
    %1523 = vmatprep.subr.mxu0 0.0
    %1524 = vmatpush1.msra.mxu0 %v1104
    %1525 = vmatprep.subr.mxu0 0.0
    %1526 = vmatpush1.msra.mxu0 %v1105
    %1527 = vmatprep.subr.mxu0 0.0
    %1528 = vmatpush1.msra.mxu0 %v1106
    %1529 = vmatprep.subr.mxu0 0.0
    %1530 = vmatpush1.msra.mxu0 %v1107
    %1531 = vmatprep.subr.mxu0 0.0
    %1532 = vmatpush1.msra.mxu0 %v1108
    %1533 = vmatprep.subr.mxu0 0.0
    %1534 = vmatpush1.msra.mxu0 0.0
    %1535 = vmatprep.subr.mxu0 0.0
    %1536 = vmatpush1.msra.mxu0 0.0
    %1537 = vmatprep.subr.mxu0 0.0
    %1538 = vmatpush1.msra.mxu0 0.0
    %1539 = vmatprep.subr.mxu0 0.0
    %1540 = vmatpush1.msra.mxu0 0.0
    %1541 = vmatprep.subr.mxu0 0.0
    %1542 = vmatpush1.msra.mxu0 0.0
    %1543 = vmatprep.subr.mxu0 0.0
    %1544 = vmatpush1.msra.mxu0 0.0
    %1545 = vmatprep.subr.mxu0 0.0
    %1546 = vmatpush1.msra.mxu0 0.0
    %1547 = vmatprep.subr.mxu0 0.0
    %1548 = vmatpush1.msra.mxu0 0.0
    %1549 = vmatprep.subr.mxu0 0.0
    %1550 = vmatpush1.msra.mxu0 0.0
    %1551 = vmatprep.subr.mxu0 0.0
    %1552 = vmatpush1.msra.mxu0 0.0
    %1553 = vmatprep.subr.mxu0 0.0
    %1554 = vmatpush1.msra.mxu0 0.0
    %1555 = vmatprep.subr.mxu0 0.0
    %1556 = vmatpush1.msra.mxu0 0.0
    %1557 = vmatprep.mubr.f32.mxu0 %v1401
    %1558 = vmatmul.mubr.f32.gmra.mrb[0].mxu0 %v1043
    %v1559 = vpop.f32.mrb[0].mxu0
    %v1560 = vadd.f32 %v1477, %v1559
    %v1561 = vpop.f32.mrb[0].mxu0
    %1562 = vmatprep.mubr.f32.mxu0 %v1403
    %1563 = vmatmul.mubr.f32.gmra.mrb[0].mxu0 %v1047
    %v1564 = vpop.f32.mrb[0].mxu0
    %v1565 = vpop.f32.mrb[0].mxu0
    %1566 = vmatprep.mubr.f32.mxu0 %v1405
    %1567 = vmatmul.mubr.f32.gmra.mrb[0].mxu0 %v1051
    %v1568 = vpop.f32.mrb[0].mxu0
    %v1569 = vadd.f32 %v1486, %v1568
    %v1570 = vpop.f32.mrb[0].mxu0
    %1571 = vmatprep.mubr.f32.mxu0 %v1408
    %1572 = vmatmul.mubr.f32.gmra.mrb[0].mxu0 %v1055
    %v1573 = vpop.f32.mrb[0].mxu0
    %v1574 = vpop.f32.mrb[0].mxu0
    %1575 = vdwg.mxu0
    %v1576 = vld [vmem:[#allocation2] sm:$0xfc]
    %v1577 = vld [vmem:[#allocation2 + $0x8] sm:$0xfc]
    %v1578 = vld [vmem:[#allocation2 + $0x10] sm:$0xfc]
    %v1579 = vld [vmem:[#allocation2 + $0x18] sm:$0xfc]
    %v1580 = vld [vmem:[#allocation2 + $0x60] sm:$0x7]
    %v1581 = vld [vmem:[#allocation2 + $0x68] sm:$0x7]
    %v1582 = vld [vmem:[#allocation2 + $0x70] sm:$0x7]
    %v1583 = vld [vmem:[#allocation2 + $0x78] sm:$0x7]
    %v1584 = vld [vmem:[%s3 + $0x340] sm:$0xff]
    %v1585 = vld [vmem:[%s3 + $0x348] sm:$0xff]
    %v1586 = vld [vmem:[%s3 + $0x350] sm:$0xff]
    %v1587 = vld [vmem:[%s3 + $0x358] sm:$0xff]
    %v1588 = vld [vmem:[%s3 + $0x360] sm:$0xff]
    %v1589 = vld [vmem:[%s3 + $0x368] sm:$0xff]
    %v1590 = vld [vmem:[%s3 + $0x370] sm:$0xff]
    %v1591 = vld [vmem:[%s3 + $0x378] sm:$0xff]
    %v1592 = vld [vmem:[%s3 + $0x380] sm:$0xff]
    %v1593 = vld [vmem:[%s3 + $0x388] sm:$0xff]
    %v1594 = vld [vmem:[%s3 + $0x390] sm:$0xff]
    %v1595 = vld [vmem:[%s3 + $0x398] sm:$0xff]
    %v1596 = vld [vmem:[%s3 + $0x3a0] sm:$0xff]
    %v1597 = vld [vmem:[%s3 + $0x3a8] sm:$0xff]
    %v1598 = vld [vmem:[%s3 + $0x3b0] sm:$0xff]
    %v1599 = vld [vmem:[%s3 + $0x3b8] sm:$0xff]
    %v1600 = vld [vmem:[%s3 + $0x3c0] sm:$0xff]
    %v1601 = vld [vmem:[%s3 + $0x3c8] sm:$0xff]
    %v1602 = vld [vmem:[%s3 + $0x3d0] sm:$0xff]
    %v1603 = vld [vmem:[%s3 + $0x3d8] sm:$0xff]
    %v1604 = vld [vmem:[%s3 + $0x3e0] sm:$0xff]
    %v1605 = vld [vmem:[%s3 + $0x3e8] sm:$0xff]
    %v1606 = vld [vmem:[%s3 + $0x3f0] sm:$0xff]
    %v1607 = vld [vmem:[%s3 + $0x3f8] sm:$0xff]
    %v1608 = vld [vmem:[%s3 + $0x400] sm:$0xff]
    %v1609 = vld [vmem:[%s3 + $0x408] sm:$0xff]
    %v1610 = vld [vmem:[%s3 + $0x410] sm:$0xff]
    %v1611 = vld [vmem:[%s3 + $0x418] sm:$0xff]
    %v1612 = vld [vmem:[%s3 + $0x420] sm:$0xff]
    %v1613 = vld [vmem:[%s3 + $0x428] sm:$0xff]
    %v1614 = vld [vmem:[%s3 + $0x430] sm:$0xff]
    %v1615 = vld [vmem:[%s3 + $0x438] sm:$0xff]
    %v1616 = vld [vmem:[%s3 + $0x440] sm:$0xff]
    %v1617 = vld [vmem:[%s3 + $0x448] sm:$0xff]
    %v1618 = vld [vmem:[%s3 + $0x450] sm:$0xff]
    %v1619 = vld [vmem:[%s3 + $0x458] sm:$0xff]
    %v1620 = vld [vmem:[%s3 + $0x460] sm:$0xff]
    %v1621 = vld [vmem:[%s3 + $0x468] sm:$0xff]
    %v1622 = vld [vmem:[%s3 + $0x470] sm:$0xff]
    %v1623 = vld [vmem:[%s3 + $0x478] sm:$0xff]
    %v1624 = vld [vmem:[%s3 + $0x480] sm:$0xff]
    %v1625 = vld [vmem:[%s3 + $0x488] sm:$0xff]
    %v1626 = vld [vmem:[%s3 + $0x490] sm:$0xff]
    %v1627 = vld [vmem:[%s3 + $0x498] sm:$0xff]
    %v1628 = vld [vmem:[%s3 + $0x4a0] sm:$0xff]
    %v1629 = vld [vmem:[%s3 + $0x4a8] sm:$0xff]
    %v1630 = vld [vmem:[%s3 + $0x4b0] sm:$0xff]
    %v1631 = vld [vmem:[%s3 + $0x4b8] sm:$0xff]
    %v1632 = vld [vmem:[%s3 + $0x4c0] sm:$0xff]
    %v1633 = vld [vmem:[%s3 + $0x4c8] sm:$0xff]
    %v1634 = vld [vmem:[%s3 + $0x4d0] sm:$0xff]
    %v1635 = vld [vmem:[%s3 + $0x4d8] sm:$0xff]
    %vm1644 = vcmask 1045504
    %v1645 = vrot.slane %v1576, 2
    %v1646 = vrot.slane %v1045, 2
    %v1647 = vsel %vm1644, %v1645, %v1646
    %v1648 = vrot.slane %v1577, 2
    %v1649 = vrot.slane %v1046, 2
    %v1650 = vsel %vm1644, %v1648, %v1649
    %v1651 = vrot.slane %v1578, 2
    %v1652 = vrot.slane %v1047, 2
    %v1653 = vsel %vm1644, %v1651, %v1652
    %v1654 = vrot.slane %v1579, 2
    %v1655 = vrot.slane %v1048, 2
    %v1656 = vsel %vm1644, %v1654, %v1655
    %v1657 = vrot.slane %v1049, 2
    %v1658 = vsel %vm1644, %v1646, %v1657
    %v1659 = vrot.slane %v1050, 2
    %v1660 = vsel %vm1644, %v1649, %v1659
    %v1661 = vrot.slane %v1051, 2
    %v1662 = vsel %vm1644, %v1652, %v1661
    %v1663 = vrot.slane %v1052, 2
    %v1664 = vsel %vm1644, %v1655, %v1663
    %v1665 = vrot.slane %v1580, 2
    %v1666 = vsel %vm1644, %v1657, %v1665
    %v1667 = vrot.slane %v1581, 2
    %v1668 = vsel %vm1644, %v1659, %v1667
    %v1669 = vrot.slane %v1582, 2
    %v1670 = vsel %vm1644, %v1661, %v1669
    %v1671 = vrot.slane %v1583, 2
    %v1672 = vsel %vm1644, %v1663, %v1671
    %v1685 = vsel %vm1027, %v1656, 0
    %v1687 = vsel %vm1027, %v1664, 0
    %v1689 = vsel %vm1027, %v1672, 0
    %v1691 = vsel %vm1027, %v1671, 0
    %1693 = vmatprep.subr.mxu0 0.0
    %1694 = vmatpush1.msra.mxu0 %v1584
    %1695 = vmatprep.subr.mxu0 0.0
    %1696 = vmatpush1.msra.mxu0 %v1585
    %1697 = vmatprep.subr.mxu0 0.0
    %1698 = vmatpush1.msra.mxu0 %v1586
    %1699 = vmatprep.subr.mxu0 0.0
    %1700 = vmatpush1.msra.mxu0 %v1587
    %1701 = vmatprep.subr.mxu0 0.0
    %1702 = vmatpush1.msra.mxu0 %v1588
    %1703 = vmatprep.subr.mxu0 0.0
    %1704 = vmatpush1.msra.mxu0 %v1589
    %1705 = vmatprep.subr.mxu0 0.0
    %1706 = vmatpush1.msra.mxu0 %v1590
    %1707 = vmatprep.subr.mxu0 0.0
    %1708 = vmatpush1.msra.mxu0 %v1591
    %1709 = vmatprep.subr.mxu0 0.0
    %1710 = vmatpush1.msra.mxu0 %v1592
    %1711 = vmatprep.subr.mxu0 0.0
    %1712 = vmatpush1.msra.mxu0 %v1593
    %1713 = vmatprep.subr.mxu0 0.0
    %1714 = vmatpush1.msra.mxu0 %v1594
    %1715 = vmatprep.subr.mxu0 0.0
    %1716 = vmatpush1.msra.mxu0 %v1595
    %1717 = vmatprep.subr.mxu0 0.0
    %1718 = vmatpush1.msra.mxu0 %v1596
    %1719 = vmatprep.subr.mxu0 0.0
    %1720 = vmatpush1.msra.mxu0 %v1597
    %1721 = vmatprep.subr.mxu0 0.0
    %1722 = vmatpush1.msra.mxu0 %v1598
    %1723 = vmatprep.subr.mxu0 0.0
    %1724 = vmatpush1.msra.mxu0 %v1599
    %1725 = vmatprep.subr.mxu0 0.0
    %1726 = vmatpush1.msra.mxu0 %v1600
    %1727 = vmatprep.subr.mxu0 0.0
    %1728 = vmatpush1.msra.mxu0 %v1601
    %1729 = vmatprep.subr.mxu0 0.0
    %1730 = vmatpush1.msra.mxu0 %v1602
    %1731 = vmatprep.subr.mxu0 0.0
    %1732 = vmatpush1.msra.mxu0 %v1603
    %1733 = vmatprep.subr.mxu0 0.0
    %1734 = vmatpush1.msra.mxu0 %v1604
    %1735 = vmatprep.subr.mxu0 0.0
    %1736 = vmatpush1.msra.mxu0 %v1605
    %1737 = vmatprep.subr.mxu0 0.0
    %1738 = vmatpush1.msra.mxu0 %v1606
    %1739 = vmatprep.subr.mxu0 0.0
    %1740 = vmatpush1.msra.mxu0 %v1607
    %1741 = vmatprep.subr.mxu0 0.0
    %1742 = vmatpush1.msra.mxu0 %v1608
    %1743 = vmatprep.subr.mxu0 0.0
    %1744 = vmatpush1.msra.mxu0 %v1609
    %1745 = vmatprep.subr.mxu0 0.0
    %1746 = vmatpush1.msra.mxu0 %v1610
    %1747 = vmatprep.subr.mxu0 0.0
    %1748 = vmatpush1.msra.mxu0 %v1611
    %1749 = vmatprep.subr.mxu0 0.0
    %1750 = vmatpush1.msra.mxu0 %v1612
    %1751 = vmatprep.subr.mxu0 0.0
    %1752 = vmatpush1.msra.mxu0 %v1613
    %1753 = vmatprep.subr.mxu0 0.0
    %1754 = vmatpush1.msra.mxu0 %v1614
    %1755 = vmatprep.subr.mxu0 0.0
    %1756 = vmatpush1.msra.mxu0 %v1615
    %1757 = vmatprep.mubr.f32.mxu0 %v1650
    %1758 = vmatmul.mubr.f32.gmra.mrb[0].mxu0 %v1647
    %v1759 = vpop.f32.mrb[0].mxu0
    %v1760 = vadd.f32 0.0, %v1759
    %v1761 = vpop.f32.mrb[0].mxu0
    %1762 = vmatprep.mubr.f32.mxu0 %v1660
    %1763 = vmatmul.mubr.f32.gmra.mrb[0].mxu0 %v1658
    %v1764 = vpop.f32.mrb[0].mxu0
    %v1765 = vpop.f32.mrb[0].mxu0
    %1766 = vmatprep.mubr.f32.mxu0 %v1668
    %1767 = vmatmul.mubr.f32.gmra.mrb[0].mxu0 %v1666
    %v1768 = vpop.f32.mrb[0].mxu0
    %v1769 = vadd.f32 0.0, %v1768
    %v1770 = vpop.f32.mrb[0].mxu0
    %1771 = vmatprep.mubr.f32.mxu0 %v1667
    %1772 = vmatmul.mubr.f32.gmra.mrb[0].mxu0 %v1665
    %v1773 = vpop.f32.mrb[0].mxu0
    %v1774 = vpop.f32.mrb[0].mxu0
    %1775 = vdwg.mxu0
    %1776 = vmatprep.subr.mxu0 0.0
    %1777 = vmatpush1.msra.mxu0 %v1616
    %1778 = vmatprep.subr.mxu0 0.0
    %1779 = vmatpush1.msra.mxu0 %v1617
    %1780 = vmatprep.subr.mxu0 0.0
    %1781 = vmatpush1.msra.mxu0 %v1618
    %1782 = vmatprep.subr.mxu0 0.0
    %1783 = vmatpush1.msra.mxu0 %v1619
    %1784 = vmatprep.subr.mxu0 0.0
    %1785 = vmatpush1.msra.mxu0 %v1620
    %1786 = vmatprep.subr.mxu0 0.0
    %1787 = vmatpush1.msra.mxu0 %v1621
    %1788 = vmatprep.subr.mxu0 0.0
    %1789 = vmatpush1.msra.mxu0 %v1622
    %1790 = vmatprep.subr.mxu0 0.0
    %1791 = vmatpush1.msra.mxu0 %v1623
    %1792 = vmatprep.subr.mxu0 0.0
    %1793 = vmatpush1.msra.mxu0 %v1624
    %1794 = vmatprep.subr.mxu0 0.0
    %1795 = vmatpush1.msra.mxu0 %v1625
    %1796 = vmatprep.subr.mxu0 0.0
    %1797 = vmatpush1.msra.mxu0 %v1626
    %1798 = vmatprep.subr.mxu0 0.0
    %1799 = vmatpush1.msra.mxu0 %v1627
    %1800 = vmatprep.subr.mxu0 0.0
    %1801 = vmatpush1.msra.mxu0 %v1628
    %1802 = vmatprep.subr.mxu0 0.0
    %1803 = vmatpush1.msra.mxu0 %v1629
    %1804 = vmatprep.subr.mxu0 0.0
    %1805 = vmatpush1.msra.mxu0 %v1630
    %1806 = vmatprep.subr.mxu0 0.0
    %1807 = vmatpush1.msra.mxu0 %v1631
    %1808 = vmatprep.subr.mxu0 0.0
    %1809 = vmatpush1.msra.mxu0 %v1632
    %1810 = vmatprep.subr.mxu0 0.0
    %1811 = vmatpush1.msra.mxu0 %v1633
    %1812 = vmatprep.subr.mxu0 0.0
    %1813 = vmatpush1.msra.mxu0 %v1634
    %1814 = vmatprep.subr.mxu0 0.0
    %1815 = vmatpush1.msra.mxu0 %v1635
    %1816 = vmatprep.subr.mxu0 0.0
    %1817 = vmatpush1.msra.mxu0 0.0
    %1818 = vmatprep.subr.mxu0 0.0
    %1819 = vmatpush1.msra.mxu0 0.0
    %1820 = vmatprep.subr.mxu0 0.0
    %1821 = vmatpush1.msra.mxu0 0.0
    %1822 = vmatprep.subr.mxu0 0.0
    %1823 = vmatpush1.msra.mxu0 0.0
    %1824 = vmatprep.subr.mxu0 0.0
    %1825 = vmatpush1.msra.mxu0 0.0
    %1826 = vmatprep.subr.mxu0 0.0
    %1827 = vmatpush1.msra.mxu0 0.0
    %1828 = vmatprep.subr.mxu0 0.0
    %1829 = vmatpush1.msra.mxu0 0.0
    %1830 = vmatprep.subr.mxu0 0.0
    %1831 = vmatpush1.msra.mxu0 0.0
    %1832 = vmatprep.subr.mxu0 0.0
    %1833 = vmatpush1.msra.mxu0 0.0
    %1834 = vmatprep.subr.mxu0 0.0
    %1835 = vmatpush1.msra.mxu0 0.0
    %1836 = vmatprep.subr.mxu0 0.0
    %1837 = vmatpush1.msra.mxu0 0.0
    %1838 = vmatprep.subr.mxu0 0.0
    %1839 = vmatpush1.msra.mxu0 0.0
    %1840 = vmatprep.mubr.f32.mxu0 %v1685
    %1841 = vmatmul.mubr.f32.gmra.mrb[0].mxu0 %v1653
    %v1842 = vpop.f32.mrb[0].mxu0
    %v1843 = vadd.f32 %v1760, %v1842
    %v1844 = vpop.f32.mrb[0].mxu0
    %1845 = vmatprep.mubr.f32.mxu0 %v1687
    %1846 = vmatmul.mubr.f32.gmra.mrb[0].mxu0 %v1662
    %v1847 = vpop.f32.mrb[0].mxu0
    %v1848 = vpop.f32.mrb[0].mxu0
    %1849 = vmatprep.mubr.f32.mxu0 %v1689
    %1850 = vmatmul.mubr.f32.gmra.mrb[0].mxu0 %v1670
    %v1851 = vpop.f32.mrb[0].mxu0
    %v1852 = vadd.f32 %v1769, %v1851
    %v1853 = vpop.f32.mrb[0].mxu0
    %1854 = vmatprep.mubr.f32.mxu0 %v1691
    %1855 = vmatmul.mubr.f32.gmra.mrb[0].mxu0 %v1669
    %v1856 = vpop.f32.mrb[0].mxu0
    %v1857 = vpop.f32.mrb[0].mxu0
    %1858 = vdwg.mxu0
    %v1859 = vadd.f32 %v1560, %v1843
    %v1860 = vadd.f32 %v1569, %v1852
    %v1861 = vld [vmem:[#allocation2] sm:$0xf8]
    %v1862 = vld [vmem:[#allocation2 + $0x8] sm:$0xf8]
    %v1863 = vld [vmem:[#allocation2 + $0x10] sm:$0xf8]
    %v1864 = vld [vmem:[#allocation2 + $0x18] sm:$0xf8]
    %v1865 = vld [vmem:[#allocation2 + $0x60] sm:$0xf]
    %v1866 = vld [vmem:[#allocation2 + $0x68] sm:$0xf]
    %v1867 = vld [vmem:[#allocation2 + $0x70] sm:$0xf]
    %v1868 = vld [vmem:[#allocation2 + $0x78] sm:$0xf]
    %v1869 = vld [vmem:[%s3 + $0x4e0] sm:$0xff]
    %v1870 = vld [vmem:[%s3 + $0x4e8] sm:$0xff]
    %v1871 = vld [vmem:[%s3 + $0x4f0] sm:$0xff]
    %v1872 = vld [vmem:[%s3 + $0x4f8] sm:$0xff]
    %v1873 = vld [vmem:[%s3 + $0x500] sm:$0xff]
    %v1874 = vld [vmem:[%s3 + $0x508] sm:$0xff]
    %v1875 = vld [vmem:[%s3 + $0x510] sm:$0xff]
    %v1876 = vld [vmem:[%s3 + $0x518] sm:$0xff]
    %v1877 = vld [vmem:[%s3 + $0x520] sm:$0xff]
    %v1878 = vld [vmem:[%s3 + $0x528] sm:$0xff]
    %v1879 = vld [vmem:[%s3 + $0x530] sm:$0xff]
    %v1880 = vld [vmem:[%s3 + $0x538] sm:$0xff]
    %v1881 = vld [vmem:[%s3 + $0x540] sm:$0xff]
    %v1882 = vld [vmem:[%s3 + $0x548] sm:$0xff]
    %v1883 = vld [vmem:[%s3 + $0x550] sm:$0xff]
    %v1884 = vld [vmem:[%s3 + $0x558] sm:$0xff]
    %v1885 = vld [vmem:[%s3 + $0x560] sm:$0xff]
    %v1886 = vld [vmem:[%s3 + $0x568] sm:$0xff]
    %v1887 = vld [vmem:[%s3 + $0x570] sm:$0xff]
    %v1888 = vld [vmem:[%s3 + $0x578] sm:$0xff]
    %v1889 = vld [vmem:[%s3 + $0x580] sm:$0xff]
    %v1890 = vld [vmem:[%s3 + $0x588] sm:$0xff]
    %v1891 = vld [vmem:[%s3 + $0x590] sm:$0xff]
    %v1892 = vld [vmem:[%s3 + $0x598] sm:$0xff]
    %v1893 = vld [vmem:[%s3 + $0x5a0] sm:$0xff]
    %v1894 = vld [vmem:[%s3 + $0x5a8] sm:$0xff]
    %v1895 = vld [vmem:[%s3 + $0x5b0] sm:$0xff]
    %v1896 = vld [vmem:[%s3 + $0x5b8] sm:$0xff]
    %v1897 = vld [vmem:[%s3 + $0x5c0] sm:$0xff]
    %v1898 = vld [vmem:[%s3 + $0x5c8] sm:$0xff]
    %v1899 = vld [vmem:[%s3 + $0x5d0] sm:$0xff]
    %v1900 = vld [vmem:[%s3 + $0x5d8] sm:$0xff]
    %v1901 = vld [vmem:[%s3 + $0x5e0] sm:$0xff]
    %v1902 = vld [vmem:[%s3 + $0x5e8] sm:$0xff]
    %v1903 = vld [vmem:[%s3 + $0x5f0] sm:$0xff]
    %v1904 = vld [vmem:[%s3 + $0x5f8] sm:$0xff]
    %v1905 = vld [vmem:[%s3 + $0x600] sm:$0xff]
    %v1906 = vld [vmem:[%s3 + $0x608] sm:$0xff]
    %v1907 = vld [vmem:[%s3 + $0x610] sm:$0xff]
    %v1908 = vld [vmem:[%s3 + $0x618] sm:$0xff]
    %v1909 = vld [vmem:[%s3 + $0x620] sm:$0xff]
    %v1910 = vld [vmem:[%s3 + $0x628] sm:$0xff]
    %v1911 = vld [vmem:[%s3 + $0x630] sm:$0xff]
    %v1912 = vld [vmem:[%s3 + $0x638] sm:$0xff]
    %v1913 = vld [vmem:[%s3 + $0x640] sm:$0xff]
    %v1914 = vld [vmem:[%s3 + $0x648] sm:$0xff]
    %v1915 = vld [vmem:[%s3 + $0x650] sm:$0xff]
    %v1916 = vld [vmem:[%s3 + $0x658] sm:$0xff]
    %v1917 = vld [vmem:[%s3 + $0x660] sm:$0xff]
    %v1918 = vld [vmem:[%s3 + $0x668] sm:$0xff]
    %v1919 = vld [vmem:[%s3 + $0x670] sm:$0xff]
    %v1920 = vld [vmem:[%s3 + $0x678] sm:$0xff]
    %vm1929 = vcmask 1044480
    %v1930 = vrot.slane %v1861, 3
    %v1931 = vrot.slane %v1045, 3
    %v1932 = vsel %vm1929, %v1930, %v1931
    %v1933 = vrot.slane %v1862, 3
    %v1934 = vrot.slane %v1046, 3
    %v1935 = vsel %vm1929, %v1933, %v1934
    %v1936 = vrot.slane %v1863, 3
    %v1937 = vrot.slane %v1047, 3
    %v1938 = vsel %vm1929, %v1936, %v1937
    %v1939 = vrot.slane %v1864, 3
    %v1940 = vrot.slane %v1048, 3
    %v1941 = vsel %vm1929, %v1939, %v1940
    %v1942 = vrot.slane %v1049, 3
    %v1943 = vsel %vm1929, %v1931, %v1942
    %v1944 = vrot.slane %v1050, 3
    %v1945 = vsel %vm1929, %v1934, %v1944
    %v1946 = vrot.slane %v1051, 3
    %v1947 = vsel %vm1929, %v1937, %v1946
    %v1948 = vrot.slane %v1052, 3
    %v1949 = vsel %vm1929, %v1940, %v1948
    %v1950 = vrot.slane %v1865, 3
    %v1951 = vsel %vm1929, %v1942, %v1950
    %v1952 = vrot.slane %v1866, 3
    %v1953 = vsel %vm1929, %v1944, %v1952
    %v1954 = vrot.slane %v1867, 3
    %v1955 = vsel %vm1929, %v1946, %v1954
    %v1956 = vrot.slane %v1868, 3
    %v1957 = vsel %vm1929, %v1948, %v1956
    %v1970 = vsel %vm1027, %v1941, 0
    %v1972 = vsel %vm1027, %v1949, 0
    %v1974 = vsel %vm1027, %v1957, 0
    %v1976 = vsel %vm1027, %v1956, 0
    %1978 = vmatprep.subr.mxu0 0.0
    %1979 = vmatpush1.msra.mxu0 %v1869
    %1980 = vmatprep.subr.mxu0 0.0
    %1981 = vmatpush1.msra.mxu0 %v1870
    %1982 = vmatprep.subr.mxu0 0.0
    %1983 = vmatpush1.msra.mxu0 %v1871
    %1984 = vmatprep.subr.mxu0 0.0
    %1985 = vmatpush1.msra.mxu0 %v1872
    %1986 = vmatprep.subr.mxu0 0.0
    %1987 = vmatpush1.msra.mxu0 %v1873
    %1988 = vmatprep.subr.mxu0 0.0
    %1989 = vmatpush1.msra.mxu0 %v1874
    %1990 = vmatprep.subr.mxu0 0.0
    %1991 = vmatpush1.msra.mxu0 %v1875
    %1992 = vmatprep.subr.mxu0 0.0
    %1993 = vmatpush1.msra.mxu0 %v1876
    %1994 = vmatprep.subr.mxu0 0.0
    %1995 = vmatpush1.msra.mxu0 %v1877
    %1996 = vmatprep.subr.mxu0 0.0
    %1997 = vmatpush1.msra.mxu0 %v1878
    %1998 = vmatprep.subr.mxu0 0.0
    %1999 = vmatpush1.msra.mxu0 %v1879
    %2000 = vmatprep.subr.mxu0 0.0
    %2001 = vmatpush1.msra.mxu0 %v1880
    %2002 = vmatprep.subr.mxu0 0.0
    %2003 = vmatpush1.msra.mxu0 %v1881
    %2004 = vmatprep.subr.mxu0 0.0
    %2005 = vmatpush1.msra.mxu0 %v1882
    %2006 = vmatprep.subr.mxu0 0.0
    %2007 = vmatpush1.msra.mxu0 %v1883
    %2008 = vmatprep.subr.mxu0 0.0
    %2009 = vmatpush1.msra.mxu0 %v1884
    %2010 = vmatprep.subr.mxu0 0.0
    %2011 = vmatpush1.msra.mxu0 %v1885
    %2012 = vmatprep.subr.mxu0 0.0
    %2013 = vmatpush1.msra.mxu0 %v1886
    %2014 = vmatprep.subr.mxu0 0.0
    %2015 = vmatpush1.msra.mxu0 %v1887
    %2016 = vmatprep.subr.mxu0 0.0
    %2017 = vmatpush1.msra.mxu0 %v1888
    %2018 = vmatprep.subr.mxu0 0.0
    %2019 = vmatpush1.msra.mxu0 %v1889
    %2020 = vmatprep.subr.mxu0 0.0
    %2021 = vmatpush1.msra.mxu0 %v1890
    %2022 = vmatprep.subr.mxu0 0.0
    %2023 = vmatpush1.msra.mxu0 %v1891
    %2024 = vmatprep.subr.mxu0 0.0
    %2025 = vmatpush1.msra.mxu0 %v1892
    %2026 = vmatprep.subr.mxu0 0.0
    %2027 = vmatpush1.msra.mxu0 %v1893
    %2028 = vmatprep.subr.mxu0 0.0
    %2029 = vmatpush1.msra.mxu0 %v1894
    %2030 = vmatprep.subr.mxu0 0.0
    %2031 = vmatpush1.msra.mxu0 %v1895
    %2032 = vmatprep.subr.mxu0 0.0
    %2033 = vmatpush1.msra.mxu0 %v1896
    %2034 = vmatprep.subr.mxu0 0.0
    %2035 = vmatpush1.msra.mxu0 %v1897
    %2036 = vmatprep.subr.mxu0 0.0
    %2037 = vmatpush1.msra.mxu0 %v1898
    %2038 = vmatprep.subr.mxu0 0.0
    %2039 = vmatpush1.msra.mxu0 %v1899
    %2040 = vmatprep.subr.mxu0 0.0
    %2041 = vmatpush1.msra.mxu0 %v1900
    %2042 = vmatprep.mubr.f32.mxu0 %v1935
    %2043 = vmatmul.mubr.f32.gmra.mrb[0].mxu0 %v1932
    %v2044 = vpop.f32.mrb[0].mxu0
    %v2045 = vadd.f32 0.0, %v2044
    %v2046 = vpop.f32.mrb[0].mxu0
    %2047 = vmatprep.mubr.f32.mxu0 %v1945
    %2048 = vmatmul.mubr.f32.gmra.mrb[0].mxu0 %v1943
    %v2049 = vpop.f32.mrb[0].mxu0
    %v2050 = vpop.f32.mrb[0].mxu0
    %2051 = vmatprep.mubr.f32.mxu0 %v1953
    %2052 = vmatmul.mubr.f32.gmra.mrb[0].mxu0 %v1951
    %v2053 = vpop.f32.mrb[0].mxu0
    %v2054 = vadd.f32 0.0, %v2053
    %v2055 = vpop.f32.mrb[0].mxu0
    %2056 = vmatprep.mubr.f32.mxu0 %v1952
    %2057 = vmatmul.mubr.f32.gmra.mrb[0].mxu0 %v1950
    %v2058 = vpop.f32.mrb[0].mxu0
    %v2059 = vpop.f32.mrb[0].mxu0
    %2060 = vdwg.mxu0
    %2061 = vmatprep.subr.mxu0 0.0
    %2062 = vmatpush1.msra.mxu0 %v1901
    %2063 = vmatprep.subr.mxu0 0.0
    %2064 = vmatpush1.msra.mxu0 %v1902
    %2065 = vmatprep.subr.mxu0 0.0
    %2066 = vmatpush1.msra.mxu0 %v1903
    %2067 = vmatprep.subr.mxu0 0.0
    %2068 = vmatpush1.msra.mxu0 %v1904
    %2069 = vmatprep.subr.mxu0 0.0
    %2070 = vmatpush1.msra.mxu0 %v1905
    %2071 = vmatprep.subr.mxu0 0.0
    %2072 = vmatpush1.msra.mxu0 %v1906
    %2073 = vmatprep.subr.mxu0 0.0
    %2074 = vmatpush1.msra.mxu0 %v1907
    %2075 = vmatprep.subr.mxu0 0.0
    %2076 = vmatpush1.msra.mxu0 %v1908
    %2077 = vmatprep.subr.mxu0 0.0
    %2078 = vmatpush1.msra.mxu0 %v1909
    %2079 = vmatprep.subr.mxu0 0.0
    %2080 = vmatpush1.msra.mxu0 %v1910
    %2081 = vmatprep.subr.mxu0 0.0
    %2082 = vmatpush1.msra.mxu0 %v1911
    %2083 = vmatprep.subr.mxu0 0.0
    %2084 = vmatpush1.msra.mxu0 %v1912
    %2085 = vmatprep.subr.mxu0 0.0
    %2086 = vmatpush1.msra.mxu0 %v1913
    %2087 = vmatprep.subr.mxu0 0.0
    %2088 = vmatpush1.msra.mxu0 %v1914
    %2089 = vmatprep.subr.mxu0 0.0
    %2090 = vmatpush1.msra.mxu0 %v1915
    %2091 = vmatprep.subr.mxu0 0.0
    %2092 = vmatpush1.msra.mxu0 %v1916
    %2093 = vmatprep.subr.mxu0 0.0
    %2094 = vmatpush1.msra.mxu0 %v1917
    %2095 = vmatprep.subr.mxu0 0.0
    %2096 = vmatpush1.msra.mxu0 %v1918
    %2097 = vmatprep.subr.mxu0 0.0
    %2098 = vmatpush1.msra.mxu0 %v1919
    %2099 = vmatprep.subr.mxu0 0.0
    %2100 = vmatpush1.msra.mxu0 %v1920
    %2101 = vmatprep.subr.mxu0 0.0
    %2102 = vmatpush1.msra.mxu0 0.0
    %2103 = vmatprep.subr.mxu0 0.0
    %2104 = vmatpush1.msra.mxu0 0.0
    %2105 = vmatprep.subr.mxu0 0.0
    %2106 = vmatpush1.msra.mxu0 0.0
    %2107 = vmatprep.subr.mxu0 0.0
    %2108 = vmatpush1.msra.mxu0 0.0
    %2109 = vmatprep.subr.mxu0 0.0
    %2110 = vmatpush1.msra.mxu0 0.0
    %2111 = vmatprep.subr.mxu0 0.0
    %2112 = vmatpush1.msra.mxu0 0.0
    %2113 = vmatprep.subr.mxu0 0.0
    %2114 = vmatpush1.msra.mxu0 0.0
    %2115 = vmatprep.subr.mxu0 0.0
    %2116 = vmatpush1.msra.mxu0 0.0
    %2117 = vmatprep.subr.mxu0 0.0
    %2118 = vmatpush1.msra.mxu0 0.0
    %2119 = vmatprep.subr.mxu0 0.0
    %2120 = vmatpush1.msra.mxu0 0.0
    %2121 = vmatprep.subr.mxu0 0.0
    %2122 = vmatpush1.msra.mxu0 0.0
    %2123 = vmatprep.subr.mxu0 0.0
    %2124 = vmatpush1.msra.mxu0 0.0
    %2125 = vmatprep.mubr.f32.mxu0 %v1970
    %2126 = vmatmul.mubr.f32.gmra.mrb[0].mxu0 %v1938
    %v2127 = vpop.f32.mrb[0].mxu0
    %v2128 = vadd.f32 %v2045, %v2127
    %v2129 = vpop.f32.mrb[0].mxu0
    %2130 = vmatprep.mubr.f32.mxu0 %v1972
    %2131 = vmatmul.mubr.f32.gmra.mrb[0].mxu0 %v1947
    %v2132 = vpop.f32.mrb[0].mxu0
    %v2133 = vpop.f32.mrb[0].mxu0
    %2134 = vmatprep.mubr.f32.mxu0 %v1974
    %2135 = vmatmul.mubr.f32.gmra.mrb[0].mxu0 %v1955
    %v2136 = vpop.f32.mrb[0].mxu0
    %v2137 = vadd.f32 %v2054, %v2136
    %v2138 = vpop.f32.mrb[0].mxu0
    %2139 = vmatprep.mubr.f32.mxu0 %v1976
    %2140 = vmatmul.mubr.f32.gmra.mrb[0].mxu0 %v1954
    %v2141 = vpop.f32.mrb[0].mxu0
    %v2142 = vpop.f32.mrb[0].mxu0
    %2143 = vdwg.mxu0
    %v2144 = vadd.f32 %v1859, %v2128
    %v2145 = vadd.f32 %v1860, %v2137
    %v2146 = vld [vmem:[#allocation2] sm:$0xf0]
    %v2147 = vld [vmem:[#allocation2 + $0x8] sm:$0xf0]
    %v2148 = vld [vmem:[#allocation2 + $0x10] sm:$0xf0]
    %v2149 = vld [vmem:[#allocation2 + $0x18] sm:$0xf0]
    %v2150 = vld [vmem:[#allocation2 + $0x60] sm:$0x1f]
    %v2151 = vld [vmem:[#allocation2 + $0x68] sm:$0x1f]
    %v2152 = vld [vmem:[#allocation2 + $0x70] sm:$0x1f]
    %v2153 = vld [vmem:[#allocation2 + $0x78] sm:$0x1f]
    %v2154 = vld [vmem:[%s3 + $0x680] sm:$0xff]
    %v2155 = vld [vmem:[%s3 + $0x688] sm:$0xff]
    %v2156 = vld [vmem:[%s3 + $0x690] sm:$0xff]
    %v2157 = vld [vmem:[%s3 + $0x698] sm:$0xff]
    %v2158 = vld [vmem:[%s3 + $0x6a0] sm:$0xff]
    %v2159 = vld [vmem:[%s3 + $0x6a8] sm:$0xff]
    %v2160 = vld [vmem:[%s3 + $0x6b0] sm:$0xff]
    %v2161 = vld [vmem:[%s3 + $0x6b8] sm:$0xff]
    %v2162 = vld [vmem:[%s3 + $0x6c0] sm:$0xff]
    %v2163 = vld [vmem:[%s3 + $0x6c8] sm:$0xff]
    %v2164 = vld [vmem:[%s3 + $0x6d0] sm:$0xff]
    %v2165 = vld [vmem:[%s3 + $0x6d8] sm:$0xff]
    %v2166 = vld [vmem:[%s3 + $0x6e0] sm:$0xff]
    %v2167 = vld [vmem:[%s3 + $0x6e8] sm:$0xff]
    %v2168 = vld [vmem:[%s3 + $0x6f0] sm:$0xff]
    %v2169 = vld [vmem:[%s3 + $0x6f8] sm:$0xff]
    %v2170 = vld [vmem:[%s3 + $0x700] sm:$0xff]
    %v2171 = vld [vmem:[%s3 + $0x708] sm:$0xff]
    %v2172 = vld [vmem:[%s3 + $0x710] sm:$0xff]
    %v2173 = vld [vmem:[%s3 + $0x718] sm:$0xff]
    %v2174 = vld [vmem:[%s3 + $0x720] sm:$0xff]
    %v2175 = vld [vmem:[%s3 + $0x728] sm:$0xff]
    %v2176 = vld [vmem:[%s3 + $0x730] sm:$0xff]
    %v2177 = vld [vmem:[%s3 + $0x738] sm:$0xff]
    %v2178 = vld [vmem:[%s3 + $0x740] sm:$0xff]
    %v2179 = vld [vmem:[%s3 + $0x748] sm:$0xff]
    %v2180 = vld [vmem:[%s3 + $0x750] sm:$0xff]
    %v2181 = vld [vmem:[%s3 + $0x758] sm:$0xff]
    %v2182 = vld [vmem:[%s3 + $0x760] sm:$0xff]
    %v2183 = vld [vmem:[%s3 + $0x768] sm:$0xff]
    %v2184 = vld [vmem:[%s3 + $0x770] sm:$0xff]
    %v2185 = vld [vmem:[%s3 + $0x778] sm:$0xff]
    %v2186 = vld [vmem:[%s3 + $0x780] sm:$0xff]
    %v2187 = vld [vmem:[%s3 + $0x788] sm:$0xff]
    %v2188 = vld [vmem:[%s3 + $0x790] sm:$0xff]
    %v2189 = vld [vmem:[%s3 + $0x798] sm:$0xff]
    %v2190 = vld [vmem:[%s3 + $0x7a0] sm:$0xff]
    %v2191 = vld [vmem:[%s3 + $0x7a8] sm:$0xff]
    %v2192 = vld [vmem:[%s3 + $0x7b0] sm:$0xff]
    %v2193 = vld [vmem:[%s3 + $0x7b8] sm:$0xff]
    %v2194 = vld [vmem:[%s3 + $0x7c0] sm:$0xff]
    %v2195 = vld [vmem:[%s3 + $0x7c8] sm:$0xff]
    %v2196 = vld [vmem:[%s3 + $0x7d0] sm:$0xff]
    %v2197 = vld [vmem:[%s3 + $0x7d8] sm:$0xff]
    %v2198 = vld [vmem:[%s3 + $0x7e0] sm:$0xff]
    %v2199 = vld [vmem:[%s3 + $0x7e8] sm:$0xff]
    %v2200 = vld [vmem:[%s3 + $0x7f0] sm:$0xff]
    %v2201 = vld [vmem:[%s3 + $0x7f8] sm:$0xff]
    %v2202 = vld [vmem:[%s3 + $0x800] sm:$0xff]
    %v2203 = vld [vmem:[%s3 + $0x808] sm:$0xff]
    %v2204 = vld [vmem:[%s3 + $0x810] sm:$0xff]
    %v2205 = vld [vmem:[%s3 + $0x818] sm:$0xff]
    %vm2214 = vcmask 1043456
    %v2215 = vrot.slane %v2146, 4
    %v2216 = vrot.slane %v1045, 4
    %v2217 = vsel %vm2214, %v2215, %v2216
    %v2218 = vrot.slane %v2147, 4
    %v2219 = vrot.slane %v1046, 4
    %v2220 = vsel %vm2214, %v2218, %v2219
    %v2221 = vrot.slane %v2148, 4
    %v2222 = vrot.slane %v1047, 4
    %v2223 = vsel %vm2214, %v2221, %v2222
    %v2224 = vrot.slane %v2149, 4
    %v2225 = vrot.slane %v1048, 4
    %v2226 = vsel %vm2214, %v2224, %v2225
    %v2227 = vrot.slane %v1049, 4
    %v2228 = vsel %vm2214, %v2216, %v2227
    %v2229 = vrot.slane %v1050, 4
    %v2230 = vsel %vm2214, %v2219, %v2229
    %v2231 = vrot.slane %v1051, 4
    %v2232 = vsel %vm2214, %v2222, %v2231
    %v2233 = vrot.slane %v1052, 4
    %v2234 = vsel %vm2214, %v2225, %v2233
    %v2235 = vrot.slane %v2150, 4
    %v2236 = vsel %vm2214, %v2227, %v2235
    %v2237 = vrot.slane %v2151, 4
    %v2238 = vsel %vm2214, %v2229, %v2237
    %v2239 = vrot.slane %v2152, 4
    %v2240 = vsel %vm2214, %v2231, %v2239
    %v2241 = vrot.slane %v2153, 4
    %v2242 = vsel %vm2214, %v2233, %v2241
    %v2255 = vsel %vm1027, %v2226, 0
    %v2257 = vsel %vm1027, %v2234, 0
    %v2259 = vsel %vm1027, %v2242, 0
    %v2261 = vsel %vm1027, %v2241, 0
    %2263 = vmatprep.subr.mxu0 0.0
    %2264 = vmatpush1.msra.mxu0 %v2154
    %2265 = vmatprep.subr.mxu0 0.0
    %2266 = vmatpush1.msra.mxu0 %v2155
    %2267 = vmatprep.subr.mxu0 0.0
    %2268 = vmatpush1.msra.mxu0 %v2156
    %2269 = vmatprep.subr.mxu0 0.0
    %2270 = vmatpush1.msra.mxu0 %v2157
    %2271 = vmatprep.subr.mxu0 0.0
    %2272 = vmatpush1.msra.mxu0 %v2158
    %2273 = vmatprep.subr.mxu0 0.0
    %2274 = vmatpush1.msra.mxu0 %v2159
    %2275 = vmatprep.subr.mxu0 0.0
    %2276 = vmatpush1.msra.mxu0 %v2160
    %2277 = vmatprep.subr.mxu0 0.0
    %2278 = vmatpush1.msra.mxu0 %v2161
    %2279 = vmatprep.subr.mxu0 0.0
    %2280 = vmatpush1.msra.mxu0 %v2162
    %2281 = vmatprep.subr.mxu0 0.0
    %2282 = vmatpush1.msra.mxu0 %v2163
    %2283 = vmatprep.subr.mxu0 0.0
    %2284 = vmatpush1.msra.mxu0 %v2164
    %2285 = vmatprep.subr.mxu0 0.0
    %2286 = vmatpush1.msra.mxu0 %v2165
    %2287 = vmatprep.subr.mxu0 0.0
    %2288 = vmatpush1.msra.mxu0 %v2166
    %2289 = vmatprep.subr.mxu0 0.0
    %2290 = vmatpush1.msra.mxu0 %v2167
    %2291 = vmatprep.subr.mxu0 0.0
    %2292 = vmatpush1.msra.mxu0 %v2168
    %2293 = vmatprep.subr.mxu0 0.0
    %2294 = vmatpush1.msra.mxu0 %v2169
    %2295 = vmatprep.subr.mxu0 0.0
    %2296 = vmatpush1.msra.mxu0 %v2170
    %2297 = vmatprep.subr.mxu0 0.0
    %2298 = vmatpush1.msra.mxu0 %v2171
    %2299 = vmatprep.subr.mxu0 0.0
    %2300 = vmatpush1.msra.mxu0 %v2172
    %2301 = vmatprep.subr.mxu0 0.0
    %2302 = vmatpush1.msra.mxu0 %v2173
    %2303 = vmatprep.subr.mxu0 0.0
    %2304 = vmatpush1.msra.mxu0 %v2174
    %2305 = vmatprep.subr.mxu0 0.0
    %2306 = vmatpush1.msra.mxu0 %v2175
    %2307 = vmatprep.subr.mxu0 0.0
    %2308 = vmatpush1.msra.mxu0 %v2176
    %2309 = vmatprep.subr.mxu0 0.0
    %2310 = vmatpush1.msra.mxu0 %v2177
    %2311 = vmatprep.subr.mxu0 0.0
    %2312 = vmatpush1.msra.mxu0 %v2178
    %2313 = vmatprep.subr.mxu0 0.0
    %2314 = vmatpush1.msra.mxu0 %v2179
    %2315 = vmatprep.subr.mxu0 0.0
    %2316 = vmatpush1.msra.mxu0 %v2180
    %2317 = vmatprep.subr.mxu0 0.0
    %2318 = vmatpush1.msra.mxu0 %v2181
    %2319 = vmatprep.subr.mxu0 0.0
    %2320 = vmatpush1.msra.mxu0 %v2182
    %2321 = vmatprep.subr.mxu0 0.0
    %2322 = vmatpush1.msra.mxu0 %v2183
    %2323 = vmatprep.subr.mxu0 0.0
    %2324 = vmatpush1.msra.mxu0 %v2184
    %2325 = vmatprep.subr.mxu0 0.0
    %2326 = vmatpush1.msra.mxu0 %v2185
    %2327 = vmatprep.mubr.f32.mxu0 %v2220
    %2328 = vmatmul.mubr.f32.gmra.mrb[0].mxu0 %v2217
    %v2329 = vpop.f32.mrb[0].mxu0
    %v2330 = vadd.f32 0.0, %v2329
    %v2331 = vpop.f32.mrb[0].mxu0
    %2332 = vmatprep.mubr.f32.mxu0 %v2230
    %2333 = vmatmul.mubr.f32.gmra.mrb[0].mxu0 %v2228
    %v2334 = vpop.f32.mrb[0].mxu0
    %v2335 = vpop.f32.mrb[0].mxu0
    %2336 = vmatprep.mubr.f32.mxu0 %v2238
    %2337 = vmatmul.mubr.f32.gmra.mrb[0].mxu0 %v2236
    %v2338 = vpop.f32.mrb[0].mxu0
    %v2339 = vadd.f32 0.0, %v2338
    %v2340 = vpop.f32.mrb[0].mxu0
    %2341 = vmatprep.mubr.f32.mxu0 %v2237
    %2342 = vmatmul.mubr.f32.gmra.mrb[0].mxu0 %v2235
    %v2343 = vpop.f32.mrb[0].mxu0
    %v2344 = vpop.f32.mrb[0].mxu0
    %2345 = vdwg.mxu0
    %2346 = vmatprep.subr.mxu0 0.0
    %2347 = vmatpush1.msra.mxu0 %v2186
    %2348 = vmatprep.subr.mxu0 0.0
    %2349 = vmatpush1.msra.mxu0 %v2187
    %2350 = vmatprep.subr.mxu0 0.0
    %2351 = vmatpush1.msra.mxu0 %v2188
    %2352 = vmatprep.subr.mxu0 0.0
    %2353 = vmatpush1.msra.mxu0 %v2189
    %2354 = vmatprep.subr.mxu0 0.0
    %2355 = vmatpush1.msra.mxu0 %v2190
    %2356 = vmatprep.subr.mxu0 0.0
    %2357 = vmatpush1.msra.mxu0 %v2191
    %2358 = vmatprep.subr.mxu0 0.0
    %2359 = vmatpush1.msra.mxu0 %v2192
    %2360 = vmatprep.subr.mxu0 0.0
    %2361 = vmatpush1.msra.mxu0 %v2193
    %2362 = vmatprep.subr.mxu0 0.0
    %2363 = vmatpush1.msra.mxu0 %v2194
    %2364 = vmatprep.subr.mxu0 0.0
    %2365 = vmatpush1.msra.mxu0 %v2195
    %2366 = vmatprep.subr.mxu0 0.0
    %2367 = vmatpush1.msra.mxu0 %v2196
    %2368 = vmatprep.subr.mxu0 0.0
    %2369 = vmatpush1.msra.mxu0 %v2197
    %2370 = vmatprep.subr.mxu0 0.0
    %2371 = vmatpush1.msra.mxu0 %v2198
    %2372 = vmatprep.subr.mxu0 0.0
    %2373 = vmatpush1.msra.mxu0 %v2199
    %2374 = vmatprep.subr.mxu0 0.0
    %2375 = vmatpush1.msra.mxu0 %v2200
    %2376 = vmatprep.subr.mxu0 0.0
    %2377 = vmatpush1.msra.mxu0 %v2201
    %2378 = vmatprep.subr.mxu0 0.0
    %2379 = vmatpush1.msra.mxu0 %v2202
    %2380 = vmatprep.subr.mxu0 0.0
    %2381 = vmatpush1.msra.mxu0 %v2203
    %2382 = vmatprep.subr.mxu0 0.0
    %2383 = vmatpush1.msra.mxu0 %v2204
    %2384 = vmatprep.subr.mxu0 0.0
    %2385 = vmatpush1.msra.mxu0 %v2205
    %2386 = vmatprep.subr.mxu0 0.0
    %2387 = vmatpush1.msra.mxu0 0.0
    %2388 = vmatprep.subr.mxu0 0.0
    %2389 = vmatpush1.msra.mxu0 0.0
    %2390 = vmatprep.subr.mxu0 0.0
    %2391 = vmatpush1.msra.mxu0 0.0
    %2392 = vmatprep.subr.mxu0 0.0
    %2393 = vmatpush1.msra.mxu0 0.0
    %2394 = vmatprep.subr.mxu0 0.0
    %2395 = vmatpush1.msra.mxu0 0.0
    %2396 = vmatprep.subr.mxu0 0.0
    %2397 = vmatpush1.msra.mxu0 0.0
    %2398 = vmatprep.subr.mxu0 0.0
    %2399 = vmatpush1.msra.mxu0 0.0
    %2400 = vmatprep.subr.mxu0 0.0
    %2401 = vmatpush1.msra.mxu0 0.0
    %2402 = vmatprep.subr.mxu0 0.0
    %2403 = vmatpush1.msra.mxu0 0.0
    %2404 = vmatprep.subr.mxu0 0.0
    %2405 = vmatpush1.msra.mxu0 0.0
    %2406 = vmatprep.subr.mxu0 0.0
    %2407 = vmatpush1.msra.mxu0 0.0
    %2408 = vmatprep.subr.mxu0 0.0
    %2409 = vmatpush1.msra.mxu0 0.0
    %2410 = vmatprep.mubr.f32.mxu0 %v2255
    %2411 = vmatmul.mubr.f32.gmra.mrb[0].mxu0 %v2223
    %v2412 = vpop.f32.mrb[0].mxu0
    %v2413 = vadd.f32 %v2330, %v2412
    %v2414 = vpop.f32.mrb[0].mxu0
    %2415 = vmatprep.mubr.f32.mxu0 %v2257
    %2416 = vmatmul.mubr.f32.gmra.mrb[0].mxu0 %v2232
    %v2417 = vpop.f32.mrb[0].mxu0
    %v2418 = vpop.f32.mrb[0].mxu0
    %2419 = vmatprep.mubr.f32.mxu0 %v2259
    %2420 = vmatmul.mubr.f32.gmra.mrb[0].mxu0 %v2240
    %v2421 = vpop.f32.mrb[0].mxu0
    %v2422 = vadd.f32 %v2339, %v2421
    %v2423 = vpop.f32.mrb[0].mxu0
    %2424 = vmatprep.mubr.f32.mxu0 %v2261
    %2425 = vmatmul.mubr.f32.gmra.mrb[0].mxu0 %v2239
    %v2426 = vpop.f32.mrb[0].mxu0
    %v2427 = vpop.f32.mrb[0].mxu0
    %2428 = vdwg.mxu0
    %v2429 = vadd.f32 %v2144, %v2413
    %v2430 = vadd.f32 %v2145, %v2422
    %v2431 = vld [vmem:[#allocation2] sm:$0xe0]
    %v2432 = vld [vmem:[#allocation2 + $0x8] sm:$0xe0]
    %v2433 = vld [vmem:[#allocation2 + $0x10] sm:$0xe0]
    %v2434 = vld [vmem:[#allocation2 + $0x18] sm:$0xe0]
    %v2435 = vld [vmem:[#allocation2 + $0x60] sm:$0x3f]
    %v2436 = vld [vmem:[#allocation2 + $0x68] sm:$0x3f]
    %v2437 = vld [vmem:[#allocation2 + $0x70] sm:$0x3f]
    %v2438 = vld [vmem:[#allocation2 + $0x78] sm:$0x3f]
    %v2439 = vld [vmem:[%s3 + $0x820] sm:$0xff]
    %v2440 = vld [vmem:[%s3 + $0x828] sm:$0xff]
    %v2441 = vld [vmem:[%s3 + $0x830] sm:$0xff]
    %v2442 = vld [vmem:[%s3 + $0x838] sm:$0xff]
    %v2443 = vld [vmem:[%s3 + $0x840] sm:$0xff]
    %v2444 = vld [vmem:[%s3 + $0x848] sm:$0xff]
    %v2445 = vld [vmem:[%s3 + $0x850] sm:$0xff]
    %v2446 = vld [vmem:[%s3 + $0x858] sm:$0xff]
    %v2447 = vld [vmem:[%s3 + $0x860] sm:$0xff]
    %v2448 = vld [vmem:[%s3 + $0x868] sm:$0xff]
    %v2449 = vld [vmem:[%s3 + $0x870] sm:$0xff]
    %v2450 = vld [vmem:[%s3 + $0x878] sm:$0xff]
    %v2451 = vld [vmem:[%s3 + $0x880] sm:$0xff]
    %v2452 = vld [vmem:[%s3 + $0x888] sm:$0xff]
    %v2453 = vld [vmem:[%s3 + $0x890] sm:$0xff]
    %v2454 = vld [vmem:[%s3 + $0x898] sm:$0xff]
    %v2455 = vld [vmem:[%s3 + $0x8a0] sm:$0xff]
    %v2456 = vld [vmem:[%s3 + $0x8a8] sm:$0xff]
    %v2457 = vld [vmem:[%s3 + $0x8b0] sm:$0xff]
    %v2458 = vld [vmem:[%s3 + $0x8b8] sm:$0xff]
    %v2459 = vld [vmem:[%s3 + $0x8c0] sm:$0xff]
    %v2460 = vld [vmem:[%s3 + $0x8c8] sm:$0xff]
    %v2461 = vld [vmem:[%s3 + $0x8d0] sm:$0xff]
    %v2462 = vld [vmem:[%s3 + $0x8d8] sm:$0xff]
    %v2463 = vld [vmem:[%s3 + $0x8e0] sm:$0xff]
    %v2464 = vld [vmem:[%s3 + $0x8e8] sm:$0xff]
    %v2465 = vld [vmem:[%s3 + $0x8f0] sm:$0xff]
    %v2466 = vld [vmem:[%s3 + $0x8f8] sm:$0xff]
    %v2467 = vld [vmem:[%s3 + $0x900] sm:$0xff]
    %v2468 = vld [vmem:[%s3 + $0x908] sm:$0xff]
    %v2469 = vld [vmem:[%s3 + $0x910] sm:$0xff]
    %v2470 = vld [vmem:[%s3 + $0x918] sm:$0xff]
    %v2471 = vld [vmem:[%s3 + $0x920] sm:$0xff]
    %v2472 = vld [vmem:[%s3 + $0x928] sm:$0xff]
    %v2473 = vld [vmem:[%s3 + $0x930] sm:$0xff]
    %v2474 = vld [vmem:[%s3 + $0x938] sm:$0xff]
    %v2475 = vld [vmem:[%s3 + $0x940] sm:$0xff]
    %v2476 = vld [vmem:[%s3 + $0x948] sm:$0xff]
    %v2477 = vld [vmem:[%s3 + $0x950] sm:$0xff]
    %v2478 = vld [vmem:[%s3 + $0x958] sm:$0xff]
    %v2479 = vld [vmem:[%s3 + $0x960] sm:$0xff]
    %v2480 = vld [vmem:[%s3 + $0x968] sm:$0xff]
    %v2481 = vld [vmem:[%s3 + $0x970] sm:$0xff]
    %v2482 = vld [vmem:[%s3 + $0x978] sm:$0xff]
    %v2483 = vld [vmem:[%s3 + $0x980] sm:$0xff]
    %v2484 = vld [vmem:[%s3 + $0x988] sm:$0xff]
    %v2485 = vld [vmem:[%s3 + $0x990] sm:$0xff]
    %v2486 = vld [vmem:[%s3 + $0x998] sm:$0xff]
    %v2487 = vld [vmem:[%s3 + $0x9a0] sm:$0xff]
    %v2488 = vld [vmem:[%s3 + $0x9a8] sm:$0xff]
    %v2489 = vld [vmem:[%s3 + $0x9b0] sm:$0xff]
    %v2490 = vld [vmem:[%s3 + $0x9b8] sm:$0xff]
    %vm2499 = vcmask 1042432
    %v2500 = vrot.slane %v2431, 5
    %v2501 = vrot.slane %v1045, 5
    %v2502 = vsel %vm2499, %v2500, %v2501
    %v2503 = vrot.slane %v2432, 5
    %v2504 = vrot.slane %v1046, 5
    %v2505 = vsel %vm2499, %v2503, %v2504
    %v2506 = vrot.slane %v2433, 5
    %v2507 = vrot.slane %v1047, 5
    %v2508 = vsel %vm2499, %v2506, %v2507
    %v2509 = vrot.slane %v2434, 5
    %v2510 = vrot.slane %v1048, 5
    %v2511 = vsel %vm2499, %v2509, %v2510
    %v2512 = vrot.slane %v1049, 5
    %v2513 = vsel %vm2499, %v2501, %v2512
    %v2514 = vrot.slane %v1050, 5
    %v2515 = vsel %vm2499, %v2504, %v2514
    %v2516 = vrot.slane %v1051, 5
    %v2517 = vsel %vm2499, %v2507, %v2516
    %v2518 = vrot.slane %v1052, 5
    %v2519 = vsel %vm2499, %v2510, %v2518
    %v2520 = vrot.slane %v2435, 5
    %v2521 = vsel %vm2499, %v2512, %v2520
    %v2522 = vrot.slane %v2436, 5
    %v2523 = vsel %vm2499, %v2514, %v2522
    %v2524 = vrot.slane %v2437, 5
    %v2525 = vsel %vm2499, %v2516, %v2524
    %v2526 = vrot.slane %v2438, 5
    %v2527 = vsel %vm2499, %v2518, %v2526
    %v2540 = vsel %vm1027, %v2511, 0
    %v2542 = vsel %vm1027, %v2519, 0
    %v2544 = vsel %vm1027, %v2527, 0
    %v2546 = vsel %vm1027, %v2526, 0
    %2548 = vmatprep.subr.mxu0 0.0
    %2549 = vmatpush1.msra.mxu0 %v2439
    %2550 = vmatprep.subr.mxu0 0.0
    %2551 = vmatpush1.msra.mxu0 %v2440
    %2552 = vmatprep.subr.mxu0 0.0
    %2553 = vmatpush1.msra.mxu0 %v2441
    %2554 = vmatprep.subr.mxu0 0.0
    %2555 = vmatpush1.msra.mxu0 %v2442
    %2556 = vmatprep.subr.mxu0 0.0
    %2557 = vmatpush1.msra.mxu0 %v2443
    %2558 = vmatprep.subr.mxu0 0.0
    %2559 = vmatpush1.msra.mxu0 %v2444
    %2560 = vmatprep.subr.mxu0 0.0
    %2561 = vmatpush1.msra.mxu0 %v2445
    %2562 = vmatprep.subr.mxu0 0.0
    %2563 = vmatpush1.msra.mxu0 %v2446
    %2564 = vmatprep.subr.mxu0 0.0
    %2565 = vmatpush1.msra.mxu0 %v2447
    %2566 = vmatprep.subr.mxu0 0.0
    %2567 = vmatpush1.msra.mxu0 %v2448
    %2568 = vmatprep.subr.mxu0 0.0
    %2569 = vmatpush1.msra.mxu0 %v2449
    %2570 = vmatprep.subr.mxu0 0.0
    %2571 = vmatpush1.msra.mxu0 %v2450
    %2572 = vmatprep.subr.mxu0 0.0
    %2573 = vmatpush1.msra.mxu0 %v2451
    %2574 = vmatprep.subr.mxu0 0.0
    %2575 = vmatpush1.msra.mxu0 %v2452
    %2576 = vmatprep.subr.mxu0 0.0
    %2577 = vmatpush1.msra.mxu0 %v2453
    %2578 = vmatprep.subr.mxu0 0.0
    %2579 = vmatpush1.msra.mxu0 %v2454
    %2580 = vmatprep.subr.mxu0 0.0
    %2581 = vmatpush1.msra.mxu0 %v2455
    %2582 = vmatprep.subr.mxu0 0.0
    %2583 = vmatpush1.msra.mxu0 %v2456
    %2584 = vmatprep.subr.mxu0 0.0
    %2585 = vmatpush1.msra.mxu0 %v2457
    %2586 = vmatprep.subr.mxu0 0.0
    %2587 = vmatpush1.msra.mxu0 %v2458
    %2588 = vmatprep.subr.mxu0 0.0
    %2589 = vmatpush1.msra.mxu0 %v2459
    %2590 = vmatprep.subr.mxu0 0.0
    %2591 = vmatpush1.msra.mxu0 %v2460
    %2592 = vmatprep.subr.mxu0 0.0
    %2593 = vmatpush1.msra.mxu0 %v2461
    %2594 = vmatprep.subr.mxu0 0.0
    %2595 = vmatpush1.msra.mxu0 %v2462
    %2596 = vmatprep.subr.mxu0 0.0
    %2597 = vmatpush1.msra.mxu0 %v2463
    %2598 = vmatprep.subr.mxu0 0.0
    %2599 = vmatpush1.msra.mxu0 %v2464
    %2600 = vmatprep.subr.mxu0 0.0
    %2601 = vmatpush1.msra.mxu0 %v2465
    %2602 = vmatprep.subr.mxu0 0.0
    %2603 = vmatpush1.msra.mxu0 %v2466
    %2604 = vmatprep.subr.mxu0 0.0
    %2605 = vmatpush1.msra.mxu0 %v2467
    %2606 = vmatprep.subr.mxu0 0.0
    %2607 = vmatpush1.msra.mxu0 %v2468
    %2608 = vmatprep.subr.mxu0 0.0
    %2609 = vmatpush1.msra.mxu0 %v2469
    %2610 = vmatprep.subr.mxu0 0.0
    %2611 = vmatpush1.msra.mxu0 %v2470
    %2612 = vmatprep.mubr.f32.mxu0 %v2505
    %2613 = vmatmul.mubr.f32.gmra.mrb[0].mxu0 %v2502
    %v2614 = vpop.f32.mrb[0].mxu0
    %v2615 = vadd.f32 0.0, %v2614
    %v2616 = vpop.f32.mrb[0].mxu0
    %2617 = vmatprep.mubr.f32.mxu0 %v2515
    %2618 = vmatmul.mubr.f32.gmra.mrb[0].mxu0 %v2513
    %v2619 = vpop.f32.mrb[0].mxu0
    %v2620 = vpop.f32.mrb[0].mxu0
    %2621 = vmatprep.mubr.f32.mxu0 %v2523
    %2622 = vmatmul.mubr.f32.gmra.mrb[0].mxu0 %v2521
    %v2623 = vpop.f32.mrb[0].mxu0
    %v2624 = vadd.f32 0.0, %v2623
    %v2625 = vpop.f32.mrb[0].mxu0
    %2626 = vmatprep.mubr.f32.mxu0 %v2522
    %2627 = vmatmul.mubr.f32.gmra.mrb[0].mxu0 %v2520
    %v2628 = vpop.f32.mrb[0].mxu0
    %v2629 = vpop.f32.mrb[0].mxu0
    %2630 = vdwg.mxu0
    %2631 = vmatprep.subr.mxu0 0.0
    %2632 = vmatpush1.msra.mxu0 %v2471
    %2633 = vmatprep.subr.mxu0 0.0
    %2634 = vmatpush1.msra.mxu0 %v2472
    %2635 = vmatprep.subr.mxu0 0.0
    %2636 = vmatpush1.msra.mxu0 %v2473
    %2637 = vmatprep.subr.mxu0 0.0
    %2638 = vmatpush1.msra.mxu0 %v2474
    %2639 = vmatprep.subr.mxu0 0.0
    %2640 = vmatpush1.msra.mxu0 %v2475
    %2641 = vmatprep.subr.mxu0 0.0
    %2642 = vmatpush1.msra.mxu0 %v2476
    %2643 = vmatprep.subr.mxu0 0.0
    %2644 = vmatpush1.msra.mxu0 %v2477
    %2645 = vmatprep.subr.mxu0 0.0
    %2646 = vmatpush1.msra.mxu0 %v2478
    %2647 = vmatprep.subr.mxu0 0.0
    %2648 = vmatpush1.msra.mxu0 %v2479
    %2649 = vmatprep.subr.mxu0 0.0
    %2650 = vmatpush1.msra.mxu0 %v2480
    %2651 = vmatprep.subr.mxu0 0.0
    %2652 = vmatpush1.msra.mxu0 %v2481
    %2653 = vmatprep.subr.mxu0 0.0
    %2654 = vmatpush1.msra.mxu0 %v2482
    %2655 = vmatprep.subr.mxu0 0.0
    %2656 = vmatpush1.msra.mxu0 %v2483
    %2657 = vmatprep.subr.mxu0 0.0
    %2658 = vmatpush1.msra.mxu0 %v2484
    %2659 = vmatprep.subr.mxu0 0.0
    %2660 = vmatpush1.msra.mxu0 %v2485
    %2661 = vmatprep.subr.mxu0 0.0
    %2662 = vmatpush1.msra.mxu0 %v2486
    %2663 = vmatprep.subr.mxu0 0.0
    %2664 = vmatpush1.msra.mxu0 %v2487
    %2665 = vmatprep.subr.mxu0 0.0
    %2666 = vmatpush1.msra.mxu0 %v2488
    %2667 = vmatprep.subr.mxu0 0.0
    %2668 = vmatpush1.msra.mxu0 %v2489
    %2669 = vmatprep.subr.mxu0 0.0
    %2670 = vmatpush1.msra.mxu0 %v2490
    %2671 = vmatprep.subr.mxu0 0.0
    %2672 = vmatpush1.msra.mxu0 0.0
    %2673 = vmatprep.subr.mxu0 0.0
    %2674 = vmatpush1.msra.mxu0 0.0
    %2675 = vmatprep.subr.mxu0 0.0
    %2676 = vmatpush1.msra.mxu0 0.0
    %2677 = vmatprep.subr.mxu0 0.0
    %2678 = vmatpush1.msra.mxu0 0.0
    %2679 = vmatprep.subr.mxu0 0.0
    %2680 = vmatpush1.msra.mxu0 0.0
    %2681 = vmatprep.subr.mxu0 0.0
    %2682 = vmatpush1.msra.mxu0 0.0
    %2683 = vmatprep.subr.mxu0 0.0
    %2684 = vmatpush1.msra.mxu0 0.0
    %2685 = vmatprep.subr.mxu0 0.0
    %2686 = vmatpush1.msra.mxu0 0.0
    %2687 = vmatprep.subr.mxu0 0.0
    %2688 = vmatpush1.msra.mxu0 0.0
    %2689 = vmatprep.subr.mxu0 0.0
    %2690 = vmatpush1.msra.mxu0 0.0
    %2691 = vmatprep.subr.mxu0 0.0
    %2692 = vmatpush1.msra.mxu0 0.0
    %2693 = vmatprep.subr.mxu0 0.0
    %2694 = vmatpush1.msra.mxu0 0.0
    %2695 = vmatprep.mubr.f32.mxu0 %v2540
    %2696 = vmatmul.mubr.f32.gmra.mrb[0].mxu0 %v2508
    %v2697 = vpop.f32.mrb[0].mxu0
    %v2698 = vadd.f32 %v2615, %v2697
    %v2699 = vpop.f32.mrb[0].mxu0
    %2700 = vmatprep.mubr.f32.mxu0 %v2542
    %2701 = vmatmul.mubr.f32.gmra.mrb[0].mxu0 %v2517
    %v2702 = vpop.f32.mrb[0].mxu0
    %v2703 = vpop.f32.mrb[0].mxu0
    %2704 = vmatprep.mubr.f32.mxu0 %v2544
    %2705 = vmatmul.mubr.f32.gmra.mrb[0].mxu0 %v2525
    %v2706 = vpop.f32.mrb[0].mxu0
    %v2707 = vadd.f32 %v2624, %v2706
    %v2708 = vpop.f32.mrb[0].mxu0
    %2709 = vmatprep.mubr.f32.mxu0 %v2546
    %2710 = vmatmul.mubr.f32.gmra.mrb[0].mxu0 %v2524
    %v2711 = vpop.f32.mrb[0].mxu0
    %v2712 = vpop.f32.mrb[0].mxu0
    %2713 = vdwg.mxu0
    %v2714 = vadd.f32 %v2429, %v2698
    %v2715 = vadd.f32 %v2430, %v2707
    %v2716 = vld [vmem:[#allocation2] sm:$0xc0]
    %v2717 = vld [vmem:[#allocation2 + $0x8] sm:$0xc0]
    %v2718 = vld [vmem:[#allocation2 + $0x10] sm:$0xc0]
    %v2719 = vld [vmem:[#allocation2 + $0x18] sm:$0xc0]
    %v2720 = vld [vmem:[#allocation2 + $0x60] sm:$0x7f]
    %v2721 = vld [vmem:[#allocation2 + $0x68] sm:$0x7f]
    %v2722 = vld [vmem:[#allocation2 + $0x70] sm:$0x7f]
    %v2723 = vld [vmem:[#allocation2 + $0x78] sm:$0x7f]
    %v2724 = vld [vmem:[%s3 + $0x9c0] sm:$0xff]
    %v2725 = vld [vmem:[%s3 + $0x9c8] sm:$0xff]
    %v2726 = vld [vmem:[%s3 + $0x9d0] sm:$0xff]
    %v2727 = vld [vmem:[%s3 + $0x9d8] sm:$0xff]
    %v2728 = vld [vmem:[%s3 + $0x9e0] sm:$0xff]
    %v2729 = vld [vmem:[%s3 + $0x9e8] sm:$0xff]
    %v2730 = vld [vmem:[%s3 + $0x9f0] sm:$0xff]
    %v2731 = vld [vmem:[%s3 + $0x9f8] sm:$0xff]
    %v2732 = vld [vmem:[%s3 + $0xa00] sm:$0xff]
    %v2733 = vld [vmem:[%s3 + $0xa08] sm:$0xff]
    %v2734 = vld [vmem:[%s3 + $0xa10] sm:$0xff]
    %v2735 = vld [vmem:[%s3 + $0xa18] sm:$0xff]
    %v2736 = vld [vmem:[%s3 + $0xa20] sm:$0xff]
    %v2737 = vld [vmem:[%s3 + $0xa28] sm:$0xff]
    %v2738 = vld [vmem:[%s3 + $0xa30] sm:$0xff]
    %v2739 = vld [vmem:[%s3 + $0xa38] sm:$0xff]
    %v2740 = vld [vmem:[%s3 + $0xa40] sm:$0xff]
    %v2741 = vld [vmem:[%s3 + $0xa48] sm:$0xff]
    %v2742 = vld [vmem:[%s3 + $0xa50] sm:$0xff]
    %v2743 = vld [vmem:[%s3 + $0xa58] sm:$0xff]
    %v2744 = vld [vmem:[%s3 + $0xa60] sm:$0xff]
    %v2745 = vld [vmem:[%s3 + $0xa68] sm:$0xff]
    %v2746 = vld [vmem:[%s3 + $0xa70] sm:$0xff]
    %v2747 = vld [vmem:[%s3 + $0xa78] sm:$0xff]
    %v2748 = vld [vmem:[%s3 + $0xa80] sm:$0xff]
    %v2749 = vld [vmem:[%s3 + $0xa88] sm:$0xff]
    %v2750 = vld [vmem:[%s3 + $0xa90] sm:$0xff]
    %v2751 = vld [vmem:[%s3 + $0xa98] sm:$0xff]
    %v2752 = vld [vmem:[%s3 + $0xaa0] sm:$0xff]
    %v2753 = vld [vmem:[%s3 + $0xaa8] sm:$0xff]
    %v2754 = vld [vmem:[%s3 + $0xab0] sm:$0xff]
    %v2755 = vld [vmem:[%s3 + $0xab8] sm:$0xff]
    %v2756 = vld [vmem:[%s3 + $0xac0] sm:$0xff]
    %v2757 = vld [vmem:[%s3 + $0xac8] sm:$0xff]
    %v2758 = vld [vmem:[%s3 + $0xad0] sm:$0xff]
    %v2759 = vld [vmem:[%s3 + $0xad8] sm:$0xff]
    %v2760 = vld [vmem:[%s3 + $0xae0] sm:$0xff]
    %v2761 = vld [vmem:[%s3 + $0xae8] sm:$0xff]
    %v2762 = vld [vmem:[%s3 + $0xaf0] sm:$0xff]
    %v2763 = vld [vmem:[%s3 + $0xaf8] sm:$0xff]
    %v2764 = vld [vmem:[%s3 + $0xb00] sm:$0xff]
    %v2765 = vld [vmem:[%s3 + $0xb08] sm:$0xff]
    %v2766 = vld [vmem:[%s3 + $0xb10] sm:$0xff]
    %v2767 = vld [vmem:[%s3 + $0xb18] sm:$0xff]
    %v2768 = vld [vmem:[%s3 + $0xb20] sm:$0xff]
    %v2769 = vld [vmem:[%s3 + $0xb28] sm:$0xff]
    %v2770 = vld [vmem:[%s3 + $0xb30] sm:$0xff]
    %v2771 = vld [vmem:[%s3 + $0xb38] sm:$0xff]
    %v2772 = vld [vmem:[%s3 + $0xb40] sm:$0xff]
    %v2773 = vld [vmem:[%s3 + $0xb48] sm:$0xff]
    %v2774 = vld [vmem:[%s3 + $0xb50] sm:$0xff]
    %v2775 = vld [vmem:[%s3 + $0xb58] sm:$0xff]
    %vm2784 = vcmask 1041408
    %v2785 = vrot.slane %v2716, 6
    %v2786 = vrot.slane %v1045, 6
    %v2787 = vsel %vm2784, %v2785, %v2786
    %v2788 = vrot.slane %v2717, 6
    %v2789 = vrot.slane %v1046, 6
    %v2790 = vsel %vm2784, %v2788, %v2789
    %v2791 = vrot.slane %v2718, 6
    %v2792 = vrot.slane %v1047, 6
    %v2793 = vsel %vm2784, %v2791, %v2792
    %v2794 = vrot.slane %v2719, 6
    %v2795 = vrot.slane %v1048, 6
    %v2796 = vsel %vm2784, %v2794, %v2795
    %v2797 = vrot.slane %v1049, 6
    %v2798 = vsel %vm2784, %v2786, %v2797
    %v2799 = vrot.slane %v1050, 6
    %v2800 = vsel %vm2784, %v2789, %v2799
    %v2801 = vrot.slane %v1051, 6
    %v2802 = vsel %vm2784, %v2792, %v2801
    %v2803 = vrot.slane %v1052, 6
    %v2804 = vsel %vm2784, %v2795, %v2803
    %v2805 = vrot.slane %v2720, 6
    %v2806 = vsel %vm2784, %v2797, %v2805
    %v2807 = vrot.slane %v2721, 6
    %v2808 = vsel %vm2784, %v2799, %v2807
    %v2809 = vrot.slane %v2722, 6
    %v2810 = vsel %vm2784, %v2801, %v2809
    %v2811 = vrot.slane %v2723, 6
    %v2812 = vsel %vm2784, %v2803, %v2811
    %v2825 = vsel %vm1027, %v2796, 0
    %v2827 = vsel %vm1027, %v2804, 0
    %v2829 = vsel %vm1027, %v2812, 0
    %v2831 = vsel %vm1027, %v2811, 0
    %2833 = vmatprep.subr.mxu0 0.0
    %2834 = vmatpush1.msra.mxu0 %v2724
    %2835 = vmatprep.subr.mxu0 0.0
    %2836 = vmatpush1.msra.mxu0 %v2725
    %2837 = vmatprep.subr.mxu0 0.0
    %2838 = vmatpush1.msra.mxu0 %v2726
    %2839 = vmatprep.subr.mxu0 0.0
    %2840 = vmatpush1.msra.mxu0 %v2727
    %2841 = vmatprep.subr.mxu0 0.0
    %2842 = vmatpush1.msra.mxu0 %v2728
    %2843 = vmatprep.subr.mxu0 0.0
    %2844 = vmatpush1.msra.mxu0 %v2729
    %2845 = vmatprep.subr.mxu0 0.0
    %2846 = vmatpush1.msra.mxu0 %v2730
    %2847 = vmatprep.subr.mxu0 0.0
    %2848 = vmatpush1.msra.mxu0 %v2731
    %2849 = vmatprep.subr.mxu0 0.0
    %2850 = vmatpush1.msra.mxu0 %v2732
    %2851 = vmatprep.subr.mxu0 0.0
    %2852 = vmatpush1.msra.mxu0 %v2733
    %2853 = vmatprep.subr.mxu0 0.0
    %2854 = vmatpush1.msra.mxu0 %v2734
    %2855 = vmatprep.subr.mxu0 0.0
    %2856 = vmatpush1.msra.mxu0 %v2735
    %2857 = vmatprep.subr.mxu0 0.0
    %2858 = vmatpush1.msra.mxu0 %v2736
    %2859 = vmatprep.subr.mxu0 0.0
    %2860 = vmatpush1.msra.mxu0 %v2737
    %2861 = vmatprep.subr.mxu0 0.0
    %2862 = vmatpush1.msra.mxu0 %v2738
    %2863 = vmatprep.subr.mxu0 0.0
    %2864 = vmatpush1.msra.mxu0 %v2739
    %2865 = vmatprep.subr.mxu0 0.0
    %2866 = vmatpush1.msra.mxu0 %v2740
    %2867 = vmatprep.subr.mxu0 0.0
    %2868 = vmatpush1.msra.mxu0 %v2741
    %2869 = vmatprep.subr.mxu0 0.0
    %2870 = vmatpush1.msra.mxu0 %v2742
    %2871 = vmatprep.subr.mxu0 0.0
    %2872 = vmatpush1.msra.mxu0 %v2743
    %2873 = vmatprep.subr.mxu0 0.0
    %2874 = vmatpush1.msra.mxu0 %v2744
    %2875 = vmatprep.subr.mxu0 0.0
    %2876 = vmatpush1.msra.mxu0 %v2745
    %2877 = vmatprep.subr.mxu0 0.0
    %2878 = vmatpush1.msra.mxu0 %v2746
    %2879 = vmatprep.subr.mxu0 0.0
    %2880 = vmatpush1.msra.mxu0 %v2747
    %2881 = vmatprep.subr.mxu0 0.0
    %2882 = vmatpush1.msra.mxu0 %v2748
    %2883 = vmatprep.subr.mxu0 0.0
    %2884 = vmatpush1.msra.mxu0 %v2749
    %2885 = vmatprep.subr.mxu0 0.0
    %2886 = vmatpush1.msra.mxu0 %v2750
    %2887 = vmatprep.subr.mxu0 0.0
    %2888 = vmatpush1.msra.mxu0 %v2751
    %2889 = vmatprep.subr.mxu0 0.0
    %2890 = vmatpush1.msra.mxu0 %v2752
    %2891 = vmatprep.subr.mxu0 0.0
    %2892 = vmatpush1.msra.mxu0 %v2753
    %2893 = vmatprep.subr.mxu0 0.0
    %2894 = vmatpush1.msra.mxu0 %v2754
    %2895 = vmatprep.subr.mxu0 0.0
    %2896 = vmatpush1.msra.mxu0 %v2755
    %2897 = vmatprep.mubr.f32.mxu0 %v2790
    %2898 = vmatmul.mubr.f32.gmra.mrb[0].mxu0 %v2787
    %v2899 = vpop.f32.mrb[0].mxu0
    %v2900 = vadd.f32 0.0, %v2899
    %v2901 = vpop.f32.mrb[0].mxu0
    %2902 = vmatprep.mubr.f32.mxu0 %v2800
    %2903 = vmatmul.mubr.f32.gmra.mrb[0].mxu0 %v2798
    %v2904 = vpop.f32.mrb[0].mxu0
    %v2905 = vpop.f32.mrb[0].mxu0
    %2906 = vmatprep.mubr.f32.mxu0 %v2808
    %2907 = vmatmul.mubr.f32.gmra.mrb[0].mxu0 %v2806
    %v2908 = vpop.f32.mrb[0].mxu0
    %v2909 = vadd.f32 0.0, %v2908
    %v2910 = vpop.f32.mrb[0].mxu0
    %2911 = vmatprep.mubr.f32.mxu0 %v2807
    %2912 = vmatmul.mubr.f32.gmra.mrb[0].mxu0 %v2805
    %v2913 = vpop.f32.mrb[0].mxu0
    %v2914 = vpop.f32.mrb[0].mxu0
    %2915 = vdwg.mxu0
    %2916 = vmatprep.subr.mxu0 0.0
    %2917 = vmatpush1.msra.mxu0 %v2756
    %2918 = vmatprep.subr.mxu0 0.0
    %2919 = vmatpush1.msra.mxu0 %v2757
    %2920 = vmatprep.subr.mxu0 0.0
    %2921 = vmatpush1.msra.mxu0 %v2758
    %2922 = vmatprep.subr.mxu0 0.0
    %2923 = vmatpush1.msra.mxu0 %v2759
    %2924 = vmatprep.subr.mxu0 0.0
    %2925 = vmatpush1.msra.mxu0 %v2760
    %2926 = vmatprep.subr.mxu0 0.0
    %2927 = vmatpush1.msra.mxu0 %v2761
    %2928 = vmatprep.subr.mxu0 0.0
    %2929 = vmatpush1.msra.mxu0 %v2762
    %2930 = vmatprep.subr.mxu0 0.0
    %2931 = vmatpush1.msra.mxu0 %v2763
    %2932 = vmatprep.subr.mxu0 0.0
    %2933 = vmatpush1.msra.mxu0 %v2764
    %2934 = vmatprep.subr.mxu0 0.0
    %2935 = vmatpush1.msra.mxu0 %v2765
    %2936 = vmatprep.subr.mxu0 0.0
    %2937 = vmatpush1.msra.mxu0 %v2766
    %2938 = vmatprep.subr.mxu0 0.0
    %2939 = vmatpush1.msra.mxu0 %v2767
    %2940 = vmatprep.subr.mxu0 0.0
    %2941 = vmatpush1.msra.mxu0 %v2768
    %2942 = vmatprep.subr.mxu0 0.0
    %2943 = vmatpush1.msra.mxu0 %v2769
    %2944 = vmatprep.subr.mxu0 0.0
    %2945 = vmatpush1.msra.mxu0 %v2770
    %2946 = vmatprep.subr.mxu0 0.0
    %2947 = vmatpush1.msra.mxu0 %v2771
    %2948 = vmatprep.subr.mxu0 0.0
    %2949 = vmatpush1.msra.mxu0 %v2772
    %2950 = vmatprep.subr.mxu0 0.0
    %2951 = vmatpush1.msra.mxu0 %v2773
    %2952 = vmatprep.subr.mxu0 0.0
    %2953 = vmatpush1.msra.mxu0 %v2774
    %2954 = vmatprep.subr.mxu0 0.0
    %2955 = vmatpush1.msra.mxu0 %v2775
    %2956 = vmatprep.subr.mxu0 0.0
    %2957 = vmatpush1.msra.mxu0 0.0
    %2958 = vmatprep.subr.mxu0 0.0
    %2959 = vmatpush1.msra.mxu0 0.0
    %2960 = vmatprep.subr.mxu0 0.0
    %2961 = vmatpush1.msra.mxu0 0.0
    %2962 = vmatprep.subr.mxu0 0.0
    %2963 = vmatpush1.msra.mxu0 0.0
    %2964 = vmatprep.subr.mxu0 0.0
    %2965 = vmatpush1.msra.mxu0 0.0
    %2966 = vmatprep.subr.mxu0 0.0
    %2967 = vmatpush1.msra.mxu0 0.0
    %2968 = vmatprep.subr.mxu0 0.0
    %2969 = vmatpush1.msra.mxu0 0.0
    %2970 = vmatprep.subr.mxu0 0.0
    %2971 = vmatpush1.msra.mxu0 0.0
    %2972 = vmatprep.subr.mxu0 0.0
    %2973 = vmatpush1.msra.mxu0 0.0
    %2974 = vmatprep.subr.mxu0 0.0
    %2975 = vmatpush1.msra.mxu0 0.0
    %2976 = vmatprep.subr.mxu0 0.0
    %2977 = vmatpush1.msra.mxu0 0.0
    %2978 = vmatprep.subr.mxu0 0.0
    %2979 = vmatpush1.msra.mxu0 0.0
    %2980 = vmatprep.mubr.f32.mxu0 %v2825
    %2981 = vmatmul.mubr.f32.gmra.mrb[0].mxu0 %v2793
    %v2982 = vpop.f32.mrb[0].mxu0
    %v2983 = vadd.f32 %v2900, %v2982
    %v2984 = vpop.f32.mrb[0].mxu0
    %2985 = vmatprep.mubr.f32.mxu0 %v2827
    %2986 = vmatmul.mubr.f32.gmra.mrb[0].mxu0 %v2802
    %v2987 = vpop.f32.mrb[0].mxu0
    %v2988 = vpop.f32.mrb[0].mxu0
    %2989 = vmatprep.mubr.f32.mxu0 %v2829
    %2990 = vmatmul.mubr.f32.gmra.mrb[0].mxu0 %v2810
    %v2991 = vpop.f32.mrb[0].mxu0
    %v2992 = vadd.f32 %v2909, %v2991
    %v2993 = vpop.f32.mrb[0].mxu0
    %2994 = vmatprep.mubr.f32.mxu0 %v2831
    %2995 = vmatmul.mubr.f32.gmra.mrb[0].mxu0 %v2809
    %v2996 = vpop.f32.mrb[0].mxu0
    %v2997 = vpop.f32.mrb[0].mxu0
    %2998 = vdwg.mxu0
    %v2999 = vadd.f32 %v2714, %v2983
    %v3000 = vadd.f32 %v2715, %v2992
    %v3001 = vld [vmem:[#allocation2] sm:$0x80]
    %v3002 = vld [vmem:[#allocation2 + $0x8] sm:$0x80]
    %v3003 = vld [vmem:[#allocation2 + $0x10] sm:$0x80]
    %v3004 = vld [vmem:[#allocation2 + $0x18] sm:$0x80]
    %v3005 = vld [vmem:[#allocation2 + $0x60] sm:$0xff]
    %v3006 = vld [vmem:[#allocation2 + $0x68] sm:$0xff]
    %v3007 = vld [vmem:[#allocation2 + $0x70] sm:$0xff]
    %v3008 = vld [vmem:[#allocation2 + $0x78] sm:$0xff]
    %v3009 = vld [vmem:[%s3 + $0xb60] sm:$0xff]
    %v3010 = vld [vmem:[%s3 + $0xb68] sm:$0xff]
    %v3011 = vld [vmem:[%s3 + $0xb70] sm:$0xff]
    %v3012 = vld [vmem:[%s3 + $0xb78] sm:$0xff]
    %v3013 = vld [vmem:[%s3 + $0xb80] sm:$0xff]
    %v3014 = vld [vmem:[%s3 + $0xb88] sm:$0xff]
    %v3015 = vld [vmem:[%s3 + $0xb90] sm:$0xff]
    %v3016 = vld [vmem:[%s3 + $0xb98] sm:$0xff]
    %v3017 = vld [vmem:[%s3 + $0xba0] sm:$0xff]
    %v3018 = vld [vmem:[%s3 + $0xba8] sm:$0xff]
    %v3019 = vld [vmem:[%s3 + $0xbb0] sm:$0xff]
    %v3020 = vld [vmem:[%s3 + $0xbb8] sm:$0xff]
    %v3021 = vld [vmem:[%s3 + $0xbc0] sm:$0xff]
    %v3022 = vld [vmem:[%s3 + $0xbc8] sm:$0xff]
    %v3023 = vld [vmem:[%s3 + $0xbd0] sm:$0xff]
    %v3024 = vld [vmem:[%s3 + $0xbd8] sm:$0xff]
    %v3025 = vld [vmem:[%s3 + $0xbe0] sm:$0xff]
    %v3026 = vld [vmem:[%s3 + $0xbe8] sm:$0xff]
    %v3027 = vld [vmem:[%s3 + $0xbf0] sm:$0xff]
    %v3028 = vld [vmem:[%s3 + $0xbf8] sm:$0xff]
    %v3029 = vld [vmem:[%s3 + $0xc00] sm:$0xff]
    %v3030 = vld [vmem:[%s3 + $0xc08] sm:$0xff]
    %v3031 = vld [vmem:[%s3 + $0xc10] sm:$0xff]
    %v3032 = vld [vmem:[%s3 + $0xc18] sm:$0xff]
    %v3033 = vld [vmem:[%s3 + $0xc20] sm:$0xff]
    %v3034 = vld [vmem:[%s3 + $0xc28] sm:$0xff]
    %v3035 = vld [vmem:[%s3 + $0xc30] sm:$0xff]
    %v3036 = vld [vmem:[%s3 + $0xc38] sm:$0xff]
    %v3037 = vld [vmem:[%s3 + $0xc40] sm:$0xff]
    %v3038 = vld [vmem:[%s3 + $0xc48] sm:$0xff]
    %v3039 = vld [vmem:[%s3 + $0xc50] sm:$0xff]
    %v3040 = vld [vmem:[%s3 + $0xc58] sm:$0xff]
    %v3041 = vld [vmem:[%s3 + $0xc60] sm:$0xff]
    %v3042 = vld [vmem:[%s3 + $0xc68] sm:$0xff]
    %v3043 = vld [vmem:[%s3 + $0xc70] sm:$0xff]
    %v3044 = vld [vmem:[%s3 + $0xc78] sm:$0xff]
    %v3045 = vld [vmem:[%s3 + $0xc80] sm:$0xff]
    %v3046 = vld [vmem:[%s3 + $0xc88] sm:$0xff]
    %v3047 = vld [vmem:[%s3 + $0xc90] sm:$0xff]
    %v3048 = vld [vmem:[%s3 + $0xc98] sm:$0xff]
    %v3049 = vld [vmem:[%s3 + $0xca0] sm:$0xff]
    %v3050 = vld [vmem:[%s3 + $0xca8] sm:$0xff]
    %v3051 = vld [vmem:[%s3 + $0xcb0] sm:$0xff]
    %v3052 = vld [vmem:[%s3 + $0xcb8] sm:$0xff]
    %v3053 = vld [vmem:[%s3 + $0xcc0] sm:$0xff]
    %v3054 = vld [vmem:[%s3 + $0xcc8] sm:$0xff]
    %v3055 = vld [vmem:[%s3 + $0xcd0] sm:$0xff]
    %v3056 = vld [vmem:[%s3 + $0xcd8] sm:$0xff]
    %v3057 = vld [vmem:[%s3 + $0xce0] sm:$0xff]
    %v3058 = vld [vmem:[%s3 + $0xce8] sm:$0xff]
    %v3059 = vld [vmem:[%s3 + $0xcf0] sm:$0xff]
    %v3060 = vld [vmem:[%s3 + $0xcf8] sm:$0xff]
    %vm3069 = vcmask 1040384
    %v3070 = vrot.slane %v3001, 7
    %v3071 = vrot.slane %v1045, 7
    %v3072 = vsel %vm3069, %v3070, %v3071
    %v3073 = vrot.slane %v3002, 7
    %v3074 = vrot.slane %v1046, 7
    %v3075 = vsel %vm3069, %v3073, %v3074
    %v3076 = vrot.slane %v3003, 7
    %v3077 = vrot.slane %v1047, 7
    %v3078 = vsel %vm3069, %v3076, %v3077
    %v3079 = vrot.slane %v3004, 7
    %v3080 = vrot.slane %v1048, 7
    %v3081 = vsel %vm3069, %v3079, %v3080
    %v3082 = vrot.slane %v1049, 7
    %v3083 = vsel %vm3069, %v3071, %v3082
    %v3084 = vrot.slane %v1050, 7
    %v3085 = vsel %vm3069, %v3074, %v3084
    %v3086 = vrot.slane %v1051, 7
    %v3087 = vsel %vm3069, %v3077, %v3086
    %v3088 = vrot.slane %v1052, 7
    %v3089 = vsel %vm3069, %v3080, %v3088
    %v3090 = vrot.slane %v3005, 7
    %v3091 = vsel %vm3069, %v3082, %v3090
    %v3092 = vrot.slane %v3006, 7
    %v3093 = vsel %vm3069, %v3084, %v3092
    %v3094 = vrot.slane %v3007, 7
    %v3095 = vsel %vm3069, %v3086, %v3094
    %v3096 = vrot.slane %v3008, 7
    %v3097 = vsel %vm3069, %v3088, %v3096
    %v3110 = vsel %vm1027, %v3081, 0
    %v3112 = vsel %vm1027, %v3089, 0
    %v3114 = vsel %vm1027, %v3097, 0
    %v3116 = vsel %vm1027, %v3096, 0
    %3118 = vmatprep.subr.mxu0 0.0
    %3119 = vmatpush1.msra.mxu0 %v3009
    %3120 = vmatprep.subr.mxu0 0.0
    %3121 = vmatpush1.msra.mxu0 %v3010
    %3122 = vmatprep.subr.mxu0 0.0
    %3123 = vmatpush1.msra.mxu0 %v3011
    %3124 = vmatprep.subr.mxu0 0.0
    %3125 = vmatpush1.msra.mxu0 %v3012
    %3126 = vmatprep.subr.mxu0 0.0
    %3127 = vmatpush1.msra.mxu0 %v3013
    %3128 = vmatprep.subr.mxu0 0.0
    %3129 = vmatpush1.msra.mxu0 %v3014
    %3130 = vmatprep.subr.mxu0 0.0
    %3131 = vmatpush1.msra.mxu0 %v3015
    %3132 = vmatprep.subr.mxu0 0.0
    %3133 = vmatpush1.msra.mxu0 %v3016
    %3134 = vmatprep.subr.mxu0 0.0
    %3135 = vmatpush1.msra.mxu0 %v3017
    %3136 = vmatprep.subr.mxu0 0.0
    %3137 = vmatpush1.msra.mxu0 %v3018
    %3138 = vmatprep.subr.mxu0 0.0
    %3139 = vmatpush1.msra.mxu0 %v3019
    %3140 = vmatprep.subr.mxu0 0.0
    %3141 = vmatpush1.msra.mxu0 %v3020
    %3142 = vmatprep.subr.mxu0 0.0
    %3143 = vmatpush1.msra.mxu0 %v3021
    %3144 = vmatprep.subr.mxu0 0.0
    %3145 = vmatpush1.msra.mxu0 %v3022
    %3146 = vmatprep.subr.mxu0 0.0
    %3147 = vmatpush1.msra.mxu0 %v3023
    %3148 = vmatprep.subr.mxu0 0.0
    %3149 = vmatpush1.msra.mxu0 %v3024
    %3150 = vmatprep.subr.mxu0 0.0
    %3151 = vmatpush1.msra.mxu0 %v3025
    %3152 = vmatprep.subr.mxu0 0.0
    %3153 = vmatpush1.msra.mxu0 %v3026
    %3154 = vmatprep.subr.mxu0 0.0
    %3155 = vmatpush1.msra.mxu0 %v3027
    %3156 = vmatprep.subr.mxu0 0.0
    %3157 = vmatpush1.msra.mxu0 %v3028
    %3158 = vmatprep.subr.mxu0 0.0
    %3159 = vmatpush1.msra.mxu0 %v3029
    %3160 = vmatprep.subr.mxu0 0.0
    %3161 = vmatpush1.msra.mxu0 %v3030
    %3162 = vmatprep.subr.mxu0 0.0
    %3163 = vmatpush1.msra.mxu0 %v3031
    %3164 = vmatprep.subr.mxu0 0.0
    %3165 = vmatpush1.msra.mxu0 %v3032
    %3166 = vmatprep.subr.mxu0 0.0
    %3167 = vmatpush1.msra.mxu0 %v3033
    %3168 = vmatprep.subr.mxu0 0.0
    %3169 = vmatpush1.msra.mxu0 %v3034
    %3170 = vmatprep.subr.mxu0 0.0
    %3171 = vmatpush1.msra.mxu0 %v3035
    %3172 = vmatprep.subr.mxu0 0.0
    %3173 = vmatpush1.msra.mxu0 %v3036
    %3174 = vmatprep.subr.mxu0 0.0
    %3175 = vmatpush1.msra.mxu0 %v3037
    %3176 = vmatprep.subr.mxu0 0.0
    %3177 = vmatpush1.msra.mxu0 %v3038
    %3178 = vmatprep.subr.mxu0 0.0
    %3179 = vmatpush1.msra.mxu0 %v3039
    %3180 = vmatprep.subr.mxu0 0.0
    %3181 = vmatpush1.msra.mxu0 %v3040
    %3182 = vmatprep.mubr.f32.mxu0 %v3075
    %3183 = vmatmul.mubr.f32.gmra.mrb[0].mxu0 %v3072
    %v3184 = vpop.f32.mrb[0].mxu0
    %v3185 = vadd.f32 0.0, %v3184
    %v3186 = vpop.f32.mrb[0].mxu0
    %3187 = vmatprep.mubr.f32.mxu0 %v3085
    %3188 = vmatmul.mubr.f32.gmra.mrb[0].mxu0 %v3083
    %v3189 = vpop.f32.mrb[0].mxu0
    %v3190 = vpop.f32.mrb[0].mxu0
    %3191 = vmatprep.mubr.f32.mxu0 %v3093
    %3192 = vmatmul.mubr.f32.gmra.mrb[0].mxu0 %v3091
    %v3193 = vpop.f32.mrb[0].mxu0
    %v3194 = vadd.f32 0.0, %v3193
    %v3195 = vpop.f32.mrb[0].mxu0
    %3196 = vmatprep.mubr.f32.mxu0 %v3092
    %3197 = vmatmul.mubr.f32.gmra.mrb[0].mxu0 %v3090
    %v3198 = vpop.f32.mrb[0].mxu0
    %v3199 = vpop.f32.mrb[0].mxu0
    %3200 = vdwg.mxu0
    %3201 = vmatprep.subr.mxu0 0.0
    %3202 = vmatpush1.msra.mxu0 %v3041
    %3203 = vmatprep.subr.mxu0 0.0
    %3204 = vmatpush1.msra.mxu0 %v3042
    %3205 = vmatprep.subr.mxu0 0.0
    %3206 = vmatpush1.msra.mxu0 %v3043
    %3207 = vmatprep.subr.mxu0 0.0
    %3208 = vmatpush1.msra.mxu0 %v3044
    %3209 = vmatprep.subr.mxu0 0.0
    %3210 = vmatpush1.msra.mxu0 %v3045
    %3211 = vmatprep.subr.mxu0 0.0
    %3212 = vmatpush1.msra.mxu0 %v3046
    %3213 = vmatprep.subr.mxu0 0.0
    %3214 = vmatpush1.msra.mxu0 %v3047
    %3215 = vmatprep.subr.mxu0 0.0
    %3216 = vmatpush1.msra.mxu0 %v3048
    %3217 = vmatprep.subr.mxu0 0.0
    %3218 = vmatpush1.msra.mxu0 %v3049
    %3219 = vmatprep.subr.mxu0 0.0
    %3220 = vmatpush1.msra.mxu0 %v3050
    %3221 = vmatprep.subr.mxu0 0.0
    %3222 = vmatpush1.msra.mxu0 %v3051
    %3223 = vmatprep.subr.mxu0 0.0
    %3224 = vmatpush1.msra.mxu0 %v3052
    %3225 = vmatprep.subr.mxu0 0.0
    %3226 = vmatpush1.msra.mxu0 %v3053
    %3227 = vmatprep.subr.mxu0 0.0
    %3228 = vmatpush1.msra.mxu0 %v3054
    %3229 = vmatprep.subr.mxu0 0.0
    %3230 = vmatpush1.msra.mxu0 %v3055
    %3231 = vmatprep.subr.mxu0 0.0
    %3232 = vmatpush1.msra.mxu0 %v3056
    %3233 = vmatprep.subr.mxu0 0.0
    %3234 = vmatpush1.msra.mxu0 %v3057
    %3235 = vmatprep.subr.mxu0 0.0
    %3236 = vmatpush1.msra.mxu0 %v3058
    %3237 = vmatprep.subr.mxu0 0.0
    %3238 = vmatpush1.msra.mxu0 %v3059
    %3239 = vmatprep.subr.mxu0 0.0
    %3240 = vmatpush1.msra.mxu0 %v3060
    %3241 = vmatprep.subr.mxu0 0.0
    %3242 = vmatpush1.msra.mxu0 0.0
    %3243 = vmatprep.subr.mxu0 0.0
    %3244 = vmatpush1.msra.mxu0 0.0
    %3245 = vmatprep.subr.mxu0 0.0
    %3246 = vmatpush1.msra.mxu0 0.0
    %3247 = vmatprep.subr.mxu0 0.0
    %3248 = vmatpush1.msra.mxu0 0.0
    %3249 = vmatprep.subr.mxu0 0.0
    %3250 = vmatpush1.msra.mxu0 0.0
    %3251 = vmatprep.subr.mxu0 0.0
    %3252 = vmatpush1.msra.mxu0 0.0
    %3253 = vmatprep.subr.mxu0 0.0
    %3254 = vmatpush1.msra.mxu0 0.0
    %3255 = vmatprep.subr.mxu0 0.0
    %3256 = vmatpush1.msra.mxu0 0.0
    %3257 = vmatprep.subr.mxu0 0.0
    %3258 = vmatpush1.msra.mxu0 0.0
    %3259 = vmatprep.subr.mxu0 0.0
    %3260 = vmatpush1.msra.mxu0 0.0
    %3261 = vmatprep.subr.mxu0 0.0
    %3262 = vmatpush1.msra.mxu0 0.0
    %3263 = vmatprep.subr.mxu0 0.0
    %3264 = vmatpush1.msra.mxu0 0.0
    %3265 = vmatprep.mubr.f32.mxu0 %v3110
    %3266 = vmatmul.mubr.f32.gmra.mrb[0].mxu0 %v3078
    %v3267 = vpop.f32.mrb[0].mxu0
    %v3268 = vadd.f32 %v3185, %v3267
    %v3269 = vpop.f32.mrb[0].mxu0
    %3270 = vmatprep.mubr.f32.mxu0 %v3112
    %3271 = vmatmul.mubr.f32.gmra.mrb[0].mxu0 %v3087
    %v3272 = vpop.f32.mrb[0].mxu0
    %v3273 = vpop.f32.mrb[0].mxu0
    %3274 = vmatprep.mubr.f32.mxu0 %v3114
    %3275 = vmatmul.mubr.f32.gmra.mrb[0].mxu0 %v3095
    %v3276 = vpop.f32.mrb[0].mxu0
    %v3277 = vadd.f32 %v3194, %v3276
    %v3278 = vpop.f32.mrb[0].mxu0
    %3279 = vmatprep.mubr.f32.mxu0 %v3116
    %3280 = vmatmul.mubr.f32.gmra.mrb[0].mxu0 %v3094
    %v3281 = vpop.f32.mrb[0].mxu0
    %v3282 = vpop.f32.mrb[0].mxu0
    %3283 = vdwg.mxu0
    %v3284 = vadd.f32 %v2999, %v3268
    %v3285 = vadd.f32 %v3000, %v3277
    %v3286 = vld [vmem:[%s4] sm:$0x1]
    %v3288 = vlaneseq
    %v3289 = vshrl.u32 %v3288, 7
    %v3290 = vsub.s32 0, %v3289
    %v3291 = vrot.slane %v3286, %v3290
    %v3293 = vadd.f32 %v3284, %v3291
    %v3294 = vadd.f32 %v3285, %v3291
    %v3295 = vmax.f32 %v3293, 0.0
    %v3296 = vmax.f32 %v3294, 0.0
    %vm3297 = vcmask 385024
    %3298 = vst.msk [vmem:[#allocation3] sm:$0x1] %vm3297, %v3295
    %v3301 = vunpack.c.l.s4 1983009808
    %v3302 = vunpack.c.0.s8 %v3301
    %v3303 = vlaneseq
    %v3304 = vshrl.u32 %v3303, 7
    %v3305 = vsub.s32 %v3302, %v3304
    %v3306 = vrot.slane %v3295, %v3305
    %v3307 = vcombine.high %v3306, %v3306
    %3308 = vrot.lane.b32.xlu0 %v3307, 48
    %v3309 = vpop.permute.xlu0 %3308
    %vm3311 = vcmask 778624
    %3312 = vst.msk [vmem:[#allocation3] sm:$0x1] %vm3311, %v3309
    %v3313 = vcombine.high %v3295, %v3295
    %v3315 = vunpack.c.l.s4 1983009808
    %v3316 = vunpack.c.0.s8 %v3315
    %v3317 = vlaneseq
    %v3318 = vshrl.u32 %v3317, 7
    %v3319 = vsub.s32 %v3316, %v3318
    %v3320 = vrot.slane %v3313, %v3319
    %3321 = vrot.lane.b32.xlu0 %v3320, 96
    %v3322 = vpop.permute.xlu0 %3321
    %v3323 = vrot.slane %v3322, 6
    %vm3324 = vcmask 785408
    %v3325 = vsel %vm3324, %v3323, %v3322
    %vm3327 = vcmask 1041152
    %vm3328 = vcmask 124930
    %vm3329 = vmor %vm3328, %vm3327
    %3330 = vst.msk [vmem:[#allocation3] sm:$0x5] %vm3329, %v3325
    %3331 = vst.msk [vmem:[#allocation3 + $0x1] sm:$0x1] %vm3297, %v3296
    %v3334 = vunpack.c.l.s4 1983009808
    %v3335 = vunpack.c.0.s8 %v3334
    %v3336 = vlaneseq
    %v3337 = vshrl.u32 %v3336, 7
    %v3338 = vsub.s32 %v3335, %v3337
    %v3339 = vrot.slane %v3296, %v3338
    %v3340 = vcombine.high %v3339, %v3339
    %3341 = vrot.lane.b32.xlu0 %v3340, 48
    %v3342 = vpop.permute.xlu0 %3341
    %3344 = vst.msk [vmem:[#allocation3 + $0x1] sm:$0x1] %vm3311, %v3342
    %v3345 = vcombine.high %v3296, %v3296
    %v3347 = vunpack.c.l.s4 1983009808
    %v3348 = vunpack.c.0.s8 %v3347
    %v3349 = vlaneseq
    %v3350 = vshrl.u32 %v3349, 7
    %v3351 = vsub.s32 %v3348, %v3350
    %v3352 = vrot.slane %v3345, %v3351
    %3353 = vrot.lane.b32.xlu0 %v3352, 96
    %v3354 = vpop.permute.xlu0 %3353
    %v3355 = vrot.slane %v3354, 6
    %v3356 = vsel %vm3324, %v3355, %v3354
    %3358 = vst.msk [vmem:[#allocation3 + $0x1] sm:$0x5] %vm3329, %v3356
    %v3359 = vld [vmem:[#allocation3] sm:$0xf]
    %v3360 = vld [vmem:[%s5] sm:$0xff]
    %v3361 = vld [vmem:[%s5 + $0x8] sm:$0xff]
    %v3362 = vld [vmem:[%s5 + $0x10] sm:$0xff]
    %v3363 = vld [vmem:[%s5 + $0x18] sm:$0xff]
    %v3364 = vld [vmem:[%s5 + $0x20] sm:$0xff]
    %v3365 = vld [vmem:[%s5 + $0x28] sm:$0xff]
    %v3366 = vld [vmem:[%s5 + $0x30] sm:$0xff]
    %v3367 = vld [vmem:[%s5 + $0x38] sm:$0xff]
    %v3368 = vld [vmem:[%s5 + $0x40] sm:$0xff]
    %v3369 = vld [vmem:[%s5 + $0x48] sm:$0xff]
    %v3370 = vld [vmem:[%s5 + $0x50] sm:$0xff]
    %v3371 = vld [vmem:[%s5 + $0x58] sm:$0xff]
    %v3372 = vld [vmem:[%s5 + $0x60] sm:$0xff]
    %v3373 = vld [vmem:[%s5 + $0x68] sm:$0xff]
    %v3374 = vld [vmem:[%s5 + $0x70] sm:$0xff]
    %v3375 = vld [vmem:[%s5 + $0x78] sm:$0xff]
    %v3376 = vld [vmem:[%s5 + $0x80] sm:$0xff]
    %v3377 = vld [vmem:[%s5 + $0x88] sm:$0xff]
    %v3378 = vld [vmem:[%s5 + $0x90] sm:$0xff]
    %v3379 = vld [vmem:[%s5 + $0x98] sm:$0xff]
    %v3380 = vld [vmem:[%s5 + $0xa0] sm:$0xff]
    %v3381 = vld [vmem:[%s5 + $0xa8] sm:$0xff]
    %v3382 = vld [vmem:[%s5 + $0xb0] sm:$0xff]
    %v3383 = vld [vmem:[%s5 + $0xb8] sm:$0xff]
    %v3384 = vld [vmem:[%s5 + $0xc0] sm:$0xff]
    %v3385 = vld [vmem:[%s5 + $0xc8] sm:$0xff]
    %v3386 = vld [vmem:[%s5 + $0xd0] sm:$0xff]
    %v3387 = vld [vmem:[%s5 + $0xd8] sm:$0xff]
    %v3388 = vld [vmem:[%s5 + $0xe0] sm:$0xff]
    %v3389 = vld [vmem:[%s5 + $0xe8] sm:$0xff]
    %v3390 = vld [vmem:[%s5 + $0xf0] sm:$0xff]
    %v3391 = vld [vmem:[%s5 + $0xf8] sm:$0xff]
    %v3392 = vld [vmem:[%s5 + $0x100] sm:$0xff]
    %v3393 = vld [vmem:[%s5 + $0x108] sm:$0xff]
    %v3394 = vld [vmem:[%s5 + $0x110] sm:$0xff]
    %v3395 = vld [vmem:[%s5 + $0x118] sm:$0xff]
    %v3396 = vld [vmem:[%s6] sm:$0x3]
    %v3398 = vlaneseq
    %v3399 = vshrl.u32 %v3398, 7
    %v3400 = vsub.s32 0, %v3399
    %v3401 = vrot.slane %v3396, %v3400
    %v3402 = vlaneseq
    %v3403 = vshrl.u32 %v3402, 7
    %v3404 = vsub.s32 1, %v3403
    %v3405 = vrot.slane %v3396, %v3404
    %v3410 = vunpack.c.l.s4 1983009808
    %v3411 = vunpack.c.0.s8 %v3410
    %v3412 = vlaneseq
    %v3413 = vshrl.u32 %v3412, 7
    %v3414 = vsub.s32 %v3411, %v3413
    %v3415 = vrot.slane %v3359, %v3414
    %v3416 = vcombine.high %v3415, %v3415
    %vm3418 = vcmask 130048
    %v3419 = vsel %vm3418, %v3416, 0
    %3421 = vmatprep.subr.mxu0 %v3361
    %3422 = vmatpush1.msra.mxu0 %v3360
    %3423 = vmatprep.subr.mxu0 %v3363
    %3424 = vmatpush1.msra.mxu0 %v3362
    %3425 = vmatprep.subr.mxu0 %v3365
    %3426 = vmatpush1.msra.mxu0 %v3364
    %3427 = vmatprep.subr.mxu0 %v3367
    %3428 = vmatpush1.msra.mxu0 %v3366
    %3429 = vmatprep.subr.mxu0 %v3369
    %3430 = vmatpush1.msra.mxu0 %v3368
    %3431 = vmatprep.subr.mxu0 %v3371
    %3432 = vmatpush1.msra.mxu0 %v3370
    %3433 = vmatprep.subr.mxu0 %v3373
    %3434 = vmatpush1.msra.mxu0 %v3372
    %3435 = vmatprep.subr.mxu0 %v3375
    %3436 = vmatpush1.msra.mxu0 %v3374
    %3437 = vmatprep.subr.mxu0 %v3377
    %3438 = vmatpush1.msra.mxu0 %v3376
    %3439 = vmatprep.subr.mxu0 %v3379
    %3440 = vmatpush1.msra.mxu0 %v3378
    %3441 = vmatprep.subr.mxu0 %v3381
    %3442 = vmatpush1.msra.mxu0 %v3380
    %3443 = vmatprep.subr.mxu0 %v3383
    %3444 = vmatpush1.msra.mxu0 %v3382
    %3445 = vmatprep.subr.mxu0 %v3385
    %3446 = vmatpush1.msra.mxu0 %v3384
    %3447 = vmatprep.subr.mxu0 %v3387
    %3448 = vmatpush1.msra.mxu0 %v3386
    %3449 = vmatprep.subr.mxu0 %v3389
    %3450 = vmatpush1.msra.mxu0 %v3388
    %3451 = vmatprep.subr.mxu0 %v3391
    %3452 = vmatpush1.msra.mxu0 %v3390
    %3453 = vmatprep.subr.mxu0 %v3393
    %3454 = vmatpush1.msra.mxu0 %v3392
    %3455 = vmatprep.subr.mxu0 %v3395
    %3456 = vmatpush1.msra.mxu0 %v3394
    %3457 = vmatprep.subr.mxu0 0.0
    %3458 = vmatpush1.msra.mxu0 0.0
    %3459 = vmatprep.subr.mxu0 0.0
    %3460 = vmatpush1.msra.mxu0 0.0
    %3461 = vmatprep.subr.mxu0 0.0
    %3462 = vmatpush1.msra.mxu0 0.0
    %3463 = vmatprep.subr.mxu0 0.0
    %3464 = vmatpush1.msra.mxu0 0.0
    %3465 = vmatprep.subr.mxu0 0.0
    %3466 = vmatpush1.msra.mxu0 0.0
    %3467 = vmatprep.subr.mxu0 0.0
    %3468 = vmatpush1.msra.mxu0 0.0
    %3469 = vmatprep.subr.mxu0 0.0
    %3470 = vmatpush1.msra.mxu0 0.0
    %3471 = vmatprep.subr.mxu0 0.0
    %3472 = vmatpush1.msra.mxu0 0.0
    %3473 = vmatprep.subr.mxu0 0.0
    %3474 = vmatpush1.msra.mxu0 0.0
    %3475 = vmatprep.subr.mxu0 0.0
    %3476 = vmatpush1.msra.mxu0 0.0
    %3477 = vmatprep.subr.mxu0 0.0
    %3478 = vmatpush1.msra.mxu0 0.0
    %3479 = vmatprep.subr.mxu0 0.0
    %3480 = vmatpush1.msra.mxu0 0.0
    %3481 = vmatprep.subr.mxu0 0.0
    %3482 = vmatpush1.msra.mxu0 0.0
    %3483 = vmatprep.subr.mxu0 0.0
    %3484 = vmatpush1.msra.mxu0 0.0
    %3485 = vmatprep.mubr.f32.mxu0 %v3419
    %3486 = vmatmul.mubr.f32.gmra.mrb[0].mxu0 %v3415
    %v3487 = vpop.f32.mrb[0].mxu0
    %v3488 = vadd.f32 %v3401, %v3487
    %v3489 = vpop.f32.mrb[0].mxu0
    %v3490 = vadd.f32 %v3405, %v3489
    %3491 = vdwg.mxu0
    %v3492 = vmax.f32 %v3488, 0.0
    %v3493 = vmax.f32 %v3490, 0.0
    %v3494 = vld [vmem:[%s7] sm:$0xff]
    %v3495 = vld [vmem:[%s7 + $0x8] sm:$0xff]
    %v3496 = vld [vmem:[%s7 + $0x10] sm:$0xff]
    %v3497 = vld [vmem:[%s7 + $0x18] sm:$0xff]
    %v3498 = vld [vmem:[%s7 + $0x20] sm:$0xff]
    %v3499 = vld [vmem:[%s7 + $0x28] sm:$0xff]
    %v3500 = vld [vmem:[%s7 + $0x30] sm:$0xff]
    %v3501 = vld [vmem:[%s7 + $0x38] sm:$0xff]
    %v3502 = vld [vmem:[%s7 + $0x40] sm:$0xff]
    %v3503 = vld [vmem:[%s7 + $0x48] sm:$0xff]
    %v3504 = vld [vmem:[%s7 + $0x50] sm:$0xff]
    %v3505 = vld [vmem:[%s7 + $0x58] sm:$0xff]
    %v3506 = vld [vmem:[%s7 + $0x60] sm:$0xff]
    %v3507 = vld [vmem:[%s7 + $0x68] sm:$0xff]
    %v3508 = vld [vmem:[%s7 + $0x70] sm:$0xff]
    %v3509 = vld [vmem:[%s7 + $0x78] sm:$0xff]
    %v3510 = vld [vmem:[%s7 + $0x80] sm:$0xff]
    %v3511 = vld [vmem:[%s7 + $0x88] sm:$0xff]
    %v3512 = vld [vmem:[%s7 + $0x90] sm:$0xff]
    %v3513 = vld [vmem:[%s7 + $0x98] sm:$0xff]
    %v3514 = vld [vmem:[%s7 + $0xa0] sm:$0xff]
    %v3515 = vld [vmem:[%s7 + $0xa8] sm:$0xff]
    %v3516 = vld [vmem:[%s7 + $0xb0] sm:$0xff]
    %v3517 = vld [vmem:[%s7 + $0xb8] sm:$0xff]
    %v3518 = vld [vmem:[%s7 + $0xc0] sm:$0xff]
    %v3519 = vld [vmem:[%s7 + $0xc8] sm:$0xff]
    %v3520 = vld [vmem:[%s7 + $0xd0] sm:$0xff]
    %v3521 = vld [vmem:[%s7 + $0xd8] sm:$0xff]
    %v3522 = vld [vmem:[%s7 + $0xe0] sm:$0xff]
    %v3523 = vld [vmem:[%s7 + $0xe8] sm:$0xff]
    %v3524 = vld [vmem:[%s7 + $0xf0] sm:$0xff]
    %v3525 = vld [vmem:[%s7 + $0xf8] sm:$0xff]
    %v3526 = vld [vmem:[%s8] sm:$0x1]
    %v3528 = vlaneseq
    %v3529 = vshrl.u32 %v3528, 7
    %v3530 = vsub.s32 0, %v3529
    %v3531 = vrot.slane %v3526, %v3530
    %3533 = vmatprep.subr.mxu0 0.0
    %3534 = vmatpush1.msra.mxu0 %v3494
    %3535 = vmatprep.subr.mxu0 0.0
    %3536 = vmatpush1.msra.mxu0 %v3495
    %3537 = vmatprep.subr.mxu0 0.0
    %3538 = vmatpush1.msra.mxu0 %v3496
    %3539 = vmatprep.subr.mxu0 0.0
    %3540 = vmatpush1.msra.mxu0 %v3497
    %3541 = vmatprep.subr.mxu0 0.0
    %3542 = vmatpush1.msra.mxu0 %v3498
    %3543 = vmatprep.subr.mxu0 0.0
    %3544 = vmatpush1.msra.mxu0 %v3499
    %3545 = vmatprep.subr.mxu0 0.0
    %3546 = vmatpush1.msra.mxu0 %v3500
    %3547 = vmatprep.subr.mxu0 0.0
    %3548 = vmatpush1.msra.mxu0 %v3501
    %3549 = vmatprep.subr.mxu0 0.0
    %3550 = vmatpush1.msra.mxu0 %v3502
    %3551 = vmatprep.subr.mxu0 0.0
    %3552 = vmatpush1.msra.mxu0 %v3503
    %3553 = vmatprep.subr.mxu0 0.0
    %3554 = vmatpush1.msra.mxu0 %v3504
    %3555 = vmatprep.subr.mxu0 0.0
    %3556 = vmatpush1.msra.mxu0 %v3505
    %3557 = vmatprep.subr.mxu0 0.0
    %3558 = vmatpush1.msra.mxu0 %v3506
    %3559 = vmatprep.subr.mxu0 0.0
    %3560 = vmatpush1.msra.mxu0 %v3507
    %3561 = vmatprep.subr.mxu0 0.0
    %3562 = vmatpush1.msra.mxu0 %v3508
    %3563 = vmatprep.subr.mxu0 0.0
    %3564 = vmatpush1.msra.mxu0 %v3509
    %3565 = vmatprep.subr.mxu0 0.0
    %3566 = vmatpush1.msra.mxu0 %v3510
    %3567 = vmatprep.subr.mxu0 0.0
    %3568 = vmatpush1.msra.mxu0 %v3511
    %3569 = vmatprep.subr.mxu0 0.0
    %3570 = vmatpush1.msra.mxu0 %v3512
    %3571 = vmatprep.subr.mxu0 0.0
    %3572 = vmatpush1.msra.mxu0 %v3513
    %3573 = vmatprep.subr.mxu0 0.0
    %3574 = vmatpush1.msra.mxu0 %v3514
    %3575 = vmatprep.subr.mxu0 0.0
    %3576 = vmatpush1.msra.mxu0 %v3515
    %3577 = vmatprep.subr.mxu0 0.0
    %3578 = vmatpush1.msra.mxu0 %v3516
    %3579 = vmatprep.subr.mxu0 0.0
    %3580 = vmatpush1.msra.mxu0 %v3517
    %3581 = vmatprep.subr.mxu0 0.0
    %3582 = vmatpush1.msra.mxu0 %v3518
    %3583 = vmatprep.subr.mxu0 0.0
    %3584 = vmatpush1.msra.mxu0 %v3519
    %3585 = vmatprep.subr.mxu0 0.0
    %3586 = vmatpush1.msra.mxu0 %v3520
    %3587 = vmatprep.subr.mxu0 0.0
    %3588 = vmatpush1.msra.mxu0 %v3521
    %3589 = vmatprep.subr.mxu0 0.0
    %3590 = vmatpush1.msra.mxu0 %v3522
    %3591 = vmatprep.subr.mxu0 0.0
    %3592 = vmatpush1.msra.mxu0 %v3523
    %3593 = vmatprep.subr.mxu0 0.0
    %3594 = vmatpush1.msra.mxu0 %v3524
    %3595 = vmatprep.subr.mxu0 0.0
    %3596 = vmatpush1.msra.mxu0 %v3525
    %3597 = vmatprep.mubr.f32.mxu0 %v3493
    %3598 = vmatmul.mubr.f32.gmra.mrb[0].mxu0 %v3492
    %v3599 = vpop.f32.mrb[0].mxu0
    %v3600 = vadd.f32 %v3531, %v3599
    %v3601 = vpop.f32.mrb[0].mxu0
    %3602 = vdwg.mxu0
    %v3603 = vmax.f32 %v3600, 0.0
    %3604 = vst [vmem:[#allocation4] sm:$0x3] %v3603
    // Predicated region
    $region38: #{_in_cnn_forward.1} parent=1 // pred_check
      _
    $region39: #{_in_cnn_forward.1} parent=1 // pred_check_branch
      %3606 = sbr.rel (0) target = $region41
    $region40: #{_in_cnn_forward.1} parent=1 // pred_region
      %s3608 = ssub.s32 32, 32
      %3609 = vsyncadd [#allocation5], %s3608
      %s3611 = sshll.u32 [#allocation4], 4
      %s3612 = int_to_ptr.vmem [resolvable:$true] %s3611
      %3614 = dma.vmem_to_hbm [thread:$0]  %s3612, 32, %s9, [#allocation5]
    $region41: #{_in_cnn_forward.1} parent=1 // pred_fallthru
      _
    // Predicated region
    $region42: #{_in_cnn_forward.1} parent=1 // pred_check
      _
    $region43: #{_in_cnn_forward.1} parent=1 // pred_check_branch
      %3616 = sbr.rel (0) target = $region45
    $region44: #{_in_cnn_forward.1} parent=1 // pred_region
      %3617 = dma.done [#allocation5], 32
    $region45: #{_in_cnn_forward.1} parent=1 // pred_fallthru
      _
    %3618 = vsyncpa [#allocation5], 1

</llo_original>
